<compile_context>
chip_gen: v5e
topology: v5e:2x2
jax: 0.10.0
libtpu: 0.0.40
codegen_flags: <defaults>
</compile_context>

<pallas_src>
import jax
import jax.numpy as jnp
from jax.experimental import pallas as pl
from jax.experimental.pallas import tpu as pltpu


def _round_up(n, m):
    return ((n + m - 1) // m) * m


def _pick_b_tile(batch):
    """Rows of the batch tile per grid step.

    * multiple of 8 (sublanes), capped at 128 rows (fills the MXU on every generation;
      v6e/v7x could go to 256 for very large batches),
    * aims for >= 2 grid steps whenever the batch allows, so the "parallel" batch axis
      can shard across v7x's two TensorCores.
    """
    bp = _round_up(batch, 8)
    if bp <= 8:
        return 8
    half = _round_up((bp + 1) // 2, 8)
    return min(128, half)


def _vmem_limit_bytes(T, b_tile, Din, Hp, Dp, Tc, weight_bytes):
    f32 = 4
    est = (2 * T * b_tile * Din * f32            # double-buffered x tile
           + 2 * T * b_tile * Dp * f32           # double-buffered out tile
           + 2 * weight_bytes                    # weight/bias operands
           + Tc * b_tile * 4 * Hp * f32          # pre-activation scratch
           + 16 * b_tile * 4 * max(Hp, Dp) * f32)  # gates / h / c working set (generous)
    # Keep within physical VMEM on all generations (v7x = 64 MiB).
    return int(min(max(2 * est, 32 * 2 ** 20), 100 * 2 ** 20))


# --------------------------------- kernel ---------------------------------
def lstm_ae_kernel(x_ref, wih_e_ref, whh_e_ref, b_e_ref,
                   wih_d_ref, whh_d_ref, b_d_ref, out_ref, pre_ref):
    # x_ref:   (T, Bb, Din)   time-major input tile (Bb = batch tile)
    # wih_e:   (Din, 4*Hp)    encoder input weights (pre-transposed, gate-padded)
    # whh_e:   (Hp,  4*Hp)    encoder recurrent weights
    # b_e:     (1,   4*Hp)    b_ih + b_hh (encoder), f32
    # wih_d:   (Hp,  4*Dp)    decoder input weights
    # whh_d:   (Dp,  4*Dp)    decoder recurrent weights
    # b_d:     (1,   4*Dp)    f32
    # out_ref: (T, Bb, Dp)    decoder hidden states, time-major
    # pre_ref: (Tc, Bb, 4*Hp) VMEM scratch for the chunked encoder input projection
    T, Bb, Din = x_ref.shape
    Hp = whh_e_ref.shape[0]
    Dp = whh_d_ref.shape[0]
    Tc = pre_ref.shape[0]
    mm_dtype = wih_e_ref.dtype          # f32 (parity) or bf16 (v6e/v7x fast path)

    wih_e = wih_e_ref[...]
    whh_e = whh_e_ref[...]
    b_e = b_e_ref[...]
    wih_d = wih_d_ref[...]
    whh_d = whh_d_ref[...]
    b_d = b_d_ref[...]

    def lstm_cell(pre, h, c, whh, hidden):
        # `pre` already holds x_t @ W_ih^T + b; only h @ W_hh^T sits on the serial chain.
        gates = pre + jnp.dot(h.astype(whh.dtype), whh,
                              preferred_element_type=jnp.float32)
        # Fused activations: i and f are contiguous -> one sigmoid over 2*hidden lanes,
        # one tanh (g), one sigmoid (o).  hidden % 128 == 0 -> every slice is lane-aligned.
        i_f = jax.nn.sigmoid(gates[:, 0:2 * hidden])
        g = jnp.tanh(gates[:, 2 * hidden:3 * hidden])
        o = jax.nn.sigmoid(gates[:, 3 * hidden:4 * hidden])
        i = i_f[:, :hidden]
        f = i_f[:, hidden:]
        c_new = f * c + i * g
        h_new = o * jnp.tanh(c_new)
        return h_new, c_new

    # ---------------- encoder: chunked hoisted projection + recurrence ----------------
    h = jnp.zeros((Bb, Hp), jnp.float32)
    c = jnp.zeros((Bb, Hp), jnp.float32)

    t0 = 0
    while t0 < T:                        # static Python loop over chunk boundaries
        csize = min(Tc, T - t0)
        # One (csize*Bb, Din) @ (Din, 4Hp) MXU matmul per chunk -> VMEM scratch.
        x_chunk = x_ref[pl.ds(t0, csize)].reshape(csize * Bb, Din)
        pre = jnp.dot(x_chunk.astype(mm_dtype), wih_e,
                      preferred_element_type=jnp.float32) + b_e
        pre_ref[pl.ds(0, csize)] = pre.reshape(csize, Bb, 4 * Hp)

        def enc_step(t, carry):
            hh, cc = carry
            return lstm_cell(pre_ref[t], hh, cc, whh_e, Hp)

        h, c = jax.lax.fori_loop(0, csize, enc_step, (h, c),
                                 unroll=min(8, csize))
        t0 += csize

    # ---------------- decoder: every step sees the repeated encoder hidden ----------------
    pre_d = jnp.dot(h.astype(mm_dtype), wih_d,
                    preferred_element_type=jnp.float32) + b_d       # (Bb, 4Dp)

    def dec_step(t, carry):
        hh, cc = carry
        h_new, c_new = lstm_cell(pre_d, hh, cc, whh_d, Dp)
        out_ref[t] = h_new.astype(out_ref.dtype)    # lane-dense store, no carried output tensor
        return h_new, c_new

    hd0 = jnp.zeros((Bb, Dp), jnp.float32)
    cd0 = jnp.zeros((Bb, Dp), jnp.float32)
    jax.lax.fori_loop(0, T, dec_step, (hd0, cd0), unroll=min(8, T))


# --------------------------------- wrapper ---------------------------------
def lstm_autoencoder_pallas(x, params, t_chunk=None):
    B, T, Din = x.shape
    Hp = params["whh_e_T"].shape[0]
    Dp = params["whh_d_T"].shape[0]

    b_tile = _pick_b_tile(B)
    B_pad = _round_up(B, b_tile)
    grid = (B_pad // b_tile,)

    # Time-major layout for contiguous per-step reads/stores inside the kernel.
    # TODO(synk): if the surrounding pipeline can be kept time-major, both wrapper transposes
    # (one extra HBM round trip each) disappear entirely.
    x_tm = jnp.transpose(x, (1, 0, 2)).astype(jnp.float32)          # (T, B, Din)
    if B_pad != B:
        x_tm = jnp.pad(x_tm, ((0, 0), (0, B_pad - B), (0, 0)))      # zero-pad batch

    if t_chunk is None:
        t_chunk = max(1, min(T, 1024 // b_tile))   # >= ~1024 projection rows per chunk
    Tc = max(1, min(int(t_chunk), T))

    weight_bytes = sum(int(params[k].size) * params[k].dtype.itemsize
                       for k in ("wih_e_T", "whh_e_T", "b_e", "wih_d_T", "whh_d_T", "b_d"))
    vmem_bytes = _vmem_limit_bytes(T, b_tile, Din, Hp, Dp, Tc, weight_bytes)

    out = pl.pallas_call(
        lstm_ae_kernel,
        out_shape=jax.ShapeDtypeStruct((T, B_pad, Dp), jnp.float32),
        grid_spec=pltpu.PrefetchScalarGridSpec(
            num_scalar_prefetch=0,
            grid=grid,
            in_specs=[
                # x, tiled over batch (Din << 128 -> small block; lane-repacking skipped, see header)
                pl.BlockSpec((T, b_tile, Din), lambda b: (0, b, 0)),
                pl.BlockSpec(params["wih_e_T"].shape, lambda b: (0, 0)),
                pl.BlockSpec(params["whh_e_T"].shape, lambda b: (0, 0)),
                pl.BlockSpec(params["b_e"].shape, lambda b: (0, 0)),
                pl.BlockSpec(params["wih_d_T"].shape, lambda b: (0, 0)),
                pl.BlockSpec(params["whh_d_T"].shape, lambda b: (0, 0)),
                pl.BlockSpec(params["b_d"].shape, lambda b: (0, 0)),
            ],
            out_specs=pl.BlockSpec((T, b_tile, Dp), lambda b: (0, b, 0)),
            scratch_shapes=[pltpu.VMEM((Tc, b_tile, 4 * Hp), jnp.float32)],
        ),
        compiler_params=pltpu.CompilerParams(
            dimension_semantics=("parallel",),
            vmem_limit_bytes=vmem_bytes,
        ),
    )(x_tm, params["wih_e_T"], params["whh_e_T"], params["b_e"],
      params["wih_d_T"], params["whh_d_T"], params["b_d"])

    # Drop batch/lane padding first (16x less data when Din << Dp), then go batch-first.
    return jnp.transpose(out[:, :B, :Din], (1, 0, 2))


# ------------------------- parameter prep (padding) -------------------------
def prepare_params(raw, input_dim, hidden_dim, lane=128, matmul_dtype=jnp.float32):
    """Transpose PyTorch-layout LSTM weights and zero-pad hidden sizes to lane multiples.

    Padded hidden/cell entries stay exactly 0 through the recurrence (their gate columns,
    recurrent rows and biases are all zero), so results on the real columns are unchanged.
    `matmul_dtype=bf16` halves weight DMA/VMEM and ~3x's the MXU matmuls on v6e/v7x; biases
    and all elementwise gate math stay f32 (accumulation stays f32 either way).
    """
    H, D = hidden_dim, input_dim
    Hp, Dp = _round_up(H, lane), _round_up(D, lane)

    def pad_gate_cols(w_T, h, hp):
        n_in = w_T.shape[0]
        w4 = w_T.reshape(n_in, 4, h)
        return jnp.pad(w4, ((0, 0), (0, 0), (0, hp - h))).reshape(n_in, 4 * hp)

    def pad_rows(w, rows_p):
        return jnp.pad(w, ((0, rows_p - w.shape[0]), (0, 0)))

    def pad_bias(b, h, hp):
        return jnp.pad(b.reshape(4, h), ((0, 0), (0, hp - h))).reshape(1, 4 * hp)

    return {
        "wih_e_T": pad_gate_cols(raw["wih_e"].T, H, Hp).astype(matmul_dtype),          # (Din, 4Hp)
        "whh_e_T": pad_rows(pad_gate_cols(raw["whh_e"].T, H, Hp), Hp).astype(matmul_dtype),  # (Hp, 4Hp)
        "b_e": pad_bias(raw["b_e"], H, Hp).astype(jnp.float32),                        # (1,   4Hp)
        "wih_d_T": pad_rows(pad_gate_cols(raw["wih_d"].T, D, Dp), Hp).astype(matmul_dtype),  # (Hp, 4Dp)
        "whh_d_T": pad_rows(pad_gate_cols(raw["whh_d"].T, D, Dp), Dp).astype(matmul_dtype),  # (Dp, 4Dp)
        "b_d": pad_bias(raw["b_d"], D, Dp).astype(jnp.float32),                        # (1,   4Dp)
    }


def init_params(key, input_dim, hidden_dim):
    # PyTorch nn.LSTM init: U(-k, k) with k = 1/sqrt(hidden_size of that layer).
    ks = jax.random.split(key, 8)

    def u(k, shape, bound):
        return jax.random.uniform(k, shape, jnp.float32, -bound, bound)

    ke = 1.0 / jnp.sqrt(hidden_dim)
    wih_e = u(ks[0], (4 * hidden_dim, input_dim), ke)     # PyTorch layout (4H, Din)
    whh_e = u(ks[1], (4 * hidden_dim, hidden_dim), ke)
    b_e = u(ks[2], (4 * hidden_dim,), ke) + u(ks[3], (4 * hidden_dim,), ke)   # b_ih + b_hh

    kd = 1.0 / jnp.sqrt(input_dim)                        # decoder hidden size = input_dim
    wih_d = u(ks[4], (4 * input_dim, hidden_dim), kd)
    whh_d = u(ks[5], (4 * input_dim, input_dim), kd)
    b_d = u(ks[6], (4 * input_dim,), kd) + u(ks[7], (4 * input_dim,), kd)

    return {"wih_e": wih_e, "whh_e": whh_e, "b_e": b_e,
            "wih_d": wih_d, "whh_d": whh_d, "b_d": b_d}


# --------------- pure-JAX reference (mirrors torch.nn.LSTM semantics) ---------------
def _lstm_ref(x_seq, wih, whh, b, hidden):
    B, T, _ = x_seq.shape
    h = jnp.zeros((B, hidden), jnp.float32)
    c = jnp.zeros((B, hidden), jnp.float32)
    outs = []
    for t in range(T):
        gates = x_seq[:, t, :] @ wih.T + h @ whh.T + b
        i = jax.nn.sigmoid(gates[:, 0 * hidden:1 * hidden])
        f = jax.nn.sigmoid(gates[:, 1 * hidden:2 * hidden])
        g = jnp.tanh(gates[:, 2 * hidden:3 * hidden])
        o = jax.nn.sigmoid(gates[:, 3 * hidden:4 * hidden])
        c = f * c + i * g
        h = o * jnp.tanh(c)
        outs.append(h)
    return jnp.stack(outs, axis=1), h


def lstm_autoencoder_ref(x, raw, seq_len):
    H = raw["whh_e"].shape[1]
    D = raw["whh_d"].shape[1]
    _, h_enc = _lstm_ref(x, raw["wih_e"], raw["whh_e"], raw["b_e"], H)
    dec_in = jnp.broadcast_to(h_enc[:, None, :], (x.shape[0], seq_len, H))
    decoded, _ = _lstm_ref(dec_in, raw["wih_d"], raw["whh_d"], raw["b_d"], D)
    return decoded


if __name__ == "__main__":
    key = jax.random.PRNGKey(0)
    kx1, kx2, kp = jax.random.split(key, 3)

    # ---- config 1: small shapes, f32 parity with the PyTorch-equivalent reference ----
    B, T, Din, H = 2, 8, 8, 32
    x = jax.random.normal(kx1, (B, T, Din), jnp.float32)
    raw = init_params(kp, Din, H)

    params_f32 = prepare_params(raw, Din, H)
    out = jax.block_until_ready(lstm_autoencoder_pallas(x, params_f32))
    ref = lstm_autoencoder_ref(x, raw, T)
    assert out.shape == (B, T, Din)
    assert jnp.allclose(out, ref, atol=1e-4, rtol=1e-4), "f32 mismatch vs. reference"

    # ---- config 2: non-multiple-of-8 batch (padding path), 2-step grid, ragged T-chunking ----
    B2, T2 = 20, 10
    x2 = jax.random.normal(kx2, (B2, T2, Din), jnp.float32)
    out2 = jax.block_until_ready(lstm_autoencoder_pallas(x2, params_f32, t_chunk=4))
    ref2 = lstm_autoencoder_ref(x2, raw, T2)
    assert out2.shape == (B2, T2, Din)
    assert jnp.allclose(out2, ref2, atol=1e-4, rtol=1e-4), "padded/chunked mismatch vs. reference"

    # ---- config 3: bf16 matmul operands (v6e/v7x fast path), f32 accumulation ----
    params_bf16 = prepare_params(raw, Din, H, matmul_dtype=jnp.bfloat16)
    out_bf16 = jax.block_until_ready(lstm_autoencoder_pallas(x, params_bf16))
    assert out_bf16.shape == (B, T, Din)
    assert float(jnp.max(jnp.abs(out_bf16 - ref))) < 5e-2, "bf16 path deviates too far"

    print("KERNEL_OK")
</pallas_src>

<mosaic_0001>
module attributes {stable_mosaic.version = 11 : i64} {
  func.func @lstm_ae_kernel(%arg0: i32, %arg1: memref<8x8x8xf32, #tpu.memory_space<vmem>>, %arg2: memref<8x512xf32, #tpu.memory_space<vmem>>, %arg3: memref<128x512xf32, #tpu.memory_space<vmem>>, %arg4: memref<1x512xf32, #tpu.memory_space<vmem>>, %arg5: memref<128x512xf32, #tpu.memory_space<vmem>>, %arg6: memref<128x512xf32, #tpu.memory_space<vmem>>, %arg7: memref<1x512xf32, #tpu.memory_space<vmem>>, %arg8: memref<8x8x128xf32, #tpu.memory_space<vmem>>, %arg9: memref<8x8x512xf32, #tpu.memory_space<vmem>>) attributes {dimension_semantics = [#tpu.dimension_semantics<parallel>], iteration_bounds = array<i64: 1>, scalar_prefetch = 0 : i64, scratch_operands = 1 : i64, tpu.core_type = #tpu.core_type<tc>, window_params = [{transform_indices = @transform_0, window_bounds = array<i64: 8, 8, 8>}, {pipeline_mode = #tpu.pipeline_mode<synchronous>, transform_indices = @transform_1, window_bounds = array<i64: 8, 512>}, {pipeline_mode = #tpu.pipeline_mode<synchronous>, transform_indices = @transform_2, window_bounds = array<i64: 128, 512>}, {pipeline_mode = #tpu.pipeline_mode<synchronous>, transform_indices = @transform_3, window_bounds = array<i64: 1, 512>}, {pipeline_mode = #tpu.pipeline_mode<synchronous>, transform_indices = @transform_4, window_bounds = array<i64: 128, 512>}, {pipeline_mode = #tpu.pipeline_mode<synchronous>, transform_indices = @transform_5, window_bounds = array<i64: 128, 512>}, {pipeline_mode = #tpu.pipeline_mode<synchronous>, transform_indices = @transform_6, window_bounds = array<i64: 1, 512>}, {transform_indices = @transform_7, window_bounds = array<i64: 8, 8, 128>}]} {
    %c0 = arith.constant 0 : index
    %c0_0 = arith.constant 0 : index
    %0 = vector.load %arg2[%c0, %c0_0] : memref<8x512xf32, #tpu.memory_space<vmem>>, vector<8x512xf32>
    %c0_1 = arith.constant 0 : index
    %c0_2 = arith.constant 0 : index
    %1 = vector.load %arg3[%c0_1, %c0_2] : memref<128x512xf32, #tpu.memory_space<vmem>>, vector<128x512xf32>
    %c0_3 = arith.constant 0 : index
    %c0_4 = arith.constant 0 : index
    %2 = vector.load %arg4[%c0_3, %c0_4] : memref<1x512xf32, #tpu.memory_space<vmem>>, vector<1x512xf32>
    %c0_5 = arith.constant 0 : index
    %c0_6 = arith.constant 0 : index
    %3 = vector.load %arg5[%c0_5, %c0_6] : memref<128x512xf32, #tpu.memory_space<vmem>>, vector<128x512xf32>
    %c0_7 = arith.constant 0 : index
    %c0_8 = arith.constant 0 : index
    %4 = vector.load %arg6[%c0_7, %c0_8] : memref<128x512xf32, #tpu.memory_space<vmem>>, vector<128x512xf32>
    %c0_9 = arith.constant 0 : index
    %c0_10 = arith.constant 0 : index
    %5 = vector.load %arg7[%c0_9, %c0_10] : memref<1x512xf32, #tpu.memory_space<vmem>>, vector<1x512xf32>
    %cst = arith.constant 0.000000e+00 : f32
    %6 = vector.broadcast %cst : f32 to vector<8x128xf32>
    %cst_11 = arith.constant 0.000000e+00 : f32
    %7 = vector.broadcast %cst_11 : f32 to vector<8x128xf32>
    %c0_12 = arith.constant 0 : index
    %c0_13 = arith.constant 0 : index
    %c0_14 = arith.constant 0 : index
    %8 = vector.load %arg1[%c0_12, %c0_13, %c0_14] : memref<8x8x8xf32, #tpu.memory_space<vmem>>, vector<8x8x8xf32>
    %9 = vector.shape_cast %8 : vector<8x8x8xf32> to vector<64x8xf32>
    %cst_15 = arith.constant dense<0.000000e+00> : vector<64x512xf32>
    %10 = tpu.matmul %9, %0, %cst_15 {dimension_numbers = #tpu.dot_dimension_numbers<[1], [0], [0], [1], [0, 0, 1, 1], [], []>} : vector<64x8xf32>, vector<8x512xf32>, vector<64x512xf32> -> vector<64x512xf32>
    %11 = vector.broadcast %2 : vector<1x512xf32> to vector<64x512xf32>
    %12 = arith.addf %10, %11 : vector<64x512xf32>
    %13 = vector.shape_cast %12 : vector<64x512xf32> to vector<8x8x512xf32>
    %c0_16 = arith.constant 0 : index
    %c0_17 = arith.constant 0 : index
    %c0_18 = arith.constant 0 : index
    %14 = vector.load %arg9[%c0_16, %c0_17, %c0_18] : memref<8x8x512xf32, #tpu.memory_space<vmem>>, vector<8x8x512xf32>
    tpu.vector_store %arg9[%c0_16, %c0_17, %c0_18], %13 {strides = array<i32>} : memref<8x8x512xf32, #tpu.memory_space<vmem>>, vector<8x8x512xf32>,
    %c0_i32 = arith.constant 0 : i32
    %15 = arith.index_cast %c0_i32 : i32 to index
    %c0_19 = arith.constant 0 : index
    %c0_20 = arith.constant 0 : index
    %16 = vector.load %arg9[%15, %c0_19, %c0_20] : memref<8x8x512xf32, #tpu.memory_space<vmem>>, vector<1x8x512xf32>
    %17 = vector.shape_cast %16 : vector<1x8x512xf32> to vector<8x512xf32>
    %cst_21 = arith.constant dense<0.000000e+00> : vector<8x512xf32>
    %18 = tpu.matmul %6, %1, %cst_21 {dimension_numbers = #tpu.dot_dimension_numbers<[1], [0], [0], [1], [0, 0, 1, 1], [], []>} : vector<8x128xf32>, vector<128x512xf32>, vector<8x512xf32> -> vector<8x512xf32>
    %19 = arith.addf %17, %18 : vector<8x512xf32>
    %20 = vector.extract_strided_slice %19 {offsets = [0, 0], sizes = [8, 256], strides = [1, 1]} : vector<8x512xf32> to vector<8x256xf32>
    %21 = arith.negf %20 : vector<8x256xf32>
    %22 = math.exp %21 : vector<8x256xf32>
    %cst_22 = arith.constant 1.000000e+00 : f32
    %23 = vector.broadcast %cst_22 : f32 to vector<8x256xf32>
    %24 = arith.addf %23, %22 : vector<8x256xf32>
    %25 = arith.divf %23, %24 : vector<8x256xf32>
    %26 = vector.extract_strided_slice %19 {offsets = [0, 256], sizes = [8, 128], strides = [1, 1]} : vector<8x512xf32> to vector<8x128xf32>
    %27 = math.tanh %26 : vector<8x128xf32>
    %28 = vector.extract_strided_slice %19 {offsets = [0, 384], sizes = [8, 128], strides = [1, 1]} : vector<8x512xf32> to vector<8x128xf32>
    %29 = arith.negf %28 : vector<8x128xf32>
    %30 = math.exp %29 : vector<8x128xf32>
    %cst_23 = arith.constant 1.000000e+00 : f32
    %31 = vector.broadcast %cst_23 : f32 to vector<8x128xf32>
    %32 = arith.addf %31, %30 : vector<8x128xf32>
    %33 = arith.divf %31, %32 : vector<8x128xf32>
    %34 = vector.extract_strided_slice %25 {offsets = [0, 0], sizes = [8, 128], strides = [1, 1]} : vector<8x256xf32> to vector<8x128xf32>
    %35 = vector.extract_strided_slice %25 {offsets = [0, 128], sizes = [8, 128], strides = [1, 1]} : vector<8x256xf32> to vector<8x128xf32>
    %36 = arith.mulf %35, %7 : vector<8x128xf32>
    %37 = arith.mulf %34, %27 : vector<8x128xf32>
    %38 = arith.addf %36, %37 : vector<8x128xf32>
    %39 = math.tanh %38 : vector<8x128xf32>
    %40 = arith.mulf %33, %39 : vector<8x128xf32>
    %c1_i32 = arith.constant 1 : i32
    %41 = arith.index_cast %c1_i32 : i32 to index
    %c0_24 = arith.constant 0 : index
    %c0_25 = arith.constant 0 : index
    %42 = vector.load %arg9[%41, %c0_24, %c0_25] : memref<8x8x512xf32, #tpu.memory_space<vmem>>, vector<1x8x512xf32>
    %43 = vector.shape_cast %42 : vector<1x8x512xf32> to vector<8x512xf32>
    %cst_26 = arith.constant dense<0.000000e+00> : vector<8x512xf32>
    %44 = tpu.matmul %40, %1, %cst_26 {dimension_numbers = #tpu.dot_dimension_numbers<[1], [0], [0], [1], [0, 0, 1, 1], [], []>} : vector<8x128xf32>, vector<128x512xf32>, vector<8x512xf32> -> vector<8x512xf32>
    %45 = arith.addf %43, %44 : vector<8x512xf32>
    %46 = vector.extract_strided_slice %45 {offsets = [0, 0], sizes = [8, 256], strides = [1, 1]} : vector<8x512xf32> to vector<8x256xf32>
    %47 = arith.negf %46 : vector<8x256xf32>
    %48 = math.exp %47 : vector<8x256xf32>
    %cst_27 = arith.constant 1.000000e+00 : f32
    %49 = vector.broadcast %cst_27 : f32 to vector<8x256xf32>
    %50 = arith.addf %49, %48 : vector<8x256xf32>
    %51 = arith.divf %49, %50 : vector<8x256xf32>
    %52 = vector.extract_strided_slice %45 {offsets = [0, 256], sizes = [8, 128], strides = [1, 1]} : vector<8x512xf32> to vector<8x128xf32>
    %53 = math.tanh %52 : vector<8x128xf32>
    %54 = vector.extract_strided_slice %45 {offsets = [0, 384], sizes = [8, 128], strides = [1, 1]} : vector<8x512xf32> to vector<8x128xf32>
    %55 = arith.negf %54 : vector<8x128xf32>
    %56 = math.exp %55 : vector<8x128xf32>
    %cst_28 = arith.constant 1.000000e+00 : f32
    %57 = vector.broadcast %cst_28 : f32 to vector<8x128xf32>
    %58 = arith.addf %57, %56 : vector<8x128xf32>
    %59 = arith.divf %57, %58 : vector<8x128xf32>
    %60 = vector.extract_strided_slice %51 {offsets = [0, 0], sizes = [8, 128], strides = [1, 1]} : vector<8x256xf32> to vector<8x128xf32>
    %61 = vector.extract_strided_slice %51 {offsets = [0, 128], sizes = [8, 128], strides = [1, 1]} : vector<8x256xf32> to vector<8x128xf32>
    %62 = arith.mulf %61, %38 : vector<8x128xf32>
    %63 = arith.mulf %60, %53 : vector<8x128xf32>
    %64 = arith.addf %62, %63 : vector<8x128xf32>
    %65 = math.tanh %64 : vector<8x128xf32>
    %66 = arith.mulf %59, %65 : vector<8x128xf32>
    %c2_i32 = arith.constant 2 : i32
    %67 = arith.index_cast %c2_i32 : i32 to index
    %c0_29 = arith.constant 0 : index
    %c0_30 = arith.constant 0 : index
    %68 = vector.load %arg9[%67, %c0_29, %c0_30] : memref<8x8x512xf32, #tpu.memory_space<vmem>>, vector<1x8x512xf32>
    %69 = vector.shape_cast %68 : vector<1x8x512xf32> to vector<8x512xf32>
    %cst_31 = arith.constant dense<0.000000e+00> : vector<8x512xf32>
    %70 = tpu.matmul %66, %1, %cst_31 {dimension_numbers = #tpu.dot_dimension_numbers<[1], [0], [0], [1], [0, 0, 1, 1], [], []>} : vector<8x128xf32>, vector<128x512xf32>, vector<8x512xf32> -> vector<8x512xf32>
    %71 = arith.addf %69, %70 : vector<8x512xf32>
    %72 = vector.extract_strided_slice %71 {offsets = [0, 0], sizes = [8, 256], strides = [1, 1]} : vector<8x512xf32> to vector<8x256xf32>
    %73 = arith.negf %72 : vector<8x256xf32>
    %74 = math.exp %73 : vector<8x256xf32>
    %cst_32 = arith.constant 1.000000e+00 : f32
    %75 = vector.broadcast %cst_32 : f32 to vector<8x256xf32>
    %76 = arith.addf %75, %74 : vector<8x256xf32>
    %77 = arith.divf %75, %76 : vector<8x256xf32>
    %78 = vector.extract_strided_slice %71 {offsets = [0, 256], sizes = [8, 128], strides = [1, 1]} : vector<8x512xf32> to vector<8x128xf32>
    %79 = math.tanh %78 : vector<8x128xf32>
    %80 = vector.extract_strided_slice %71 {offsets = [0, 384], sizes = [8, 128], strides = [1, 1]} : vector<8x512xf32> to vector<8x128xf32>
    %81 = arith.negf %80 : vector<8x128xf32>
    %82 = math.exp %81 : vector<8x128xf32>
    %cst_33 = arith.constant 1.000000e+00 : f32
    %83 = vector.broadcast %cst_33 : f32 to vector<8x128xf32>
    %84 = arith.addf %83, %82 : vector<8x128xf32>
    %85 = arith.divf %83, %84 : vector<8x128xf32>
    %86 = vector.extract_strided_slice %77 {offsets = [0, 0], sizes = [8, 128], strides = [1, 1]} : vector<8x256xf32> to vector<8x128xf32>
    %87 = vector.extract_strided_slice %77 {offsets = [0, 128], sizes = [8, 128], strides = [1, 1]} : vector<8x256xf32> to vector<8x128xf32>
    %88 = arith.mulf %87, %64 : vector<8x128xf32>
    %89 = arith.mulf %86, %79 : vector<8x128xf32>
    %90 = arith.addf %88, %89 : vector<8x128xf32>
    %91 = math.tanh %90 : vector<8x128xf32>
    %92 = arith.mulf %85, %91 : vector<8x128xf32>
    %c3_i32 = arith.constant 3 : i32
    %93 = arith.index_cast %c3_i32 : i32 to index
    %c0_34 = arith.constant 0 : index
    %c0_35 = arith.constant 0 : index
    %94 = vector.load %arg9[%93, %c0_34, %c0_35] : memref<8x8x512xf32, #tpu.memory_space<vmem>>, vector<1x8x512xf32>
    %95 = vector.shape_cast %94 : vector<1x8x512xf32> to vector<8x512xf32>
    %cst_36 = arith.constant dense<0.000000e+00> : vector<8x512xf32>
    %96 = tpu.matmul %92, %1, %cst_36 {dimension_numbers = #tpu.dot_dimension_numbers<[1], [0], [0], [1], [0, 0, 1, 1], [], []>} : vector<8x128xf32>, vector<128x512xf32>, vector<8x512xf32> -> vector<8x512xf32>
    %97 = arith.addf %95, %96 : vector<8x512xf32>
    %98 = vector.extract_strided_slice %97 {offsets = [0, 0], sizes = [8, 256], strides = [1, 1]} : vector<8x512xf32> to vector<8x256xf32>
    %99 = arith.negf %98 : vector<8x256xf32>
    %100 = math.exp %99 : vector<8x256xf32>
    %cst_37 = arith.constant 1.000000e+00 : f32
    %101 = vector.broadcast %cst_37 : f32 to vector<8x256xf32>
    %102 = arith.addf %101, %100 : vector<8x256xf32>
    %103 = arith.divf %101, %102 : vector<8x256xf32>
    %104 = vector.extract_strided_slice %97 {offsets = [0, 256], sizes = [8, 128], strides = [1, 1]} : vector<8x512xf32> to vector<8x128xf32>
    %105 = math.tanh %104 : vector<8x128xf32>
    %106 = vector.extract_strided_slice %97 {offsets = [0, 384], sizes = [8, 128], strides = [1, 1]} : vector<8x512xf32> to vector<8x128xf32>
    %107 = arith.negf %106 : vector<8x128xf32>
    %108 = math.exp %107 : vector<8x128xf32>
    %cst_38 = arith.constant 1.000000e+00 : f32
    %109 = vector.broadcast %cst_38 : f32 to vector<8x128xf32>
    %110 = arith.addf %109, %108 : vector<8x128xf32>
    %111 = arith.divf %109, %110 : vector<8x128xf32>
    %112 = vector.extract_strided_slice %103 {offsets = [0, 0], sizes = [8, 128], strides = [1, 1]} : vector<8x256xf32> to vector<8x128xf32>
    %113 = vector.extract_strided_slice %103 {offsets = [0, 128], sizes = [8, 128], strides = [1, 1]} : vector<8x256xf32> to vector<8x128xf32>
    %114 = arith.mulf %113, %90 : vector<8x128xf32>
    %115 = arith.mulf %112, %105 : vector<8x128xf32>
    %116 = arith.addf %114, %115 : vector<8x128xf32>
    %117 = math.tanh %116 : vector<8x128xf32>
    %118 = arith.mulf %111, %117 : vector<8x128xf32>
    %c4_i32 = arith.constant 4 : i32
    %119 = arith.index_cast %c4_i32 : i32 to index
    %c0_39 = arith.constant 0 : index
    %c0_40 = arith.constant 0 : index
    %120 = vector.load %arg9[%119, %c0_39, %c0_40] : memref<8x8x512xf32, #tpu.memory_space<vmem>>, vector<1x8x512xf32>
    %121 = vector.shape_cast %120 : vector<1x8x512xf32> to vector<8x512xf32>
    %cst_41 = arith.constant dense<0.000000e+00> : vector<8x512xf32>
    %122 = tpu.matmul %118, %1, %cst_41 {dimension_numbers = #tpu.dot_dimension_numbers<[1], [0], [0], [1], [0, 0, 1, 1], [], []>} : vector<8x128xf32>, vector<128x512xf32>, vector<8x512xf32> -> vector<8x512xf32>
    %123 = arith.addf %121, %122 : vector<8x512xf32>
    %124 = vector.extract_strided_slice %123 {offsets = [0, 0], sizes = [8, 256], strides = [1, 1]} : vector<8x512xf32> to vector<8x256xf32>
    %125 = arith.negf %124 : vector<8x256xf32>
    %126 = math.exp %125 : vector<8x256xf32>
    %cst_42 = arith.constant 1.000000e+00 : f32
    %127 = vector.broadcast %cst_42 : f32 to vector<8x256xf32>
    %128 = arith.addf %127, %126 : vector<8x256xf32>
    %129 = arith.divf %127, %128 : vector<8x256xf32>
    %130 = vector.extract_strided_slice %123 {offsets = [0, 256], sizes = [8, 128], strides = [1, 1]} : vector<8x512xf32> to vector<8x128xf32>
    %131 = math.tanh %130 : vector<8x128xf32>
    %132 = vector.extract_strided_slice %123 {offsets = [0, 384], sizes = [8, 128], strides = [1, 1]} : vector<8x512xf32> to vector<8x128xf32>
    %133 = arith.negf %132 : vector<8x128xf32>
    %134 = math.exp %133 : vector<8x128xf32>
    %cst_43 = arith.constant 1.000000e+00 : f32
    %135 = vector.broadcast %cst_43 : f32 to vector<8x128xf32>
    %136 = arith.addf %135, %134 : vector<8x128xf32>
    %137 = arith.divf %135, %136 : vector<8x128xf32>
    %138 = vector.extract_strided_slice %129 {offsets = [0, 0], sizes = [8, 128], strides = [1, 1]} : vector<8x256xf32> to vector<8x128xf32>
    %139 = vector.extract_strided_slice %129 {offsets = [0, 128], sizes = [8, 128], strides = [1, 1]} : vector<8x256xf32> to vector<8x128xf32>
    %140 = arith.mulf %139, %116 : vector<8x128xf32>
    %141 = arith.mulf %138, %131 : vector<8x128xf32>
    %142 = arith.addf %140, %141 : vector<8x128xf32>
    %143 = math.tanh %142 : vector<8x128xf32>
    %144 = arith.mulf %137, %143 : vector<8x128xf32>
    %c5_i32 = arith.constant 5 : i32
    %145 = arith.index_cast %c5_i32 : i32 to index
    %c0_44 = arith.constant 0 : index
    %c0_45 = arith.constant 0 : index
    %146 = vector.load %arg9[%145, %c0_44, %c0_45] : memref<8x8x512xf32, #tpu.memory_space<vmem>>, vector<1x8x512xf32>
    %147 = vector.shape_cast %146 : vector<1x8x512xf32> to vector<8x512xf32>
    %cst_46 = arith.constant dense<0.000000e+00> : vector<8x512xf32>
    %148 = tpu.matmul %144, %1, %cst_46 {dimension_numbers = #tpu.dot_dimension_numbers<[1], [0], [0], [1], [0, 0, 1, 1], [], []>} : vector<8x128xf32>, vector<128x512xf32>, vector<8x512xf32> -> vector<8x512xf32>
    %149 = arith.addf %147, %148 : vector<8x512xf32>
    %150 = vector.extract_strided_slice %149 {offsets = [0, 0], sizes = [8, 256], strides = [1, 1]} : vector<8x512xf32> to vector<8x256xf32>
    %151 = arith.negf %150 : vector<8x256xf32>
    %152 = math.exp %151 : vector<8x256xf32>
    %cst_47 = arith.constant 1.000000e+00 : f32
    %153 = vector.broadcast %cst_47 : f32 to vector<8x256xf32>
    %154 = arith.addf %153, %152 : vector<8x256xf32>
    %155 = arith.divf %153, %154 : vector<8x256xf32>
    %156 = vector.extract_strided_slice %149 {offsets = [0, 256], sizes = [8, 128], strides = [1, 1]} : vector<8x512xf32> to vector<8x128xf32>
    %157 = math.tanh %156 : vector<8x128xf32>
    %158 = vector.extract_strided_slice %149 {offsets = [0, 384], sizes = [8, 128], strides = [1, 1]} : vector<8x512xf32> to vector<8x128xf32>
    %159 = arith.negf %158 : vector<8x128xf32>
    %160 = math.exp %159 : vector<8x128xf32>
    %cst_48 = arith.constant 1.000000e+00 : f32
    %161 = vector.broadcast %cst_48 : f32 to vector<8x128xf32>
    %162 = arith.addf %161, %160 : vector<8x128xf32>
    %163 = arith.divf %161, %162 : vector<8x128xf32>
    %164 = vector.extract_strided_slice %155 {offsets = [0, 0], sizes = [8, 128], strides = [1, 1]} : vector<8x256xf32> to vector<8x128xf32>
    %165 = vector.extract_strided_slice %155 {offsets = [0, 128], sizes = [8, 128], strides = [1, 1]} : vector<8x256xf32> to vector<8x128xf32>
    %166 = arith.mulf %165, %142 : vector<8x128xf32>
    %167 = arith.mulf %164, %157 : vector<8x128xf32>
    %168 = arith.addf %166, %167 : vector<8x128xf32>
    %169 = math.tanh %168 : vector<8x128xf32>
    %170 = arith.mulf %163, %169 : vector<8x128xf32>
    %c6_i32 = arith.constant 6 : i32
    %171 = arith.index_cast %c6_i32 : i32 to index
    %c0_49 = arith.constant 0 : index
    %c0_50 = arith.constant 0 : index
    %172 = vector.load %arg9[%171, %c0_49, %c0_50] : memref<8x8x512xf32, #tpu.memory_space<vmem>>, vector<1x8x512xf32>
    %173 = vector.shape_cast %172 : vector<1x8x512xf32> to vector<8x512xf32>
    %cst_51 = arith.constant dense<0.000000e+00> : vector<8x512xf32>
    %174 = tpu.matmul %170, %1, %cst_51 {dimension_numbers = #tpu.dot_dimension_numbers<[1], [0], [0], [1], [0, 0, 1, 1], [], []>} : vector<8x128xf32>, vector<128x512xf32>, vector<8x512xf32> -> vector<8x512xf32>
    %175 = arith.addf %173, %174 : vector<8x512xf32>
    %176 = vector.extract_strided_slice %175 {offsets = [0, 0], sizes = [8, 256], strides = [1, 1]} : vector<8x512xf32> to vector<8x256xf32>
    %177 = arith.negf %176 : vector<8x256xf32>
    %178 = math.exp %177 : vector<8x256xf32>
    %cst_52 = arith.constant 1.000000e+00 : f32
    %179 = vector.broadcast %cst_52 : f32 to vector<8x256xf32>
    %180 = arith.addf %179, %178 : vector<8x256xf32>
    %181 = arith.divf %179, %180 : vector<8x256xf32>
    %182 = vector.extract_strided_slice %175 {offsets = [0, 256], sizes = [8, 128], strides = [1, 1]} : vector<8x512xf32> to vector<8x128xf32>
    %183 = math.tanh %182 : vector<8x128xf32>
    %184 = vector.extract_strided_slice %175 {offsets = [0, 384], sizes = [8, 128], strides = [1, 1]} : vector<8x512xf32> to vector<8x128xf32>
    %185 = arith.negf %184 : vector<8x128xf32>
    %186 = math.exp %185 : vector<8x128xf32>
    %cst_53 = arith.constant 1.000000e+00 : f32
    %187 = vector.broadcast %cst_53 : f32 to vector<8x128xf32>
    %188 = arith.addf %187, %186 : vector<8x128xf32>
    %189 = arith.divf %187, %188 : vector<8x128xf32>
    %190 = vector.extract_strided_slice %181 {offsets = [0, 0], sizes = [8, 128], strides = [1, 1]} : vector<8x256xf32> to vector<8x128xf32>
    %191 = vector.extract_strided_slice %181 {offsets = [0, 128], sizes = [8, 128], strides = [1, 1]} : vector<8x256xf32> to vector<8x128xf32>
    %192 = arith.mulf %191, %168 : vector<8x128xf32>
    %193 = arith.mulf %190, %183 : vector<8x128xf32>
    %194 = arith.addf %192, %193 : vector<8x128xf32>
    %195 = math.tanh %194 : vector<8x128xf32>
    %196 = arith.mulf %189, %195 : vector<8x128xf32>
    %c7_i32 = arith.constant 7 : i32
    %197 = arith.index_cast %c7_i32 : i32 to index
    %c0_54 = arith.constant 0 : index
    %c0_55 = arith.constant 0 : index
    %198 = vector.load %arg9[%197, %c0_54, %c0_55] : memref<8x8x512xf32, #tpu.memory_space<vmem>>, vector<1x8x512xf32>
    %199 = vector.shape_cast %198 : vector<1x8x512xf32> to vector<8x512xf32>
    %cst_56 = arith.constant dense<0.000000e+00> : vector<8x512xf32>
    %200 = tpu.matmul %196, %1, %cst_56 {dimension_numbers = #tpu.dot_dimension_numbers<[1], [0], [0], [1], [0, 0, 1, 1], [], []>} : vector<8x128xf32>, vector<128x512xf32>, vector<8x512xf32> -> vector<8x512xf32>
    %201 = arith.addf %199, %200 : vector<8x512xf32>
    %202 = vector.extract_strided_slice %201 {offsets = [0, 0], sizes = [8, 256], strides = [1, 1]} : vector<8x512xf32> to vector<8x256xf32>
    %203 = arith.negf %202 : vector<8x256xf32>
    %204 = math.exp %203 : vector<8x256xf32>
    %cst_57 = arith.constant 1.000000e+00 : f32
    %205 = vector.broadcast %cst_57 : f32 to vector<8x256xf32>
    %206 = arith.addf %205, %204 : vector<8x256xf32>
    %207 = arith.divf %205, %206 : vector<8x256xf32>
    %208 = vector.extract_strided_slice %201 {offsets = [0, 256], sizes = [8, 128], strides = [1, 1]} : vector<8x512xf32> to vector<8x128xf32>
    %209 = math.tanh %208 : vector<8x128xf32>
    %210 = vector.extract_strided_slice %201 {offsets = [0, 384], sizes = [8, 128], strides = [1, 1]} : vector<8x512xf32> to vector<8x128xf32>
    %211 = arith.negf %210 : vector<8x128xf32>
    %212 = math.exp %211 : vector<8x128xf32>
    %cst_58 = arith.constant 1.000000e+00 : f32
    %213 = vector.broadcast %cst_58 : f32 to vector<8x128xf32>
    %214 = arith.addf %213, %212 : vector<8x128xf32>
    %215 = arith.divf %213, %214 : vector<8x128xf32>
    %216 = vector.extract_strided_slice %207 {offsets = [0, 0], sizes = [8, 128], strides = [1, 1]} : vector<8x256xf32> to vector<8x128xf32>
    %217 = vector.extract_strided_slice %207 {offsets = [0, 128], sizes = [8, 128], strides = [1, 1]} : vector<8x256xf32> to vector<8x128xf32>
    %218 = arith.mulf %217, %194 : vector<8x128xf32>
    %219 = arith.mulf %216, %209 : vector<8x128xf32>
    %220 = arith.addf %218, %219 : vector<8x128xf32>
    %221 = math.tanh %220 : vector<8x128xf32>
    %222 = arith.mulf %215, %221 : vector<8x128xf32>
    %c8_i32 = arith.constant 8 : i32
    %cst_59 = arith.constant dense<0.000000e+00> : vector<8x512xf32>
    %223 = tpu.matmul %222, %3, %cst_59 {dimension_numbers = #tpu.dot_dimension_numbers<[1], [0], [0], [1], [0, 0, 1, 1], [], []>} : vector<8x128xf32>, vector<128x512xf32>, vector<8x512xf32> -> vector<8x512xf32>
    %224 = vector.broadcast %5 : vector<1x512xf32> to vector<8x512xf32>
    %225 = arith.addf %223, %224 : vector<8x512xf32>
    %cst_60 = arith.constant 0.000000e+00 : f32
    %226 = vector.broadcast %cst_60 : f32 to vector<8x128xf32>
    %cst_61 = arith.constant 0.000000e+00 : f32
    %227 = vector.broadcast %cst_61 : f32 to vector<8x128xf32>
    %c0_i32_62 = arith.constant 0 : i32
    %cst_63 = arith.constant dense<0.000000e+00> : vector<8x512xf32>
    %228 = tpu.matmul %226, %4, %cst_63 {dimension_numbers = #tpu.dot_dimension_numbers<[1], [0], [0], [1], [0, 0, 1, 1], [], []>} : vector<8x128xf32>, vector<128x512xf32>, vector<8x512xf32> -> vector<8x512xf32>
    %229 = arith.addf %225, %228 : vector<8x512xf32>
    %230 = vector.extract_strided_slice %229 {offsets = [0, 0], sizes = [8, 256], strides = [1, 1]} : vector<8x512xf32> to vector<8x256xf32>
    %231 = arith.negf %230 : vector<8x256xf32>
    %232 = math.exp %231 : vector<8x256xf32>
    %cst_64 = arith.constant 1.000000e+00 : f32
    %233 = vector.broadcast %cst_64 : f32 to vector<8x256xf32>
    %234 = arith.addf %233, %232 : vector<8x256xf32>
    %235 = arith.divf %233, %234 : vector<8x256xf32>
    %236 = vector.extract_strided_slice %229 {offsets = [0, 256], sizes = [8, 128], strides = [1, 1]} : vector<8x512xf32> to vector<8x128xf32>
    %237 = math.tanh %236 : vector<8x128xf32>
    %238 = vector.extract_strided_slice %229 {offsets = [0, 384], sizes = [8, 128], strides = [1, 1]} : vector<8x512xf32> to vector<8x128xf32>
    %239 = arith.negf %238 : vector<8x128xf32>
    %240 = math.exp %239 : vector<8x128xf32>
    %cst_65 = arith.constant 1.000000e+00 : f32
    %241 = vector.broadcast %cst_65 : f32 to vector<8x128xf32>
    %242 = arith.addf %241, %240 : vector<8x128xf32>
    %243 = arith.divf %241, %242 : vector<8x128xf32>
    %244 = vector.extract_strided_slice %235 {offsets = [0, 0], sizes = [8, 128], strides = [1, 1]} : vector<8x256xf32> to vector<8x128xf32>
    %245 = vector.extract_strided_slice %235 {offsets = [0, 128], sizes = [8, 128], strides = [1, 1]} : vector<8x256xf32> to vector<8x128xf32>
    %246 = arith.mulf %245, %227 : vector<8x128xf32>
    %247 = arith.mulf %244, %237 : vector<8x128xf32>
    %248 = arith.addf %246, %247 : vector<8x128xf32>
    %249 = math.tanh %248 : vector<8x128xf32>
    %250 = arith.mulf %243, %249 : vector<8x128xf32>
    %251 = arith.index_cast %c0_i32_62 : i32 to index
    %c0_66 = arith.constant 0 : index
    %c0_67 = arith.constant 0 : index
    %252 = vector.load %arg8[%251, %c0_66, %c0_67] : memref<8x8x128xf32, #tpu.memory_space<vmem>>, vector<1x8x128xf32>
    %253 = vector.shape_cast %252 : vector<1x8x128xf32> to vector<8x128xf32>
    %254 = vector.shape_cast %250 : vector<8x128xf32> to vector<1x8x128xf32>
    tpu.vector_store %arg8[%251, %c0_66, %c0_67], %254 {strides = array<i32>} : memref<8x8x128xf32, #tpu.memory_space<vmem>>, vector<1x8x128xf32>,
    %c1_i32_68 = arith.constant 1 : i32
    %cst_69 = arith.constant dense<0.000000e+00> : vector<8x512xf32>
    %255 = tpu.matmul %250, %4, %cst_69 {dimension_numbers = #tpu.dot_dimension_numbers<[1], [0], [0], [1], [0, 0, 1, 1], [], []>} : vector<8x128xf32>, vector<128x512xf32>, vector<8x512xf32> -> vector<8x512xf32>
    %256 = arith.addf %225, %255 : vector<8x512xf32>
    %257 = vector.extract_strided_slice %256 {offsets = [0, 0], sizes = [8, 256], strides = [1, 1]} : vector<8x512xf32> to vector<8x256xf32>
    %258 = arith.negf %257 : vector<8x256xf32>
    %259 = math.exp %258 : vector<8x256xf32>
    %cst_70 = arith.constant 1.000000e+00 : f32
    %260 = vector.broadcast %cst_70 : f32 to vector<8x256xf32>
    %261 = arith.addf %260, %259 : vector<8x256xf32>
    %262 = arith.divf %260, %261 : vector<8x256xf32>
    %263 = vector.extract_strided_slice %256 {offsets = [0, 256], sizes = [8, 128], strides = [1, 1]} : vector<8x512xf32> to vector<8x128xf32>
    %264 = math.tanh %263 : vector<8x128xf32>
    %265 = vector.extract_strided_slice %256 {offsets = [0, 384], sizes = [8, 128], strides = [1, 1]} : vector<8x512xf32> to vector<8x128xf32>
    %266 = arith.negf %265 : vector<8x128xf32>
    %267 = math.exp %266 : vector<8x128xf32>
    %cst_71 = arith.constant 1.000000e+00 : f32
    %268 = vector.broadcast %cst_71 : f32 to vector<8x128xf32>
    %269 = arith.addf %268, %267 : vector<8x128xf32>
    %270 = arith.divf %268, %269 : vector<8x128xf32>
    %271 = vector.extract_strided_slice %262 {offsets = [0, 0], sizes = [8, 128], strides = [1, 1]} : vector<8x256xf32> to vector<8x128xf32>
    %272 = vector.extract_strided_slice %262 {offsets = [0, 128], sizes = [8, 128], strides = [1, 1]} : vector<8x256xf32> to vector<8x128xf32>
    %273 = arith.mulf %272, %248 : vector<8x128xf32>
    %274 = arith.mulf %271, %264 : vector<8x128xf32>
    %275 = arith.addf %273, %274 : vector<8x128xf32>
    %276 = math.tanh %275 : vector<8x128xf32>
    %277 = arith.mulf %270, %276 : vector<8x128xf32>
    %278 = arith.index_cast %c1_i32_68 : i32 to index
    %c0_72 = arith.constant 0 : index
    %c0_73 = arith.constant 0 : index
    %279 = vector.load %arg8[%278, %c0_72, %c0_73] : memref<8x8x128xf32, #tpu.memory_space<vmem>>, vector<1x8x128xf32>
    %280 = vector.shape_cast %279 : vector<1x8x128xf32> to vector<8x128xf32>
    %281 = vector.shape_cast %277 : vector<8x128xf32> to vector<1x8x128xf32>
    tpu.vector_store %arg8[%278, %c0_72, %c0_73], %281 {strides = array<i32>} : memref<8x8x128xf32, #tpu.memory_space<vmem>>, vector<1x8x128xf32>,
    %c2_i32_74 = arith.constant 2 : i32
    %cst_75 = arith.constant dense<0.000000e+00> : vector<8x512xf32>
    %282 = tpu.matmul %277, %4, %cst_75 {dimension_numbers = #tpu.dot_dimension_numbers<[1], [0], [0], [1], [0, 0, 1, 1], [], []>} : vector<8x128xf32>, vector<128x512xf32>, vector<8x512xf32> -> vector<8x512xf32>
    %283 = arith.addf %225, %282 : vector<8x512xf32>
    %284 = vector.extract_strided_slice %283 {offsets = [0, 0], sizes = [8, 256], strides = [1, 1]} : vector<8x512xf32> to vector<8x256xf32>
    %285 = arith.negf %284 : vector<8x256xf32>
    %286 = math.exp %285 : vector<8x256xf32>
    %cst_76 = arith.constant 1.000000e+00 : f32
    %287 = vector.broadcast %cst_76 : f32 to vector<8x256xf32>
    %288 = arith.addf %287, %286 : vector<8x256xf32>
    %289 = arith.divf %287, %288 : vector<8x256xf32>
    %290 = vector.extract_strided_slice %283 {offsets = [0, 256], sizes = [8, 128], strides = [1, 1]} : vector<8x512xf32> to vector<8x128xf32>
    %291 = math.tanh %290 : vector<8x128xf32>
    %292 = vector.extract_strided_slice %283 {offsets = [0, 384], sizes = [8, 128], strides = [1, 1]} : vector<8x512xf32> to vector<8x128xf32>
    %293 = arith.negf %292 : vector<8x128xf32>
    %294 = math.exp %293 : vector<8x128xf32>
    %cst_77 = arith.constant 1.000000e+00 : f32
    %295 = vector.broadcast %cst_77 : f32 to vector<8x128xf32>
    %296 = arith.addf %295, %294 : vector<8x128xf32>
    %297 = arith.divf %295, %296 : vector<8x128xf32>
    %298 = vector.extract_strided_slice %289 {offsets = [0, 0], sizes = [8, 128], strides = [1, 1]} : vector<8x256xf32> to vector<8x128xf32>
    %299 = vector.extract_strided_slice %289 {offsets = [0, 128], sizes = [8, 128], strides = [1, 1]} : vector<8x256xf32> to vector<8x128xf32>
    %300 = arith.mulf %299, %275 : vector<8x128xf32>
    %301 = arith.mulf %298, %291 : vector<8x128xf32>
    %302 = arith.addf %300, %301 : vector<8x128xf32>
    %303 = math.tanh %302 : vector<8x128xf32>
    %304 = arith.mulf %297, %303 : vector<8x128xf32>
    %305 = arith.index_cast %c2_i32_74 : i32 to index
    %c0_78 = arith.constant 0 : index
    %c0_79 = arith.constant 0 : index
    %306 = vector.load %arg8[%305, %c0_78, %c0_79] : memref<8x8x128xf32, #tpu.memory_space<vmem>>, vector<1x8x128xf32>
    %307 = vector.shape_cast %306 : vector<1x8x128xf32> to vector<8x128xf32>
    %308 = vector.shape_cast %304 : vector<8x128xf32> to vector<1x8x128xf32>
    tpu.vector_store %arg8[%305, %c0_78, %c0_79], %308 {strides = array<i32>} : memref<8x8x128xf32, #tpu.memory_space<vmem>>, vector<1x8x128xf32>,
    %c3_i32_80 = arith.constant 3 : i32
    %cst_81 = arith.constant dense<0.000000e+00> : vector<8x512xf32>
    %309 = tpu.matmul %304, %4, %cst_81 {dimension_numbers = #tpu.dot_dimension_numbers<[1], [0], [0], [1], [0, 0, 1, 1], [], []>} : vector<8x128xf32>, vector<128x512xf32>, vector<8x512xf32> -> vector<8x512xf32>
    %310 = arith.addf %225, %309 : vector<8x512xf32>
    %311 = vector.extract_strided_slice %310 {offsets = [0, 0], sizes = [8, 256], strides = [1, 1]} : vector<8x512xf32> to vector<8x256xf32>
    %312 = arith.negf %311 : vector<8x256xf32>
    %313 = math.exp %312 : vector<8x256xf32>
    %cst_82 = arith.constant 1.000000e+00 : f32
    %314 = vector.broadcast %cst_82 : f32 to vector<8x256xf32>
    %315 = arith.addf %314, %313 : vector<8x256xf32>
    %316 = arith.divf %314, %315 : vector<8x256xf32>
    %317 = vector.extract_strided_slice %310 {offsets = [0, 256], sizes = [8, 128], strides = [1, 1]} : vector<8x512xf32> to vector<8x128xf32>
    %318 = math.tanh %317 : vector<8x128xf32>
    %319 = vector.extract_strided_slice %310 {offsets = [0, 384], sizes = [8, 128], strides = [1, 1]} : vector<8x512xf32> to vector<8x128xf32>
    %320 = arith.negf %319 : vector<8x128xf32>
    %321 = math.exp %320 : vector<8x128xf32>
    %cst_83 = arith.constant 1.000000e+00 : f32
    %322 = vector.broadcast %cst_83 : f32 to vector<8x128xf32>
    %323 = arith.addf %322, %321 : vector<8x128xf32>
    %324 = arith.divf %322, %323 : vector<8x128xf32>
    %325 = vector.extract_strided_slice %316 {offsets = [0, 0], sizes = [8, 128], strides = [1, 1]} : vector<8x256xf32> to vector<8x128xf32>
    %326 = vector.extract_strided_slice %316 {offsets = [0, 128], sizes = [8, 128], strides = [1, 1]} : vector<8x256xf32> to vector<8x128xf32>
    %327 = arith.mulf %326, %302 : vector<8x128xf32>
    %328 = arith.mulf %325, %318 : vector<8x128xf32>
    %329 = arith.addf %327, %328 : vector<8x128xf32>
    %330 = math.tanh %329 : vector<8x128xf32>
    %331 = arith.mulf %324, %330 : vector<8x128xf32>
    %332 = arith.index_cast %c3_i32_80 : i32 to index
    %c0_84 = arith.constant 0 : index
    %c0_85 = arith.constant 0 : index
    %333 = vector.load %arg8[%332, %c0_84, %c0_85] : memref<8x8x128xf32, #tpu.memory_space<vmem>>, vector<1x8x128xf32>
    %334 = vector.shape_cast %333 : vector<1x8x128xf32> to vector<8x128xf32>
    %335 = vector.shape_cast %331 : vector<8x128xf32> to vector<1x8x128xf32>
    tpu.vector_store %arg8[%332, %c0_84, %c0_85], %335 {strides = array<i32>} : memref<8x8x128xf32, #tpu.memory_space<vmem>>, vector<1x8x128xf32>,
    %c4_i32_86 = arith.constant 4 : i32
    %cst_87 = arith.constant dense<0.000000e+00> : vector<8x512xf32>
    %336 = tpu.matmul %331, %4, %cst_87 {dimension_numbers = #tpu.dot_dimension_numbers<[1], [0], [0], [1], [0, 0, 1, 1], [], []>} : vector<8x128xf32>, vector<128x512xf32>, vector<8x512xf32> -> vector<8x512xf32>
    %337 = arith.addf %225, %336 : vector<8x512xf32>
    %338 = vector.extract_strided_slice %337 {offsets = [0, 0], sizes = [8, 256], strides = [1, 1]} : vector<8x512xf32> to vector<8x256xf32>
    %339 = arith.negf %338 : vector<8x256xf32>
    %340 = math.exp %339 : vector<8x256xf32>
    %cst_88 = arith.constant 1.000000e+00 : f32
    %341 = vector.broadcast %cst_88 : f32 to vector<8x256xf32>
    %342 = arith.addf %341, %340 : vector<8x256xf32>
    %343 = arith.divf %341, %342 : vector<8x256xf32>
    %344 = vector.extract_strided_slice %337 {offsets = [0, 256], sizes = [8, 128], strides = [1, 1]} : vector<8x512xf32> to vector<8x128xf32>
    %345 = math.tanh %344 : vector<8x128xf32>
    %346 = vector.extract_strided_slice %337 {offsets = [0, 384], sizes = [8, 128], strides = [1, 1]} : vector<8x512xf32> to vector<8x128xf32>
    %347 = arith.negf %346 : vector<8x128xf32>
    %348 = math.exp %347 : vector<8x128xf32>
    %cst_89 = arith.constant 1.000000e+00 : f32
    %349 = vector.broadcast %cst_89 : f32 to vector<8x128xf32>
    %350 = arith.addf %349, %348 : vector<8x128xf32>
    %351 = arith.divf %349, %350 : vector<8x128xf32>
    %352 = vector.extract_strided_slice %343 {offsets = [0, 0], sizes = [8, 128], strides = [1, 1]} : vector<8x256xf32> to vector<8x128xf32>
    %353 = vector.extract_strided_slice %343 {offsets = [0, 128], sizes = [8, 128], strides = [1, 1]} : vector<8x256xf32> to vector<8x128xf32>
    %354 = arith.mulf %353, %329 : vector<8x128xf32>
    %355 = arith.mulf %352, %345 : vector<8x128xf32>
    %356 = arith.addf %354, %355 : vector<8x128xf32>
    %357 = math.tanh %356 : vector<8x128xf32>
    %358 = arith.mulf %351, %357 : vector<8x128xf32>
    %359 = arith.index_cast %c4_i32_86 : i32 to index
    %c0_90 = arith.constant 0 : index
    %c0_91 = arith.constant 0 : index
    %360 = vector.load %arg8[%359, %c0_90, %c0_91] : memref<8x8x128xf32, #tpu.memory_space<vmem>>, vector<1x8x128xf32>
    %361 = vector.shape_cast %360 : vector<1x8x128xf32> to vector<8x128xf32>
    %362 = vector.shape_cast %358 : vector<8x128xf32> to vector<1x8x128xf32>
    tpu.vector_store %arg8[%359, %c0_90, %c0_91], %362 {strides = array<i32>} : memref<8x8x128xf32, #tpu.memory_space<vmem>>, vector<1x8x128xf32>,
    %c5_i32_92 = arith.constant 5 : i32
    %cst_93 = arith.constant dense<0.000000e+00> : vector<8x512xf32>
    %363 = tpu.matmul %358, %4, %cst_93 {dimension_numbers = #tpu.dot_dimension_numbers<[1], [0], [0], [1], [0, 0, 1, 1], [], []>} : vector<8x128xf32>, vector<128x512xf32>, vector<8x512xf32> -> vector<8x512xf32>
    %364 = arith.addf %225, %363 : vector<8x512xf32>
    %365 = vector.extract_strided_slice %364 {offsets = [0, 0], sizes = [8, 256], strides = [1, 1]} : vector<8x512xf32> to vector<8x256xf32>
    %366 = arith.negf %365 : vector<8x256xf32>
    %367 = math.exp %366 : vector<8x256xf32>
    %cst_94 = arith.constant 1.000000e+00 : f32
    %368 = vector.broadcast %cst_94 : f32 to vector<8x256xf32>
    %369 = arith.addf %368, %367 : vector<8x256xf32>
    %370 = arith.divf %368, %369 : vector<8x256xf32>
    %371 = vector.extract_strided_slice %364 {offsets = [0, 256], sizes = [8, 128], strides = [1, 1]} : vector<8x512xf32> to vector<8x128xf32>
    %372 = math.tanh %371 : vector<8x128xf32>
    %373 = vector.extract_strided_slice %364 {offsets = [0, 384], sizes = [8, 128], strides = [1, 1]} : vector<8x512xf32> to vector<8x128xf32>
    %374 = arith.negf %373 : vector<8x128xf32>
    %375 = math.exp %374 : vector<8x128xf32>
    %cst_95 = arith.constant 1.000000e+00 : f32
    %376 = vector.broadcast %cst_95 : f32 to vector<8x128xf32>
    %377 = arith.addf %376, %375 : vector<8x128xf32>
    %378 = arith.divf %376, %377 : vector<8x128xf32>
    %379 = vector.extract_strided_slice %370 {offsets = [0, 0], sizes = [8, 128], strides = [1, 1]} : vector<8x256xf32> to vector<8x128xf32>
    %380 = vector.extract_strided_slice %370 {offsets = [0, 128], sizes = [8, 128], strides = [1, 1]} : vector<8x256xf32> to vector<8x128xf32>
    %381 = arith.mulf %380, %356 : vector<8x128xf32>
    %382 = arith.mulf %379, %372 : vector<8x128xf32>
    %383 = arith.addf %381, %382 : vector<8x128xf32>
    %384 = math.tanh %383 : vector<8x128xf32>
    %385 = arith.mulf %378, %384 : vector<8x128xf32>
    %386 = arith.index_cast %c5_i32_92 : i32 to index
    %c0_96 = arith.constant 0 : index
    %c0_97 = arith.constant 0 : index
    %387 = vector.load %arg8[%386, %c0_96, %c0_97] : memref<8x8x128xf32, #tpu.memory_space<vmem>>, vector<1x8x128xf32>
    %388 = vector.shape_cast %387 : vector<1x8x128xf32> to vector<8x128xf32>
    %389 = vector.shape_cast %385 : vector<8x128xf32> to vector<1x8x128xf32>
    tpu.vector_store %arg8[%386, %c0_96, %c0_97], %389 {strides = array<i32>} : memref<8x8x128xf32, #tpu.memory_space<vmem>>, vector<1x8x128xf32>,
    %c6_i32_98 = arith.constant 6 : i32
    %cst_99 = arith.constant dense<0.000000e+00> : vector<8x512xf32>
    %390 = tpu.matmul %385, %4, %cst_99 {dimension_numbers = #tpu.dot_dimension_numbers<[1], [0], [0], [1], [0, 0, 1, 1], [], []>} : vector<8x128xf32>, vector<128x512xf32>, vector<8x512xf32> -> vector<8x512xf32>
    %391 = arith.addf %225, %390 : vector<8x512xf32>
    %392 = vector.extract_strided_slice %391 {offsets = [0, 0], sizes = [8, 256], strides = [1, 1]} : vector<8x512xf32> to vector<8x256xf32>
    %393 = arith.negf %392 : vector<8x256xf32>
    %394 = math.exp %393 : vector<8x256xf32>
    %cst_100 = arith.constant 1.000000e+00 : f32
    %395 = vector.broadcast %cst_100 : f32 to vector<8x256xf32>
    %396 = arith.addf %395, %394 : vector<8x256xf32>
    %397 = arith.divf %395, %396 : vector<8x256xf32>
    %398 = vector.extract_strided_slice %391 {offsets = [0, 256], sizes = [8, 128], strides = [1, 1]} : vector<8x512xf32> to vector<8x128xf32>
    %399 = math.tanh %398 : vector<8x128xf32>
    %400 = vector.extract_strided_slice %391 {offsets = [0, 384], sizes = [8, 128], strides = [1, 1]} : vector<8x512xf32> to vector<8x128xf32>
    %401 = arith.negf %400 : vector<8x128xf32>
    %402 = math.exp %401 : vector<8x128xf32>
    %cst_101 = arith.constant 1.000000e+00 : f32
    %403 = vector.broadcast %cst_101 : f32 to vector<8x128xf32>
    %404 = arith.addf %403, %402 : vector<8x128xf32>
    %405 = arith.divf %403, %404 : vector<8x128xf32>
    %406 = vector.extract_strided_slice %397 {offsets = [0, 0], sizes = [8, 128], strides = [1, 1]} : vector<8x256xf32> to vector<8x128xf32>
    %407 = vector.extract_strided_slice %397 {offsets = [0, 128], sizes = [8, 128], strides = [1, 1]} : vector<8x256xf32> to vector<8x128xf32>
    %408 = arith.mulf %407, %383 : vector<8x128xf32>
    %409 = arith.mulf %406, %399 : vector<8x128xf32>
    %410 = arith.addf %408, %409 : vector<8x128xf32>
    %411 = math.tanh %410 : vector<8x128xf32>
    %412 = arith.mulf %405, %411 : vector<8x128xf32>
    %413 = arith.index_cast %c6_i32_98 : i32 to index
    %c0_102 = arith.constant 0 : index
    %c0_103 = arith.constant 0 : index
    %414 = vector.load %arg8[%413, %c0_102, %c0_103] : memref<8x8x128xf32, #tpu.memory_space<vmem>>, vector<1x8x128xf32>
    %415 = vector.shape_cast %414 : vector<1x8x128xf32> to vector<8x128xf32>
    %416 = vector.shape_cast %412 : vector<8x128xf32> to vector<1x8x128xf32>
    tpu.vector_store %arg8[%413, %c0_102, %c0_103], %416 {strides = array<i32>} : memref<8x8x128xf32, #tpu.memory_space<vmem>>, vector<1x8x128xf32>,
    %c7_i32_104 = arith.constant 7 : i32
    %cst_105 = arith.constant dense<0.000000e+00> : vector<8x512xf32>
    %417 = tpu.matmul %412, %4, %cst_105 {dimension_numbers = #tpu.dot_dimension_numbers<[1], [0], [0], [1], [0, 0, 1, 1], [], []>} : vector<8x128xf32>, vector<128x512xf32>, vector<8x512xf32> -> vector<8x512xf32>
    %418 = arith.addf %225, %417 : vector<8x512xf32>
    %419 = vector.extract_strided_slice %418 {offsets = [0, 0], sizes = [8, 256], strides = [1, 1]} : vector<8x512xf32> to vector<8x256xf32>
    %420 = arith.negf %419 : vector<8x256xf32>
    %421 = math.exp %420 : vector<8x256xf32>
    %cst_106 = arith.constant 1.000000e+00 : f32
    %422 = vector.broadcast %cst_106 : f32 to vector<8x256xf32>
    %423 = arith.addf %422, %421 : vector<8x256xf32>
    %424 = arith.divf %422, %423 : vector<8x256xf32>
    %425 = vector.extract_strided_slice %418 {offsets = [0, 256], sizes = [8, 128], strides = [1, 1]} : vector<8x512xf32> to vector<8x128xf32>
    %426 = math.tanh %425 : vector<8x128xf32>
    %427 = vector.extract_strided_slice %418 {offsets = [0, 384], sizes = [8, 128], strides = [1, 1]} : vector<8x512xf32> to vector<8x128xf32>
    %428 = arith.negf %427 : vector<8x128xf32>
    %429 = math.exp %428 : vector<8x128xf32>
    %cst_107 = arith.constant 1.000000e+00 : f32
    %430 = vector.broadcast %cst_107 : f32 to vector<8x128xf32>
    %431 = arith.addf %430, %429 : vector<8x128xf32>
    %432 = arith.divf %430, %431 : vector<8x128xf32>
    %433 = vector.extract_strided_slice %424 {offsets = [0, 0], sizes = [8, 128], strides = [1, 1]} : vector<8x256xf32> to vector<8x128xf32>
    %434 = vector.extract_strided_slice %424 {offsets = [0, 128], sizes = [8, 128], strides = [1, 1]} : vector<8x256xf32> to vector<8x128xf32>
    %435 = arith.mulf %434, %410 : vector<8x128xf32>
    %436 = arith.mulf %433, %426 : vector<8x128xf32>
    %437 = arith.addf %435, %436 : vector<8x128xf32>
    %438 = math.tanh %437 : vector<8x128xf32>
    %439 = arith.mulf %432, %438 : vector<8x128xf32>
    %440 = arith.index_cast %c7_i32_104 : i32 to index
    %c0_108 = arith.constant 0 : index
    %c0_109 = arith.constant 0 : index
    %441 = vector.load %arg8[%440, %c0_108, %c0_109] : memref<8x8x128xf32, #tpu.memory_space<vmem>>, vector<1x8x128xf32>
    %442 = vector.shape_cast %441 : vector<1x8x128xf32> to vector<8x128xf32>
    %443 = vector.shape_cast %439 : vector<8x128xf32> to vector<1x8x128xf32>
    tpu.vector_store %arg8[%440, %c0_108, %c0_109], %443 {strides = array<i32>} : memref<8x8x128xf32, #tpu.memory_space<vmem>>, vector<1x8x128xf32>,
    %c8_i32_110 = arith.constant 8 : i32
    return
  }
  func.func @transform_0(%arg0: i32) -> (i32, i32, i32) {
    %c0_i32 = arith.constant 0 : i32
    %c0_i32_0 = arith.constant 0 : i32
    %c0_i32_1 = arith.constant 0 : i32
    return %c0_i32, %arg0, %c0_i32_0 : i32, i32, i32
  }
  func.func @transform_1(%arg0: i32) -> (i32, i32) {
    %c0_i32 = arith.constant 0 : i32
    %c0_i32_0 = arith.constant 0 : i32
    %c0_i32_1 = arith.constant 0 : i32
    return %c0_i32, %c0_i32_0 : i32, i32
  }
  func.func @transform_2(%arg0: i32) -> (i32, i32) {
    %c0_i32 = arith.constant 0 : i32
    %c0_i32_0 = arith.constant 0 : i32
    %c0_i32_1 = arith.constant 0 : i32
    return %c0_i32, %c0_i32_0 : i32, i32
  }
  func.func @transform_3(%arg0: i32) -> (i32, i32) {
    %c0_i32 = arith.constant 0 : i32
    %c0_i32_0 = arith.constant 0 : i32
    %c0_i32_1 = arith.constant 0 : i32
    return %c0_i32, %c0_i32_0 : i32, i32
  }
  func.func @transform_4(%arg0: i32) -> (i32, i32) {
    %c0_i32 = arith.constant 0 : i32
    %c0_i32_0 = arith.constant 0 : i32
    %c0_i32_1 = arith.constant 0 : i32
    return %c0_i32, %c0_i32_0 : i32, i32
  }
  func.func @transform_5(%arg0: i32) -> (i32, i32) {
    %c0_i32 = arith.constant 0 : i32
    %c0_i32_0 = arith.constant 0 : i32
    %c0_i32_1 = arith.constant 0 : i32
    return %c0_i32, %c0_i32_0 : i32, i32
  }
  func.func @transform_6(%arg0: i32) -> (i32, i32) {
    %c0_i32 = arith.constant 0 : i32
    %c0_i32_0 = arith.constant 0 : i32
    %c0_i32_1 = arith.constant 0 : i32
    return %c0_i32, %c0_i32_0 : i32, i32
  }
  func.func @transform_7(%arg0: i32) -> (i32, i32, i32) {
    %c0_i32 = arith.constant 0 : i32
    %c0_i32_0 = arith.constant 0 : i32
    %c0_i32_1 = arith.constant 0 : i32
    return %c0_i32, %arg0, %c0_i32_0 : i32, i32, i32
  }
}

</mosaic_0001>

<llo_original>
// kernel: tpu_custom_call.1
$region0: #{tpu_custom_call.1}
  #allocation0 [shape = 'u32[]', space=smem, size = 0x4, offset = 0x4, fixed_abs, tag = 'smem constant byte address 0x4 - core index']
  #allocation1 [shape = 'u32[72,128]{1,0:T(1,128)}', space=vmem, size = 0x9000, scoped, tag = 'internal scratch']
  #allocation2 [shape = 'f32[8,8,512]{2,1,0:T(8,128)}', space=vmem, size = 0x20000, scoped, tag = 'scratch operand']
  %s0 = inlined_call_operand.hbm [shape: f32[8,8,8], index: 0, kind: input, shape index: {}]
  %s1 = inlined_call_operand.hbm [shape: f32[8,512], index: 1, kind: input, shape index: {}]
  %s2 = inlined_call_operand.hbm [shape: f32[128,512], index: 2, kind: input, shape index: {}]
  %s3 = inlined_call_operand.hbm [shape: f32[1,512], index: 3, kind: input, shape index: {}]
  %s4 = inlined_call_operand.hbm [shape: f32[128,512], index: 4, kind: input, shape index: {}]
  %s5 = inlined_call_operand.hbm [shape: f32[128,512], index: 5, kind: input, shape index: {}]
  %s6 = inlined_call_operand.vmem [shape: f32[1,512], index: 6, kind: input, shape index: {}]
  %s7 = inlined_call_operand.hbm [shape: f32[8,8,128], index: 7, kind: output, shape index: {}]
  %s8 = sld [smem:[#allocation0]]
  $region62: #{tpu_custom_call.1} parent=0
    _
  %s10 = ssub.s32 1, %s8
  %s11 = scalar_select 0, %s10, %s8
  $region1: #{tpu_custom_call.1} parent=0
    #allocation3 [shape = 'u8[32768]{0}', space=vmem, size = 0x8000, scoped, tag = 'input window, operand 0, single buffered']
    #allocation4 [shape = 's32[1]{0}', space=sflag, size = 0x4, scoped, tag = 'scoped memory for tpu_custom_call.1']
    #allocation5 [shape = 's32[1]{0}', space=sflag, size = 0x4, scoped, tag = 'scoped memory for tpu_custom_call.1']
    #allocation6 [shape = 'u8[16384]{0}', space=vmem, size = 0x4000, scoped, tag = 'input window, operand 1, single buffered']
    #allocation7 [shape = 's32[1]{0}', space=sflag, size = 0x4, scoped, tag = 'scoped memory for tpu_custom_call.1']
    #allocation8 [shape = 'u8[262144]{0}', space=vmem, size = 0x40000, scoped, tag = 'input window, operand 2, single buffered']
    #allocation9 [shape = 'u8[2048]{0}', space=vmem, size = 0x800, scoped, tag = 'input window, operand 3, single buffered']
    #allocation10 [shape = 's32[1]{0}', space=sflag, size = 0x4, scoped, tag = 'scoped memory for tpu_custom_call.1']
    #allocation11 [shape = 'u8[262144]{0}', space=vmem, size = 0x40000, scoped, tag = 'input window, operand 4, single buffered']
    #allocation12 [shape = 'u8[262144]{0}', space=vmem, size = 0x40000, scoped, tag = 'input window, operand 5, single buffered']
    #allocation13 [shape = 's32[1]{0}', space=sflag, size = 0x4, scoped, tag = 'scoped memory for tpu_custom_call.1']
    #allocation14 [shape = 'u8[32768]{0}', space=vmem, size = 0x8000, scoped, tag = 'output window, operand 0, single buffered']
    %12 = vsyncpa [#allocation4], 0
    %13 = vsyncpa [#allocation7], 0
    %14 = vsyncpa [#allocation10], 0
    %15 = vsyncpa [#allocation13], 0
    %16 = vsyncpa [#allocation5], 0
    // Predicated region
    $region2: #{tpu_custom_call.1} parent=1 // pred_check
      _
    $region3: #{tpu_custom_call.1} parent=1 // pred_check_branch
      %18 = sbr.rel (0) target = $region5
    $region4: #{tpu_custom_call.1} parent=1 // pred_region
      %20 = vsyncadd [#allocation4], 0
      %s21 = sshll.u32 %s0, 4
      %s22 = int_to_ptr.hbm [resolvable:$true] %s21
      %s23 = sshll.u32 [#allocation3], 4
      %s24 = int_to_ptr.vmem [resolvable:$true] %s23
      %29 = dma.hbm_to_vmem [thread:$0]  %s22, 1024, %s24, [#allocation4], 128, 128, 8
    $region5: #{tpu_custom_call.1} parent=1 // pred_fallthru
      _
    // Predicated region
    $region6: #{tpu_custom_call.1} parent=1 // pred_check
      _
    $region7: #{tpu_custom_call.1} parent=1 // pred_check_branch
      %31 = sbr.rel (0) target = $region9
    $region8: #{tpu_custom_call.1} parent=1 // pred_region
      %33 = vsyncadd [#allocation7], 0
      %s35 = sshll.u32 %s1, 4
      %s36 = int_to_ptr.hbm [resolvable:$true] %s35
      %s37 = sshll.u32 [#allocation6], 4
      %s38 = int_to_ptr.vmem [resolvable:$true] %s37
      %40 = dma.hbm_to_vmem [thread:$0]  %s36, 512, %s38, [#allocation7]
    $region9: #{tpu_custom_call.1} parent=1 // pred_fallthru
      _
    // Predicated region
    $region10: #{tpu_custom_call.1} parent=1 // pred_check
      _
    $region11: #{tpu_custom_call.1} parent=1 // pred_check_branch
      %42 = sbr.rel (0) target = $region13
    $region12: #{tpu_custom_call.1} parent=1 // pred_region
      %44 = vsyncadd [#allocation7], 0
      %s45 = sshll.u32 %s2, 4
      %s46 = int_to_ptr.hbm [resolvable:$true] %s45
      %s47 = sshll.u32 [#allocation8], 4
      %s48 = int_to_ptr.vmem [resolvable:$true] %s47
      %53 = dma.hbm_to_vmem [thread:$0]  %s46, 8192, %s48, [#allocation7], 512, 512, 32
    $region13: #{tpu_custom_call.1} parent=1 // pred_fallthru
      _
    // Predicated region
    $region14: #{tpu_custom_call.1} parent=1 // pred_check
      _
    $region15: #{tpu_custom_call.1} parent=1 // pred_check_branch
      %55 = sbr.rel (0) target = $region17
    $region16: #{tpu_custom_call.1} parent=1 // pred_region
      %57 = vsyncadd [#allocation10], 0
      %s59 = sshll.u32 %s3, 4
      %s60 = int_to_ptr.hbm [resolvable:$true] %s59
      %s61 = sshll.u32 [#allocation9], 4
      %s62 = int_to_ptr.vmem [resolvable:$true] %s61
      %64 = dma.hbm_to_vmem [thread:$0]  %s60, 64, %s62, [#allocation10]
    $region17: #{tpu_custom_call.1} parent=1 // pred_fallthru
      _
    // Predicated region
    $region18: #{tpu_custom_call.1} parent=1 // pred_check
      _
    $region19: #{tpu_custom_call.1} parent=1 // pred_check_branch
      %66 = sbr.rel (0) target = $region21
    $region20: #{tpu_custom_call.1} parent=1 // pred_region
      %68 = vsyncadd [#allocation10], 0
      %s69 = sshll.u32 %s4, 4
      %s70 = int_to_ptr.hbm [resolvable:$true] %s69
      %s71 = sshll.u32 [#allocation11], 4
      %s72 = int_to_ptr.vmem [resolvable:$true] %s71
      %77 = dma.hbm_to_vmem [thread:$0]  %s70, 8192, %s72, [#allocation10], 512, 512, 32
    $region21: #{tpu_custom_call.1} parent=1 // pred_fallthru
      _
    // Predicated region
    $region22: #{tpu_custom_call.1} parent=1 // pred_check
      _
    $region23: #{tpu_custom_call.1} parent=1 // pred_check_branch
      %79 = sbr.rel (0) target = $region25
    $region24: #{tpu_custom_call.1} parent=1 // pred_region
      %81 = vsyncadd [#allocation13], 0
      %s82 = sshll.u32 %s5, 4
      %s83 = int_to_ptr.hbm [resolvable:$true] %s82
      %s84 = sshll.u32 [#allocation12], 4
      %s85 = int_to_ptr.vmem [resolvable:$true] %s84
      %90 = dma.hbm_to_vmem [thread:$0]  %s83, 8192, %s85, [#allocation13], 512, 512, 32
    $region25: #{tpu_custom_call.1} parent=1 // pred_fallthru
      _
    // Predicated region
    $region26: #{tpu_custom_call.1} parent=1 // pred_check
      _
    $region27: #{tpu_custom_call.1} parent=1 // pred_check_branch
      %92 = sbr.rel (0) target = $region29
    $region28: #{tpu_custom_call.1} parent=1 // pred_region
      _
    $region29: #{tpu_custom_call.1} parent=1 // pred_fallthru
      _
    // Predicated region
    $region30: #{tpu_custom_call.1} parent=1 // pred_check
      _
    $region31: #{tpu_custom_call.1} parent=1 // pred_check_branch
      %94 = sbr.rel (0) target = $region33
    $region32: #{tpu_custom_call.1} parent=1 // pred_region
      %96 = dma.done [#allocation4], 1024
    $region33: #{tpu_custom_call.1} parent=1 // pred_fallthru
      _
    // Predicated region
    $region34: #{tpu_custom_call.1} parent=1 // pred_check
      _
    $region35: #{tpu_custom_call.1} parent=1 // pred_check_branch
      %98 = sbr.rel (0) target = $region37
    $region36: #{tpu_custom_call.1} parent=1 // pred_region
      %100 = dma.done [#allocation7], 512
    $region37: #{tpu_custom_call.1} parent=1 // pred_fallthru
      _
    // Predicated region
    $region38: #{tpu_custom_call.1} parent=1 // pred_check
      _
    $region39: #{tpu_custom_call.1} parent=1 // pred_check_branch
      %102 = sbr.rel (0) target = $region41
    $region40: #{tpu_custom_call.1} parent=1 // pred_region
      %104 = dma.done [#allocation7], 8192
    $region41: #{tpu_custom_call.1} parent=1 // pred_fallthru
      _
    // Predicated region
    $region42: #{tpu_custom_call.1} parent=1 // pred_check
      _
    $region43: #{tpu_custom_call.1} parent=1 // pred_check_branch
      %106 = sbr.rel (0) target = $region45
    $region44: #{tpu_custom_call.1} parent=1 // pred_region
      %108 = dma.done [#allocation10], 64
    $region45: #{tpu_custom_call.1} parent=1 // pred_fallthru
      _
    // Predicated region
    $region46: #{tpu_custom_call.1} parent=1 // pred_check
      _
    $region47: #{tpu_custom_call.1} parent=1 // pred_check_branch
      %110 = sbr.rel (0) target = $region49
    $region48: #{tpu_custom_call.1} parent=1 // pred_region
      %112 = dma.done [#allocation10], 8192
    $region49: #{tpu_custom_call.1} parent=1 // pred_fallthru
      _
    // Predicated region
    $region50: #{tpu_custom_call.1} parent=1 // pred_check
      _
    $region51: #{tpu_custom_call.1} parent=1 // pred_check_branch
      %114 = sbr.rel (0) target = $region53
    $region52: #{tpu_custom_call.1} parent=1 // pred_region
      %116 = dma.done [#allocation13], 8192
    $region53: #{tpu_custom_call.1} parent=1 // pred_fallthru
      _
    %v117 = vld [vmem:[#allocation6] sm:$0xff]
    %v118 = vld [vmem:[#allocation6 + $0x8] sm:$0xff]
    %v119 = vld [vmem:[#allocation6 + $0x10] sm:$0xff]
    %v120 = vld [vmem:[#allocation6 + $0x18] sm:$0xff]
    %v121 = vld [vmem:[#allocation8] sm:$0xff]
    %v122 = vld [vmem:[#allocation8 + $0x8] sm:$0xff]
    %v123 = vld [vmem:[#allocation8 + $0x10] sm:$0xff]
    %v124 = vld [vmem:[#allocation8 + $0x18] sm:$0xff]
    %v125 = vld [vmem:[#allocation8 + $0x20] sm:$0xff]
    %v126 = vld [vmem:[#allocation8 + $0x28] sm:$0xff]
    %v127 = vld [vmem:[#allocation8 + $0x30] sm:$0xff]
    %v128 = vld [vmem:[#allocation8 + $0x38] sm:$0xff]
    %v129 = vld [vmem:[#allocation8 + $0x40] sm:$0xff]
    %v130 = vld [vmem:[#allocation8 + $0x48] sm:$0xff]
    %v131 = vld [vmem:[#allocation8 + $0x50] sm:$0xff]
    %v132 = vld [vmem:[#allocation8 + $0x58] sm:$0xff]
    %v133 = vld [vmem:[#allocation8 + $0x60] sm:$0xff]
    %v134 = vld [vmem:[#allocation8 + $0x68] sm:$0xff]
    %v135 = vld [vmem:[#allocation8 + $0x70] sm:$0xff]
    %v136 = vld [vmem:[#allocation8 + $0x78] sm:$0xff]
    %v137 = vld [vmem:[#allocation8 + $0x80] sm:$0xff]
    %v138 = vld [vmem:[#allocation8 + $0x88] sm:$0xff]
    %v139 = vld [vmem:[#allocation8 + $0x90] sm:$0xff]
    %v140 = vld [vmem:[#allocation8 + $0x98] sm:$0xff]
    %v141 = vld [vmem:[#allocation8 + $0xa0] sm:$0xff]
    %v142 = vld [vmem:[#allocation8 + $0xa8] sm:$0xff]
    %v143 = vld [vmem:[#allocation8 + $0xb0] sm:$0xff]
    %v144 = vld [vmem:[#allocation8 + $0xb8] sm:$0xff]
    %v145 = vld [vmem:[#allocation8 + $0xc0] sm:$0xff]
    %v146 = vld [vmem:[#allocation8 + $0xc8] sm:$0xff]
    %v147 = vld [vmem:[#allocation8 + $0xd0] sm:$0xff]
    %v148 = vld [vmem:[#allocation8 + $0xd8] sm:$0xff]
    %v149 = vld [vmem:[#allocation8 + $0xe0] sm:$0xff]
    %v150 = vld [vmem:[#allocation8 + $0xe8] sm:$0xff]
    %v151 = vld [vmem:[#allocation8 + $0xf0] sm:$0xff]
    %v152 = vld [vmem:[#allocation8 + $0xf8] sm:$0xff]
    %v153 = vld [vmem:[#allocation8 + $0x100] sm:$0xff]
    %v154 = vld [vmem:[#allocation8 + $0x108] sm:$0xff]
    %v155 = vld [vmem:[#allocation8 + $0x110] sm:$0xff]
    %v156 = vld [vmem:[#allocation8 + $0x118] sm:$0xff]
    %v157 = vld [vmem:[#allocation8 + $0x120] sm:$0xff]
    %v158 = vld [vmem:[#allocation8 + $0x128] sm:$0xff]
    %v159 = vld [vmem:[#allocation8 + $0x130] sm:$0xff]
    %v160 = vld [vmem:[#allocation8 + $0x138] sm:$0xff]
    %v161 = vld [vmem:[#allocation8 + $0x140] sm:$0xff]
    %v162 = vld [vmem:[#allocation8 + $0x148] sm:$0xff]
    %v163 = vld [vmem:[#allocation8 + $0x150] sm:$0xff]
    %v164 = vld [vmem:[#allocation8 + $0x158] sm:$0xff]
    %v165 = vld [vmem:[#allocation8 + $0x160] sm:$0xff]
    %v166 = vld [vmem:[#allocation8 + $0x168] sm:$0xff]
    %v167 = vld [vmem:[#allocation8 + $0x170] sm:$0xff]
    %v168 = vld [vmem:[#allocation8 + $0x178] sm:$0xff]
    %v169 = vld [vmem:[#allocation8 + $0x180] sm:$0xff]
    %v170 = vld [vmem:[#allocation8 + $0x188] sm:$0xff]
    %v171 = vld [vmem:[#allocation8 + $0x190] sm:$0xff]
    %v172 = vld [vmem:[#allocation8 + $0x198] sm:$0xff]
    %v173 = vld [vmem:[#allocation8 + $0x1a0] sm:$0xff]
    %v174 = vld [vmem:[#allocation8 + $0x1a8] sm:$0xff]
    %v175 = vld [vmem:[#allocation8 + $0x1b0] sm:$0xff]
    %v176 = vld [vmem:[#allocation8 + $0x1b8] sm:$0xff]
    %v177 = vld [vmem:[#allocation8 + $0x1c0] sm:$0xff]
    %v178 = vld [vmem:[#allocation8 + $0x1c8] sm:$0xff]
    %v179 = vld [vmem:[#allocation8 + $0x1d0] sm:$0xff]
    %v180 = vld [vmem:[#allocation8 + $0x1d8] sm:$0xff]
    %v181 = vld [vmem:[#allocation8 + $0x1e0] sm:$0xff]
    %v182 = vld [vmem:[#allocation8 + $0x1e8] sm:$0xff]
    %v183 = vld [vmem:[#allocation8 + $0x1f0] sm:$0xff]
    %v184 = vld [vmem:[#allocation8 + $0x1f8] sm:$0xff]
    %v185 = vld [vmem:[#allocation9] sm:$0xf]
    %v186 = vld [vmem:[#allocation11] sm:$0xff]
    %v187 = vld [vmem:[#allocation11 + $0x8] sm:$0xff]
    %v188 = vld [vmem:[#allocation11 + $0x10] sm:$0xff]
    %v189 = vld [vmem:[#allocation11 + $0x18] sm:$0xff]
    %v190 = vld [vmem:[#allocation11 + $0x20] sm:$0xff]
    %v191 = vld [vmem:[#allocation11 + $0x28] sm:$0xff]
    %v192 = vld [vmem:[#allocation11 + $0x30] sm:$0xff]
    %v193 = vld [vmem:[#allocation11 + $0x38] sm:$0xff]
    %v194 = vld [vmem:[#allocation11 + $0x40] sm:$0xff]
    %v195 = vld [vmem:[#allocation11 + $0x48] sm:$0xff]
    %v196 = vld [vmem:[#allocation11 + $0x50] sm:$0xff]
    %v197 = vld [vmem:[#allocation11 + $0x58] sm:$0xff]
    %v198 = vld [vmem:[#allocation11 + $0x60] sm:$0xff]
    %v199 = vld [vmem:[#allocation11 + $0x68] sm:$0xff]
    %v200 = vld [vmem:[#allocation11 + $0x70] sm:$0xff]
    %v201 = vld [vmem:[#allocation11 + $0x78] sm:$0xff]
    %v202 = vld [vmem:[#allocation11 + $0x80] sm:$0xff]
    %v203 = vld [vmem:[#allocation11 + $0x88] sm:$0xff]
    %v204 = vld [vmem:[#allocation11 + $0x90] sm:$0xff]
    %v205 = vld [vmem:[#allocation11 + $0x98] sm:$0xff]
    %v206 = vld [vmem:[#allocation11 + $0xa0] sm:$0xff]
    %v207 = vld [vmem:[#allocation11 + $0xa8] sm:$0xff]
    %v208 = vld [vmem:[#allocation11 + $0xb0] sm:$0xff]
    %v209 = vld [vmem:[#allocation11 + $0xb8] sm:$0xff]
    %v210 = vld [vmem:[#allocation11 + $0xc0] sm:$0xff]
    %v211 = vld [vmem:[#allocation11 + $0xc8] sm:$0xff]
    %v212 = vld [vmem:[#allocation11 + $0xd0] sm:$0xff]
    %v213 = vld [vmem:[#allocation11 + $0xd8] sm:$0xff]
    %v214 = vld [vmem:[#allocation11 + $0xe0] sm:$0xff]
    %v215 = vld [vmem:[#allocation11 + $0xe8] sm:$0xff]
    %v216 = vld [vmem:[#allocation11 + $0xf0] sm:$0xff]
    %v217 = vld [vmem:[#allocation11 + $0xf8] sm:$0xff]
    %v218 = vld [vmem:[#allocation11 + $0x100] sm:$0xff]
    %v219 = vld [vmem:[#allocation11 + $0x108] sm:$0xff]
    %v220 = vld [vmem:[#allocation11 + $0x110] sm:$0xff]
    %v221 = vld [vmem:[#allocation11 + $0x118] sm:$0xff]
    %v222 = vld [vmem:[#allocation11 + $0x120] sm:$0xff]
    %v223 = vld [vmem:[#allocation11 + $0x128] sm:$0xff]
    %v224 = vld [vmem:[#allocation11 + $0x130] sm:$0xff]
    %v225 = vld [vmem:[#allocation11 + $0x138] sm:$0xff]
    %v226 = vld [vmem:[#allocation11 + $0x140] sm:$0xff]
    %v227 = vld [vmem:[#allocation11 + $0x148] sm:$0xff]
    %v228 = vld [vmem:[#allocation11 + $0x150] sm:$0xff]
    %v229 = vld [vmem:[#allocation11 + $0x158] sm:$0xff]
    %v230 = vld [vmem:[#allocation11 + $0x160] sm:$0xff]
    %v231 = vld [vmem:[#allocation11 + $0x168] sm:$0xff]
    %v232 = vld [vmem:[#allocation11 + $0x170] sm:$0xff]
    %v233 = vld [vmem:[#allocation11 + $0x178] sm:$0xff]
    %v234 = vld [vmem:[#allocation11 + $0x180] sm:$0xff]
    %v235 = vld [vmem:[#allocation11 + $0x188] sm:$0xff]
    %v236 = vld [vmem:[#allocation11 + $0x190] sm:$0xff]
    %v237 = vld [vmem:[#allocation11 + $0x198] sm:$0xff]
    %v238 = vld [vmem:[#allocation11 + $0x1a0] sm:$0xff]
    %v239 = vld [vmem:[#allocation11 + $0x1a8] sm:$0xff]
    %v240 = vld [vmem:[#allocation11 + $0x1b0] sm:$0xff]
    %v241 = vld [vmem:[#allocation11 + $0x1b8] sm:$0xff]
    %v242 = vld [vmem:[#allocation11 + $0x1c0] sm:$0xff]
    %v243 = vld [vmem:[#allocation11 + $0x1c8] sm:$0xff]
    %v244 = vld [vmem:[#allocation11 + $0x1d0] sm:$0xff]
    %v245 = vld [vmem:[#allocation11 + $0x1d8] sm:$0xff]
    %v246 = vld [vmem:[#allocation11 + $0x1e0] sm:$0xff]
    %v247 = vld [vmem:[#allocation11 + $0x1e8] sm:$0xff]
    %v248 = vld [vmem:[#allocation11 + $0x1f0] sm:$0xff]
    %v249 = vld [vmem:[#allocation11 + $0x1f8] sm:$0xff]
    %v250 = vld [vmem:[#allocation12] sm:$0xff]
    %v251 = vld [vmem:[#allocation12 + $0x8] sm:$0xff]
    %v252 = vld [vmem:[#allocation12 + $0x10] sm:$0xff]
    %v253 = vld [vmem:[#allocation12 + $0x18] sm:$0xff]
    %v254 = vld [vmem:[#allocation12 + $0x20] sm:$0xff]
    %v255 = vld [vmem:[#allocation12 + $0x28] sm:$0xff]
    %v256 = vld [vmem:[#allocation12 + $0x30] sm:$0xff]
    %v257 = vld [vmem:[#allocation12 + $0x38] sm:$0xff]
    %v258 = vld [vmem:[#allocation12 + $0x40] sm:$0xff]
    %v259 = vld [vmem:[#allocation12 + $0x48] sm:$0xff]
    %v260 = vld [vmem:[#allocation12 + $0x50] sm:$0xff]
    %v261 = vld [vmem:[#allocation12 + $0x58] sm:$0xff]
    %v262 = vld [vmem:[#allocation12 + $0x60] sm:$0xff]
    %v263 = vld [vmem:[#allocation12 + $0x68] sm:$0xff]
    %v264 = vld [vmem:[#allocation12 + $0x70] sm:$0xff]
    %v265 = vld [vmem:[#allocation12 + $0x78] sm:$0xff]
    %v266 = vld [vmem:[#allocation12 + $0x80] sm:$0xff]
    %v267 = vld [vmem:[#allocation12 + $0x88] sm:$0xff]
    %v268 = vld [vmem:[#allocation12 + $0x90] sm:$0xff]
    %v269 = vld [vmem:[#allocation12 + $0x98] sm:$0xff]
    %v270 = vld [vmem:[#allocation12 + $0xa0] sm:$0xff]
    %v271 = vld [vmem:[#allocation12 + $0xa8] sm:$0xff]
    %v272 = vld [vmem:[#allocation12 + $0xb0] sm:$0xff]
    %v273 = vld [vmem:[#allocation12 + $0xb8] sm:$0xff]
    %v274 = vld [vmem:[#allocation12 + $0xc0] sm:$0xff]
    %v275 = vld [vmem:[#allocation12 + $0xc8] sm:$0xff]
    %v276 = vld [vmem:[#allocation12 + $0xd0] sm:$0xff]
    %v277 = vld [vmem:[#allocation12 + $0xd8] sm:$0xff]
    %v278 = vld [vmem:[#allocation12 + $0xe0] sm:$0xff]
    %v279 = vld [vmem:[#allocation12 + $0xe8] sm:$0xff]
    %v280 = vld [vmem:[#allocation12 + $0xf0] sm:$0xff]
    %v281 = vld [vmem:[#allocation12 + $0xf8] sm:$0xff]
    %v282 = vld [vmem:[#allocation12 + $0x100] sm:$0xff]
    %v283 = vld [vmem:[#allocation12 + $0x108] sm:$0xff]
    %v284 = vld [vmem:[#allocation12 + $0x110] sm:$0xff]
    %v285 = vld [vmem:[#allocation12 + $0x118] sm:$0xff]
    %v286 = vld [vmem:[#allocation12 + $0x120] sm:$0xff]
    %v287 = vld [vmem:[#allocation12 + $0x128] sm:$0xff]
    %v288 = vld [vmem:[#allocation12 + $0x130] sm:$0xff]
    %v289 = vld [vmem:[#allocation12 + $0x138] sm:$0xff]
    %v290 = vld [vmem:[#allocation12 + $0x140] sm:$0xff]
    %v291 = vld [vmem:[#allocation12 + $0x148] sm:$0xff]
    %v292 = vld [vmem:[#allocation12 + $0x150] sm:$0xff]
    %v293 = vld [vmem:[#allocation12 + $0x158] sm:$0xff]
    %v294 = vld [vmem:[#allocation12 + $0x160] sm:$0xff]
    %v295 = vld [vmem:[#allocation12 + $0x168] sm:$0xff]
    %v296 = vld [vmem:[#allocation12 + $0x170] sm:$0xff]
    %v297 = vld [vmem:[#allocation12 + $0x178] sm:$0xff]
    %v298 = vld [vmem:[#allocation12 + $0x180] sm:$0xff]
    %v299 = vld [vmem:[#allocation12 + $0x188] sm:$0xff]
    %v300 = vld [vmem:[#allocation12 + $0x190] sm:$0xff]
    %v301 = vld [vmem:[#allocation12 + $0x198] sm:$0xff]
    %v302 = vld [vmem:[#allocation12 + $0x1a0] sm:$0xff]
    %v303 = vld [vmem:[#allocation12 + $0x1a8] sm:$0xff]
    %v304 = vld [vmem:[#allocation12 + $0x1b0] sm:$0xff]
    %v305 = vld [vmem:[#allocation12 + $0x1b8] sm:$0xff]
    %v306 = vld [vmem:[#allocation12 + $0x1c0] sm:$0xff]
    %v307 = vld [vmem:[#allocation12 + $0x1c8] sm:$0xff]
    %v308 = vld [vmem:[#allocation12 + $0x1d0] sm:$0xff]
    %v309 = vld [vmem:[#allocation12 + $0x1d8] sm:$0xff]
    %v310 = vld [vmem:[#allocation12 + $0x1e0] sm:$0xff]
    %v311 = vld [vmem:[#allocation12 + $0x1e8] sm:$0xff]
    %v312 = vld [vmem:[#allocation12 + $0x1f0] sm:$0xff]
    %v313 = vld [vmem:[#allocation12 + $0x1f8] sm:$0xff]
    %v314 = vld [vmem:[%s6] sm:$0xf]
    %v315 = vld [vmem:[#allocation3] sm:$0xff]
    %v316 = vld [vmem:[#allocation3 + $0x8] sm:$0xff]
    %v317 = vld [vmem:[#allocation3 + $0x10] sm:$0xff]
    %v318 = vld [vmem:[#allocation3 + $0x18] sm:$0xff]
    %v319 = vld [vmem:[#allocation3 + $0x20] sm:$0xff]
    %v320 = vld [vmem:[#allocation3 + $0x28] sm:$0xff]
    %v321 = vld [vmem:[#allocation3 + $0x30] sm:$0xff]
    %v322 = vld [vmem:[#allocation3 + $0x38] sm:$0xff]
    %v324 = vperm.slane %v185, 0
    %v325 = vperm.slane %v185, 1
    %v326 = vperm.slane %v185, 2
    %v327 = vperm.slane %v185, 3
    %vm332 = vcmask 64512
    %v334 = vsel %vm332, %v315, 0
    %v337 = vsel %vm332, %v316, 0
    %v340 = vsel %vm332, %v317, 0
    %v343 = vsel %vm332, %v318, 0
    %v346 = vsel %vm332, %v319, 0
    %v349 = vsel %vm332, %v320, 0
    %v352 = vsel %vm332, %v321, 0
    %v355 = vsel %vm332, %v322, 0
    %357 = vmatpush.msra.mxu0 0.0
    %358 = vmatpush.msra.mxu0 0.0
    %359 = vmatpush.msra.mxu0 0.0
    %360 = vmatpush.msra.mxu0 0.0
    %361 = vmatpush.msra.mxu0 0.0
    %362 = vmatpush.msra.mxu0 0.0
    %363 = vmatpush.msra.mxu0 0.0
    %364 = vmatpush.msra.mxu0 0.0
    %365 = vmatpush.msra.mxu0 0.0
    %366 = vmatpush.msra.mxu0 0.0
    %367 = vmatpush.msra.mxu0 0.0
    %368 = vmatpush.msra.mxu0 0.0
    %369 = vmatpush.msra.mxu0 0.0
    %370 = vmatpush.msra.mxu0 0.0
    %371 = vmatpush.msra.mxu0 0.0
    %372 = vmatpush.msra.mxu0 %v117
    %373 = vmatmul.f32.gmra.mxu0 %v334
    %v374 = vpop.f32.mrf.mxu0
    %v375 = vadd.f32 %v324, %v374
    %376 = vmatmul.f32.gmra.mxu0 %v337
    %v377 = vpop.f32.mrf.mxu0
    %v378 = vadd.f32 %v324, %v377
    %379 = vmatmul.f32.gmra.mxu0 %v340
    %v380 = vpop.f32.mrf.mxu0
    %v381 = vadd.f32 %v324, %v380
    %382 = vmatmul.f32.gmra.mxu0 %v343
    %v383 = vpop.f32.mrf.mxu0
    %v384 = vadd.f32 %v324, %v383
    %385 = vmatmul.f32.gmra.mxu0 %v346
    %v386 = vpop.f32.mrf.mxu0
    %v387 = vadd.f32 %v324, %v386
    %388 = vmatmul.f32.gmra.mxu0 %v349
    %v389 = vpop.f32.mrf.mxu0
    %v390 = vadd.f32 %v324, %v389
    %391 = vmatmul.f32.gmra.mxu0 %v352
    %v392 = vpop.f32.mrf.mxu0
    %v393 = vadd.f32 %v324, %v392
    %394 = vmatmul.f32.gmra.mxu0 %v355
    %v395 = vpop.f32.mrf.mxu0
    %v396 = vadd.f32 %v324, %v395
    %397 = vdwg.mxu0
    %398 = vmatpush.msra.mxu0 0.0
    %399 = vmatpush.msra.mxu0 0.0
    %400 = vmatpush.msra.mxu0 0.0
    %401 = vmatpush.msra.mxu0 0.0
    %402 = vmatpush.msra.mxu0 0.0
    %403 = vmatpush.msra.mxu0 0.0
    %404 = vmatpush.msra.mxu0 0.0
    %405 = vmatpush.msra.mxu0 0.0
    %406 = vmatpush.msra.mxu0 0.0
    %407 = vmatpush.msra.mxu0 0.0
    %408 = vmatpush.msra.mxu0 0.0
    %409 = vmatpush.msra.mxu0 0.0
    %410 = vmatpush.msra.mxu0 0.0
    %411 = vmatpush.msra.mxu0 0.0
    %412 = vmatpush.msra.mxu0 0.0
    %413 = vmatpush.msra.mxu0 %v118
    %414 = vmatmul.f32.gmra.mxu0 %v334
    %v415 = vpop.f32.mrf.mxu0
    %v416 = vadd.f32 %v325, %v415
    %417 = vmatmul.f32.gmra.mxu0 %v337
    %v418 = vpop.f32.mrf.mxu0
    %v419 = vadd.f32 %v325, %v418
    %420 = vmatmul.f32.gmra.mxu0 %v340
    %v421 = vpop.f32.mrf.mxu0
    %v422 = vadd.f32 %v325, %v421
    %423 = vmatmul.f32.gmra.mxu0 %v343
    %v424 = vpop.f32.mrf.mxu0
    %v425 = vadd.f32 %v325, %v424
    %426 = vmatmul.f32.gmra.mxu0 %v346
    %v427 = vpop.f32.mrf.mxu0
    %v428 = vadd.f32 %v325, %v427
    %429 = vmatmul.f32.gmra.mxu0 %v349
    %v430 = vpop.f32.mrf.mxu0
    %v431 = vadd.f32 %v325, %v430
    %432 = vmatmul.f32.gmra.mxu0 %v352
    %v433 = vpop.f32.mrf.mxu0
    %v434 = vadd.f32 %v325, %v433
    %435 = vmatmul.f32.gmra.mxu0 %v355
    %v436 = vpop.f32.mrf.mxu0
    %v437 = vadd.f32 %v325, %v436
    %438 = vdwg.mxu0
    %439 = vmatpush.msra.mxu0 0.0
    %440 = vmatpush.msra.mxu0 0.0
    %441 = vmatpush.msra.mxu0 0.0
    %442 = vmatpush.msra.mxu0 0.0
    %443 = vmatpush.msra.mxu0 0.0
    %444 = vmatpush.msra.mxu0 0.0
    %445 = vmatpush.msra.mxu0 0.0
    %446 = vmatpush.msra.mxu0 0.0
    %447 = vmatpush.msra.mxu0 0.0
    %448 = vmatpush.msra.mxu0 0.0
    %449 = vmatpush.msra.mxu0 0.0
    %450 = vmatpush.msra.mxu0 0.0
    %451 = vmatpush.msra.mxu0 0.0
    %452 = vmatpush.msra.mxu0 0.0
    %453 = vmatpush.msra.mxu0 0.0
    %454 = vmatpush.msra.mxu0 %v119
    %455 = vmatmul.f32.gmra.mxu0 %v334
    %v456 = vpop.f32.mrf.mxu0
    %v457 = vadd.f32 %v326, %v456
    %458 = vmatmul.f32.gmra.mxu0 %v337
    %v459 = vpop.f32.mrf.mxu0
    %v460 = vadd.f32 %v326, %v459
    %461 = vmatmul.f32.gmra.mxu0 %v340
    %v462 = vpop.f32.mrf.mxu0
    %v463 = vadd.f32 %v326, %v462
    %464 = vmatmul.f32.gmra.mxu0 %v343
    %v465 = vpop.f32.mrf.mxu0
    %v466 = vadd.f32 %v326, %v465
    %467 = vmatmul.f32.gmra.mxu0 %v346
    %v468 = vpop.f32.mrf.mxu0
    %v469 = vadd.f32 %v326, %v468
    %470 = vmatmul.f32.gmra.mxu0 %v349
    %v471 = vpop.f32.mrf.mxu0
    %v472 = vadd.f32 %v326, %v471
    %473 = vmatmul.f32.gmra.mxu0 %v352
    %v474 = vpop.f32.mrf.mxu0
    %v475 = vadd.f32 %v326, %v474
    %476 = vmatmul.f32.gmra.mxu0 %v355
    %v477 = vpop.f32.mrf.mxu0
    %v478 = vadd.f32 %v326, %v477
    %479 = vdwg.mxu0
    %480 = vmatpush.msra.mxu0 0.0
    %481 = vmatpush.msra.mxu0 0.0
    %482 = vmatpush.msra.mxu0 0.0
    %483 = vmatpush.msra.mxu0 0.0
    %484 = vmatpush.msra.mxu0 0.0
    %485 = vmatpush.msra.mxu0 0.0
    %486 = vmatpush.msra.mxu0 0.0
    %487 = vmatpush.msra.mxu0 0.0
    %488 = vmatpush.msra.mxu0 0.0
    %489 = vmatpush.msra.mxu0 0.0
    %490 = vmatpush.msra.mxu0 0.0
    %491 = vmatpush.msra.mxu0 0.0
    %492 = vmatpush.msra.mxu0 0.0
    %493 = vmatpush.msra.mxu0 0.0
    %494 = vmatpush.msra.mxu0 0.0
    %495 = vmatpush.msra.mxu0 %v120
    %496 = vmatmul.f32.gmra.mxu0 %v334
    %v497 = vpop.f32.mrf.mxu0
    %v498 = vadd.f32 %v327, %v497
    %499 = vmatmul.f32.gmra.mxu0 %v337
    %v500 = vpop.f32.mrf.mxu0
    %v501 = vadd.f32 %v327, %v500
    %502 = vmatmul.f32.gmra.mxu0 %v340
    %v503 = vpop.f32.mrf.mxu0
    %v504 = vadd.f32 %v327, %v503
    %505 = vmatmul.f32.gmra.mxu0 %v343
    %v506 = vpop.f32.mrf.mxu0
    %v507 = vadd.f32 %v327, %v506
    %508 = vmatmul.f32.gmra.mxu0 %v346
    %v509 = vpop.f32.mrf.mxu0
    %v510 = vadd.f32 %v327, %v509
    %511 = vmatmul.f32.gmra.mxu0 %v349
    %v512 = vpop.f32.mrf.mxu0
    %v513 = vadd.f32 %v327, %v512
    %514 = vmatmul.f32.gmra.mxu0 %v352
    %v515 = vpop.f32.mrf.mxu0
    %v516 = vadd.f32 %v327, %v515
    %517 = vmatmul.f32.gmra.mxu0 %v355
    %v518 = vpop.f32.mrf.mxu0
    %v519 = vadd.f32 %v327, %v518
    %520 = vdwg.mxu0
    %521 = vst [vmem:[#allocation2] sm:$0xff] %v375
    %522 = vst [vmem:[#allocation2 + $0x8] sm:$0xff] %v416
    %523 = vst [vmem:[#allocation2 + $0x10] sm:$0xff] %v457
    %524 = vst [vmem:[#allocation2 + $0x18] sm:$0xff] %v498
    %525 = vst [vmem:[#allocation2 + $0x20] sm:$0xff] %v378
    %526 = vst [vmem:[#allocation2 + $0x28] sm:$0xff] %v419
    %527 = vst [vmem:[#allocation2 + $0x30] sm:$0xff] %v460
    %528 = vst [vmem:[#allocation2 + $0x38] sm:$0xff] %v501
    %529 = vst [vmem:[#allocation2 + $0x40] sm:$0xff] %v381
    %530 = vst [vmem:[#allocation2 + $0x48] sm:$0xff] %v422
    %531 = vst [vmem:[#allocation2 + $0x50] sm:$0xff] %v463
    %532 = vst [vmem:[#allocation2 + $0x58] sm:$0xff] %v504
    %533 = vst [vmem:[#allocation2 + $0x60] sm:$0xff] %v384
    %534 = vst [vmem:[#allocation2 + $0x68] sm:$0xff] %v425
    %535 = vst [vmem:[#allocation2 + $0x70] sm:$0xff] %v466
    %536 = vst [vmem:[#allocation2 + $0x78] sm:$0xff] %v507
    %537 = vst [vmem:[#allocation2 + $0x80] sm:$0xff] %v387
    %538 = vst [vmem:[#allocation2 + $0x88] sm:$0xff] %v428
    %539 = vst [vmem:[#allocation2 + $0x90] sm:$0xff] %v469
    %540 = vst [vmem:[#allocation2 + $0x98] sm:$0xff] %v510
    %541 = vst [vmem:[#allocation2 + $0xa0] sm:$0xff] %v390
    %542 = vst [vmem:[#allocation2 + $0xa8] sm:$0xff] %v431
    %543 = vst [vmem:[#allocation2 + $0xb0] sm:$0xff] %v472
    %544 = vst [vmem:[#allocation2 + $0xb8] sm:$0xff] %v513
    %545 = vst [vmem:[#allocation2 + $0xc0] sm:$0xff] %v393
    %546 = vst [vmem:[#allocation2 + $0xc8] sm:$0xff] %v434
    %547 = vst [vmem:[#allocation2 + $0xd0] sm:$0xff] %v475
    %548 = vst [vmem:[#allocation2 + $0xd8] sm:$0xff] %v516
    %549 = vst [vmem:[#allocation2 + $0xe0] sm:$0xff] %v396
    %550 = vst [vmem:[#allocation2 + $0xe8] sm:$0xff] %v437
    %551 = vst [vmem:[#allocation2 + $0xf0] sm:$0xff] %v478
    %552 = vst [vmem:[#allocation2 + $0xf8] sm:$0xff] %v519
    %v553 = vld [vmem:[#allocation2] sm:$0xff]
    %v554 = vld [vmem:[#allocation2 + $0x8] sm:$0xff]
    %v555 = vld [vmem:[#allocation2 + $0x10] sm:$0xff]
    %v556 = vld [vmem:[#allocation2 + $0x18] sm:$0xff]
    %557 = vmatpush.msra.mxu0 %v181
    %558 = vmatpush.msra.mxu0 %v177
    %559 = vmatpush.msra.mxu0 %v173
    %560 = vmatpush.msra.mxu0 %v169
    %561 = vmatpush.msra.mxu0 %v165
    %562 = vmatpush.msra.mxu0 %v161
    %563 = vmatpush.msra.mxu0 %v157
    %564 = vmatpush.msra.mxu0 %v153
    %565 = vmatpush.msra.mxu0 %v149
    %566 = vmatpush.msra.mxu0 %v145
    %567 = vmatpush.msra.mxu0 %v141
    %568 = vmatpush.msra.mxu0 %v137
    %569 = vmatpush.msra.mxu0 %v133
    %570 = vmatpush.msra.mxu0 %v129
    %571 = vmatpush.msra.mxu0 %v125
    %572 = vmatpush.msra.mxu0 %v121
    %573 = vmatmul.f32.gmra.mxu0 0.0
    %v574 = vpop.f32.mrf.mxu0
    %v575 = vadd.f32 0.0, %v574
    %576 = vdwg.mxu0
    %577 = vmatpush.msra.mxu0 %v182
    %578 = vmatpush.msra.mxu0 %v178
    %579 = vmatpush.msra.mxu0 %v174
    %580 = vmatpush.msra.mxu0 %v170
    %581 = vmatpush.msra.mxu0 %v166
    %582 = vmatpush.msra.mxu0 %v162
    %583 = vmatpush.msra.mxu0 %v158
    %584 = vmatpush.msra.mxu0 %v154
    %585 = vmatpush.msra.mxu0 %v150
    %586 = vmatpush.msra.mxu0 %v146
    %587 = vmatpush.msra.mxu0 %v142
    %588 = vmatpush.msra.mxu0 %v138
    %589 = vmatpush.msra.mxu0 %v134
    %590 = vmatpush.msra.mxu0 %v130
    %591 = vmatpush.msra.mxu0 %v126
    %592 = vmatpush.msra.mxu0 %v122
    %593 = vmatmul.f32.gmra.mxu0 0.0
    %v594 = vpop.f32.mrf.mxu0
    %v595 = vadd.f32 0.0, %v594
    %596 = vdwg.mxu0
    %597 = vmatpush.msra.mxu0 %v183
    %598 = vmatpush.msra.mxu0 %v179
    %599 = vmatpush.msra.mxu0 %v175
    %600 = vmatpush.msra.mxu0 %v171
    %601 = vmatpush.msra.mxu0 %v167
    %602 = vmatpush.msra.mxu0 %v163
    %603 = vmatpush.msra.mxu0 %v159
    %604 = vmatpush.msra.mxu0 %v155
    %605 = vmatpush.msra.mxu0 %v151
    %606 = vmatpush.msra.mxu0 %v147
    %607 = vmatpush.msra.mxu0 %v143
    %608 = vmatpush.msra.mxu0 %v139
    %609 = vmatpush.msra.mxu0 %v135
    %610 = vmatpush.msra.mxu0 %v131
    %611 = vmatpush.msra.mxu0 %v127
    %612 = vmatpush.msra.mxu0 %v123
    %613 = vmatmul.f32.gmra.mxu0 0.0
    %v614 = vpop.f32.mrf.mxu0
    %v615 = vadd.f32 0.0, %v614
    %616 = vdwg.mxu0
    %617 = vmatpush.msra.mxu0 %v184
    %618 = vmatpush.msra.mxu0 %v180
    %619 = vmatpush.msra.mxu0 %v176
    %620 = vmatpush.msra.mxu0 %v172
    %621 = vmatpush.msra.mxu0 %v168
    %622 = vmatpush.msra.mxu0 %v164
    %623 = vmatpush.msra.mxu0 %v160
    %624 = vmatpush.msra.mxu0 %v156
    %625 = vmatpush.msra.mxu0 %v152
    %626 = vmatpush.msra.mxu0 %v148
    %627 = vmatpush.msra.mxu0 %v144
    %628 = vmatpush.msra.mxu0 %v140
    %629 = vmatpush.msra.mxu0 %v136
    %630 = vmatpush.msra.mxu0 %v132
    %631 = vmatpush.msra.mxu0 %v128
    %632 = vmatpush.msra.mxu0 %v124
    %633 = vmatmul.f32.gmra.mxu0 0.0
    %v634 = vpop.f32.mrf.mxu0
    %v635 = vadd.f32 0.0, %v634
    %636 = vdwg.mxu0
    %v637 = vadd.f32 %v553, %v575
    %v638 = vadd.f32 %v554, %v595
    %v639 = vadd.f32 %v555, %v615
    %v640 = vadd.f32 %v556, %v635
    %v641 = vxor.u32 %v637, 2147483648
    %v642 = vxor.u32 %v638, 2147483648
    %v643 = vmul.f32 %v641, 1.442695
    %v644 = vpow.pop %v643
    %v645 = vmul.f32 %v642, 1.442695
    %v646 = vpow.pop %v645
    %v647 = vadd.f32 %v644, 1.0
    %v648 = vadd.f32 %v646, 1.0
    %v649 = vrcp.pop %v647
    %v650 = vmul.f32 %v647, %v649
    %v651 = vsub.f32 1.0, %v650
    %v652 = vmul.f32 %v649, %v651
    %v653 = vadd.f32 %v649, %v652
    %vm654 = vweird.f32 %v647
    %vm655 = vweird.f32 %v649
    %vm656 = vmor %vm654, %vm655
    %v657 = vsel %vm656, %v649, %v653
    %v658 = vand.u32 2147483647, %v647
    %vm659 = vcmp.eq.f32.partialorder %v658, 8.507059e+37
    %v660 = vand.u32 %v647, 2147483648
    %v661 = vor.u32 1.1754944e-38, %v660
    %v662 = vsel %vm659, %v661, %v657
    %v663 = vmul.f32 1.0, %v662
    %v664 = vrcp.pop %v648
    %v665 = vmul.f32 %v648, %v664
    %v666 = vsub.f32 1.0, %v665
    %v667 = vmul.f32 %v664, %v666
    %v668 = vadd.f32 %v664, %v667
    %vm669 = vweird.f32 %v648
    %vm670 = vweird.f32 %v664
    %vm671 = vmor %vm669, %vm670
    %v672 = vsel %vm671, %v664, %v668
    %v673 = vand.u32 2147483647, %v648
    %vm674 = vcmp.eq.f32.partialorder %v673, 8.507059e+37
    %v675 = vand.u32 %v648, 2147483648
    %v676 = vor.u32 1.1754944e-38, %v675
    %v677 = vsel %vm674, %v676, %v672
    %v678 = vmul.f32 1.0, %v677
    %v679 = vtanh.pop %v639
    %v680 = vxor.u32 %v640, 2147483648
    %v681 = vmul.f32 %v680, 1.442695
    %v682 = vpow.pop %v681
    %v683 = vadd.f32 %v682, 1.0
    %v684 = vrcp.pop %v683
    %v685 = vmul.f32 %v683, %v684
    %v686 = vsub.f32 1.0, %v685
    %v687 = vmul.f32 %v684, %v686
    %v688 = vadd.f32 %v684, %v687
    %vm689 = vweird.f32 %v683
    %vm690 = vweird.f32 %v684
    %vm691 = vmor %vm689, %vm690
    %v692 = vsel %vm691, %v684, %v688
    %v693 = vand.u32 2147483647, %v683
    %vm694 = vcmp.eq.f32.partialorder %v693, 8.507059e+37
    %v695 = vand.u32 %v683, 2147483648
    %v696 = vor.u32 1.1754944e-38, %v695
    %v697 = vsel %vm694, %v696, %v692
    %v698 = vmul.f32 1.0, %v697
    %v699 = vmul.f32 %v678, 0.0
    %v700 = vmul.f32 %v663, %v679
    %v701 = vadd.f32 %v699, %v700
    %v702 = vtanh.pop %v701
    %v703 = vmul.f32 %v698, %v702
    %s704 = scalar_lea.vmem [#allocation2], 32
    %v705 = vld [vmem:[%s704] sm:$0xff]
    %v706 = vld [vmem:[%s704 + $0x8] sm:$0xff]
    %v707 = vld [vmem:[%s704 + $0x10] sm:$0xff]
    %v708 = vld [vmem:[%s704 + $0x18] sm:$0xff]
    %709 = vmatpush.msra.mxu0 %v181
    %710 = vmatpush.msra.mxu0 %v177
    %711 = vmatpush.msra.mxu0 %v173
    %712 = vmatpush.msra.mxu0 %v169
    %713 = vmatpush.msra.mxu0 %v165
    %714 = vmatpush.msra.mxu0 %v161
    %715 = vmatpush.msra.mxu0 %v157
    %716 = vmatpush.msra.mxu0 %v153
    %717 = vmatpush.msra.mxu0 %v149
    %718 = vmatpush.msra.mxu0 %v145
    %719 = vmatpush.msra.mxu0 %v141
    %720 = vmatpush.msra.mxu0 %v137
    %721 = vmatpush.msra.mxu0 %v133
    %722 = vmatpush.msra.mxu0 %v129
    %723 = vmatpush.msra.mxu0 %v125
    %724 = vmatpush.msra.mxu0 %v121
    %725 = vmatmul.f32.gmra.mxu0 %v703
    %v726 = vpop.f32.mrf.mxu0
    %v727 = vadd.f32 0.0, %v726
    %728 = vdwg.mxu0
    %729 = vmatpush.msra.mxu0 %v182
    %730 = vmatpush.msra.mxu0 %v178
    %731 = vmatpush.msra.mxu0 %v174
    %732 = vmatpush.msra.mxu0 %v170
    %733 = vmatpush.msra.mxu0 %v166
    %734 = vmatpush.msra.mxu0 %v162
    %735 = vmatpush.msra.mxu0 %v158
    %736 = vmatpush.msra.mxu0 %v154
    %737 = vmatpush.msra.mxu0 %v150
    %738 = vmatpush.msra.mxu0 %v146
    %739 = vmatpush.msra.mxu0 %v142
    %740 = vmatpush.msra.mxu0 %v138
    %741 = vmatpush.msra.mxu0 %v134
    %742 = vmatpush.msra.mxu0 %v130
    %743 = vmatpush.msra.mxu0 %v126
    %744 = vmatpush.msra.mxu0 %v122
    %745 = vmatmul.f32.gmra.mxu0 %v703
    %v746 = vpop.f32.mrf.mxu0
    %v747 = vadd.f32 0.0, %v746
    %748 = vdwg.mxu0
    %749 = vmatpush.msra.mxu0 %v183
    %750 = vmatpush.msra.mxu0 %v179
    %751 = vmatpush.msra.mxu0 %v175
    %752 = vmatpush.msra.mxu0 %v171
    %753 = vmatpush.msra.mxu0 %v167
    %754 = vmatpush.msra.mxu0 %v163
    %755 = vmatpush.msra.mxu0 %v159
    %756 = vmatpush.msra.mxu0 %v155
    %757 = vmatpush.msra.mxu0 %v151
    %758 = vmatpush.msra.mxu0 %v147
    %759 = vmatpush.msra.mxu0 %v143
    %760 = vmatpush.msra.mxu0 %v139
    %761 = vmatpush.msra.mxu0 %v135
    %762 = vmatpush.msra.mxu0 %v131
    %763 = vmatpush.msra.mxu0 %v127
    %764 = vmatpush.msra.mxu0 %v123
    %765 = vmatmul.f32.gmra.mxu0 %v703
    %v766 = vpop.f32.mrf.mxu0
    %v767 = vadd.f32 0.0, %v766
    %768 = vdwg.mxu0
    %769 = vmatpush.msra.mxu0 %v184
    %770 = vmatpush.msra.mxu0 %v180
    %771 = vmatpush.msra.mxu0 %v176
    %772 = vmatpush.msra.mxu0 %v172
    %773 = vmatpush.msra.mxu0 %v168
    %774 = vmatpush.msra.mxu0 %v164
    %775 = vmatpush.msra.mxu0 %v160
    %776 = vmatpush.msra.mxu0 %v156
    %777 = vmatpush.msra.mxu0 %v152
    %778 = vmatpush.msra.mxu0 %v148
    %779 = vmatpush.msra.mxu0 %v144
    %780 = vmatpush.msra.mxu0 %v140
    %781 = vmatpush.msra.mxu0 %v136
    %782 = vmatpush.msra.mxu0 %v132
    %783 = vmatpush.msra.mxu0 %v128
    %784 = vmatpush.msra.mxu0 %v124
    %785 = vmatmul.f32.gmra.mxu0 %v703
    %v786 = vpop.f32.mrf.mxu0
    %v787 = vadd.f32 0.0, %v786
    %788 = vdwg.mxu0
    %v789 = vadd.f32 %v705, %v727
    %v790 = vadd.f32 %v706, %v747
    %v791 = vadd.f32 %v707, %v767
    %v792 = vadd.f32 %v708, %v787
    %v793 = vxor.u32 %v789, 2147483648
    %v794 = vxor.u32 %v790, 2147483648
    %v795 = vmul.f32 %v793, 1.442695
    %v796 = vpow.pop %v795
    %v797 = vmul.f32 %v794, 1.442695
    %v798 = vpow.pop %v797
    %v799 = vadd.f32 %v796, 1.0
    %v800 = vadd.f32 %v798, 1.0
    %v801 = vrcp.pop %v799
    %v802 = vmul.f32 %v799, %v801
    %v803 = vsub.f32 1.0, %v802
    %v804 = vmul.f32 %v801, %v803
    %v805 = vadd.f32 %v801, %v804
    %vm806 = vweird.f32 %v799
    %vm807 = vweird.f32 %v801
    %vm808 = vmor %vm806, %vm807
    %v809 = vsel %vm808, %v801, %v805
    %v810 = vand.u32 2147483647, %v799
    %vm811 = vcmp.eq.f32.partialorder %v810, 8.507059e+37
    %v812 = vand.u32 %v799, 2147483648
    %v813 = vor.u32 1.1754944e-38, %v812
    %v814 = vsel %vm811, %v813, %v809
    %v815 = vmul.f32 1.0, %v814
    %v816 = vrcp.pop %v800
    %v817 = vmul.f32 %v800, %v816
    %v818 = vsub.f32 1.0, %v817
    %v819 = vmul.f32 %v816, %v818
    %v820 = vadd.f32 %v816, %v819
    %vm821 = vweird.f32 %v800
    %vm822 = vweird.f32 %v816
    %vm823 = vmor %vm821, %vm822
    %v824 = vsel %vm823, %v816, %v820
    %v825 = vand.u32 2147483647, %v800
    %vm826 = vcmp.eq.f32.partialorder %v825, 8.507059e+37
    %v827 = vand.u32 %v800, 2147483648
    %v828 = vor.u32 1.1754944e-38, %v827
    %v829 = vsel %vm826, %v828, %v824
    %v830 = vmul.f32 1.0, %v829
    %v831 = vtanh.pop %v791
    %v832 = vxor.u32 %v792, 2147483648
    %v833 = vmul.f32 %v832, 1.442695
    %v834 = vpow.pop %v833
    %v835 = vadd.f32 %v834, 1.0
    %v836 = vrcp.pop %v835
    %v837 = vmul.f32 %v835, %v836
    %v838 = vsub.f32 1.0, %v837
    %v839 = vmul.f32 %v836, %v838
    %v840 = vadd.f32 %v836, %v839
    %vm841 = vweird.f32 %v835
    %vm842 = vweird.f32 %v836
    %vm843 = vmor %vm841, %vm842
    %v844 = vsel %vm843, %v836, %v840
    %v845 = vand.u32 2147483647, %v835
    %vm846 = vcmp.eq.f32.partialorder %v845, 8.507059e+37
    %v847 = vand.u32 %v835, 2147483648
    %v848 = vor.u32 1.1754944e-38, %v847
    %v849 = vsel %vm846, %v848, %v844
    %v850 = vmul.f32 1.0, %v849
    %v851 = vmul.f32 %v830, %v701
    %v852 = vmul.f32 %v815, %v831
    %v853 = vadd.f32 %v851, %v852
    %v854 = vtanh.pop %v853
    %v855 = vmul.f32 %v850, %v854
    %s856 = scalar_lea.vmem [#allocation2], 64
    %v857 = vld [vmem:[%s856] sm:$0xff]
    %v858 = vld [vmem:[%s856 + $0x8] sm:$0xff]
    %v859 = vld [vmem:[%s856 + $0x10] sm:$0xff]
    %v860 = vld [vmem:[%s856 + $0x18] sm:$0xff]
    %861 = vmatpush.msra.mxu0 %v181
    %862 = vmatpush.msra.mxu0 %v177
    %863 = vmatpush.msra.mxu0 %v173
    %864 = vmatpush.msra.mxu0 %v169
    %865 = vmatpush.msra.mxu0 %v165
    %866 = vmatpush.msra.mxu0 %v161
    %867 = vmatpush.msra.mxu0 %v157
    %868 = vmatpush.msra.mxu0 %v153
    %869 = vmatpush.msra.mxu0 %v149
    %870 = vmatpush.msra.mxu0 %v145
    %871 = vmatpush.msra.mxu0 %v141
    %872 = vmatpush.msra.mxu0 %v137
    %873 = vmatpush.msra.mxu0 %v133
    %874 = vmatpush.msra.mxu0 %v129
    %875 = vmatpush.msra.mxu0 %v125
    %876 = vmatpush.msra.mxu0 %v121
    %877 = vmatmul.f32.gmra.mxu0 %v855
    %v878 = vpop.f32.mrf.mxu0
    %v879 = vadd.f32 0.0, %v878
    %880 = vdwg.mxu0
    %881 = vmatpush.msra.mxu0 %v182
    %882 = vmatpush.msra.mxu0 %v178
    %883 = vmatpush.msra.mxu0 %v174
    %884 = vmatpush.msra.mxu0 %v170
    %885 = vmatpush.msra.mxu0 %v166
    %886 = vmatpush.msra.mxu0 %v162
    %887 = vmatpush.msra.mxu0 %v158
    %888 = vmatpush.msra.mxu0 %v154
    %889 = vmatpush.msra.mxu0 %v150
    %890 = vmatpush.msra.mxu0 %v146
    %891 = vmatpush.msra.mxu0 %v142
    %892 = vmatpush.msra.mxu0 %v138
    %893 = vmatpush.msra.mxu0 %v134
    %894 = vmatpush.msra.mxu0 %v130
    %895 = vmatpush.msra.mxu0 %v126
    %896 = vmatpush.msra.mxu0 %v122
    %897 = vmatmul.f32.gmra.mxu0 %v855
    %v898 = vpop.f32.mrf.mxu0
    %v899 = vadd.f32 0.0, %v898
    %900 = vdwg.mxu0
    %901 = vmatpush.msra.mxu0 %v183
    %902 = vmatpush.msra.mxu0 %v179
    %903 = vmatpush.msra.mxu0 %v175
    %904 = vmatpush.msra.mxu0 %v171
    %905 = vmatpush.msra.mxu0 %v167
    %906 = vmatpush.msra.mxu0 %v163
    %907 = vmatpush.msra.mxu0 %v159
    %908 = vmatpush.msra.mxu0 %v155
    %909 = vmatpush.msra.mxu0 %v151
    %910 = vmatpush.msra.mxu0 %v147
    %911 = vmatpush.msra.mxu0 %v143
    %912 = vmatpush.msra.mxu0 %v139
    %913 = vmatpush.msra.mxu0 %v135
    %914 = vmatpush.msra.mxu0 %v131
    %915 = vmatpush.msra.mxu0 %v127
    %916 = vmatpush.msra.mxu0 %v123
    %917 = vmatmul.f32.gmra.mxu0 %v855
    %v918 = vpop.f32.mrf.mxu0
    %v919 = vadd.f32 0.0, %v918
    %920 = vdwg.mxu0
    %921 = vmatpush.msra.mxu0 %v184
    %922 = vmatpush.msra.mxu0 %v180
    %923 = vmatpush.msra.mxu0 %v176
    %924 = vmatpush.msra.mxu0 %v172
    %925 = vmatpush.msra.mxu0 %v168
    %926 = vmatpush.msra.mxu0 %v164
    %927 = vmatpush.msra.mxu0 %v160
    %928 = vmatpush.msra.mxu0 %v156
    %929 = vmatpush.msra.mxu0 %v152
    %930 = vmatpush.msra.mxu0 %v148
    %931 = vmatpush.msra.mxu0 %v144
    %932 = vmatpush.msra.mxu0 %v140
    %933 = vmatpush.msra.mxu0 %v136
    %934 = vmatpush.msra.mxu0 %v132
    %935 = vmatpush.msra.mxu0 %v128
    %936 = vmatpush.msra.mxu0 %v124
    %937 = vmatmul.f32.gmra.mxu0 %v855
    %v938 = vpop.f32.mrf.mxu0
    %v939 = vadd.f32 0.0, %v938
    %940 = vdwg.mxu0
    %v941 = vadd.f32 %v857, %v879
    %v942 = vadd.f32 %v858, %v899
    %v943 = vadd.f32 %v859, %v919
    %v944 = vadd.f32 %v860, %v939
    %v945 = vxor.u32 %v941, 2147483648
    %v946 = vxor.u32 %v942, 2147483648
    %v947 = vmul.f32 %v945, 1.442695
    %v948 = vpow.pop %v947
    %v949 = vmul.f32 %v946, 1.442695
    %v950 = vpow.pop %v949
    %v951 = vadd.f32 %v948, 1.0
    %v952 = vadd.f32 %v950, 1.0
    %v953 = vrcp.pop %v951
    %v954 = vmul.f32 %v951, %v953
    %v955 = vsub.f32 1.0, %v954
    %v956 = vmul.f32 %v953, %v955
    %v957 = vadd.f32 %v953, %v956
    %vm958 = vweird.f32 %v951
    %vm959 = vweird.f32 %v953
    %vm960 = vmor %vm958, %vm959
    %v961 = vsel %vm960, %v953, %v957
    %v962 = vand.u32 2147483647, %v951
    %vm963 = vcmp.eq.f32.partialorder %v962, 8.507059e+37
    %v964 = vand.u32 %v951, 2147483648
    %v965 = vor.u32 1.1754944e-38, %v964
    %v966 = vsel %vm963, %v965, %v961
    %v967 = vmul.f32 1.0, %v966
    %v968 = vrcp.pop %v952
    %v969 = vmul.f32 %v952, %v968
    %v970 = vsub.f32 1.0, %v969
    %v971 = vmul.f32 %v968, %v970
    %v972 = vadd.f32 %v968, %v971
    %vm973 = vweird.f32 %v952
    %vm974 = vweird.f32 %v968
    %vm975 = vmor %vm973, %vm974
    %v976 = vsel %vm975, %v968, %v972
    %v977 = vand.u32 2147483647, %v952
    %vm978 = vcmp.eq.f32.partialorder %v977, 8.507059e+37
    %v979 = vand.u32 %v952, 2147483648
    %v980 = vor.u32 1.1754944e-38, %v979
    %v981 = vsel %vm978, %v980, %v976
    %v982 = vmul.f32 1.0, %v981
    %v983 = vtanh.pop %v943
    %v984 = vxor.u32 %v944, 2147483648
    %v985 = vmul.f32 %v984, 1.442695
    %v986 = vpow.pop %v985
    %v987 = vadd.f32 %v986, 1.0
    %v988 = vrcp.pop %v987
    %v989 = vmul.f32 %v987, %v988
    %v990 = vsub.f32 1.0, %v989
    %v991 = vmul.f32 %v988, %v990
    %v992 = vadd.f32 %v988, %v991
    %vm993 = vweird.f32 %v987
    %vm994 = vweird.f32 %v988
    %vm995 = vmor %vm993, %vm994
    %v996 = vsel %vm995, %v988, %v992
    %v997 = vand.u32 2147483647, %v987
    %vm998 = vcmp.eq.f32.partialorder %v997, 8.507059e+37
    %v999 = vand.u32 %v987, 2147483648
    %v1000 = vor.u32 1.1754944e-38, %v999
    %v1001 = vsel %vm998, %v1000, %v996
    %v1002 = vmul.f32 1.0, %v1001
    %v1003 = vmul.f32 %v982, %v853
    %v1004 = vmul.f32 %v967, %v983
    %v1005 = vadd.f32 %v1003, %v1004
    %v1006 = vtanh.pop %v1005
    %v1007 = vmul.f32 %v1002, %v1006
    %s1008 = scalar_lea.vmem [#allocation2], 96
    %v1009 = vld [vmem:[%s1008] sm:$0xff]
    %v1010 = vld [vmem:[%s1008 + $0x8] sm:$0xff]
    %v1011 = vld [vmem:[%s1008 + $0x10] sm:$0xff]
    %v1012 = vld [vmem:[%s1008 + $0x18] sm:$0xff]
    %1013 = vmatpush.msra.mxu0 %v181
    %1014 = vmatpush.msra.mxu0 %v177
    %1015 = vmatpush.msra.mxu0 %v173
    %1016 = vmatpush.msra.mxu0 %v169
    %1017 = vmatpush.msra.mxu0 %v165
    %1018 = vmatpush.msra.mxu0 %v161
    %1019 = vmatpush.msra.mxu0 %v157
    %1020 = vmatpush.msra.mxu0 %v153
    %1021 = vmatpush.msra.mxu0 %v149
    %1022 = vmatpush.msra.mxu0 %v145
    %1023 = vmatpush.msra.mxu0 %v141
    %1024 = vmatpush.msra.mxu0 %v137
    %1025 = vmatpush.msra.mxu0 %v133
    %1026 = vmatpush.msra.mxu0 %v129
    %1027 = vmatpush.msra.mxu0 %v125
    %1028 = vmatpush.msra.mxu0 %v121
    %1029 = vmatmul.f32.gmra.mxu0 %v1007
    %v1030 = vpop.f32.mrf.mxu0
    %v1031 = vadd.f32 0.0, %v1030
    %1032 = vdwg.mxu0
    %1033 = vmatpush.msra.mxu0 %v182
    %1034 = vmatpush.msra.mxu0 %v178
    %1035 = vmatpush.msra.mxu0 %v174
    %1036 = vmatpush.msra.mxu0 %v170
    %1037 = vmatpush.msra.mxu0 %v166
    %1038 = vmatpush.msra.mxu0 %v162
    %1039 = vmatpush.msra.mxu0 %v158
    %1040 = vmatpush.msra.mxu0 %v154
    %1041 = vmatpush.msra.mxu0 %v150
    %1042 = vmatpush.msra.mxu0 %v146
    %1043 = vmatpush.msra.mxu0 %v142
    %1044 = vmatpush.msra.mxu0 %v138
    %1045 = vmatpush.msra.mxu0 %v134
    %1046 = vmatpush.msra.mxu0 %v130
    %1047 = vmatpush.msra.mxu0 %v126
    %1048 = vmatpush.msra.mxu0 %v122
    %1049 = vmatmul.f32.gmra.mxu0 %v1007
    %v1050 = vpop.f32.mrf.mxu0
    %v1051 = vadd.f32 0.0, %v1050
    %1052 = vdwg.mxu0
    %1053 = vmatpush.msra.mxu0 %v183
    %1054 = vmatpush.msra.mxu0 %v179
    %1055 = vmatpush.msra.mxu0 %v175
    %1056 = vmatpush.msra.mxu0 %v171
    %1057 = vmatpush.msra.mxu0 %v167
    %1058 = vmatpush.msra.mxu0 %v163
    %1059 = vmatpush.msra.mxu0 %v159
    %1060 = vmatpush.msra.mxu0 %v155
    %1061 = vmatpush.msra.mxu0 %v151
    %1062 = vmatpush.msra.mxu0 %v147
    %1063 = vmatpush.msra.mxu0 %v143
    %1064 = vmatpush.msra.mxu0 %v139
    %1065 = vmatpush.msra.mxu0 %v135
    %1066 = vmatpush.msra.mxu0 %v131
    %1067 = vmatpush.msra.mxu0 %v127
    %1068 = vmatpush.msra.mxu0 %v123
    %1069 = vmatmul.f32.gmra.mxu0 %v1007
    %v1070 = vpop.f32.mrf.mxu0
    %v1071 = vadd.f32 0.0, %v1070
    %1072 = vdwg.mxu0
    %1073 = vmatpush.msra.mxu0 %v184
    %1074 = vmatpush.msra.mxu0 %v180
    %1075 = vmatpush.msra.mxu0 %v176
    %1076 = vmatpush.msra.mxu0 %v172
    %1077 = vmatpush.msra.mxu0 %v168
    %1078 = vmatpush.msra.mxu0 %v164
    %1079 = vmatpush.msra.mxu0 %v160
    %1080 = vmatpush.msra.mxu0 %v156
    %1081 = vmatpush.msra.mxu0 %v152
    %1082 = vmatpush.msra.mxu0 %v148
    %1083 = vmatpush.msra.mxu0 %v144
    %1084 = vmatpush.msra.mxu0 %v140
    %1085 = vmatpush.msra.mxu0 %v136
    %1086 = vmatpush.msra.mxu0 %v132
    %1087 = vmatpush.msra.mxu0 %v128
    %1088 = vmatpush.msra.mxu0 %v124
    %1089 = vmatmul.f32.gmra.mxu0 %v1007
    %v1090 = vpop.f32.mrf.mxu0
    %v1091 = vadd.f32 0.0, %v1090
    %1092 = vdwg.mxu0
    %v1093 = vadd.f32 %v1009, %v1031
    %v1094 = vadd.f32 %v1010, %v1051
    %v1095 = vadd.f32 %v1011, %v1071
    %v1096 = vadd.f32 %v1012, %v1091
    %v1097 = vxor.u32 %v1093, 2147483648
    %v1098 = vxor.u32 %v1094, 2147483648
    %v1099 = vmul.f32 %v1097, 1.442695
    %v1100 = vpow.pop %v1099
    %v1101 = vmul.f32 %v1098, 1.442695
    %v1102 = vpow.pop %v1101
    %v1103 = vadd.f32 %v1100, 1.0
    %v1104 = vadd.f32 %v1102, 1.0
    %v1105 = vrcp.pop %v1103
    %v1106 = vmul.f32 %v1103, %v1105
    %v1107 = vsub.f32 1.0, %v1106
    %v1108 = vmul.f32 %v1105, %v1107
    %v1109 = vadd.f32 %v1105, %v1108
    %vm1110 = vweird.f32 %v1103
    %vm1111 = vweird.f32 %v1105
    %vm1112 = vmor %vm1110, %vm1111
    %v1113 = vsel %vm1112, %v1105, %v1109
    %v1114 = vand.u32 2147483647, %v1103
    %vm1115 = vcmp.eq.f32.partialorder %v1114, 8.507059e+37
    %v1116 = vand.u32 %v1103, 2147483648
    %v1117 = vor.u32 1.1754944e-38, %v1116
    %v1118 = vsel %vm1115, %v1117, %v1113
    %v1119 = vmul.f32 1.0, %v1118
    %v1120 = vrcp.pop %v1104
    %v1121 = vmul.f32 %v1104, %v1120
    %v1122 = vsub.f32 1.0, %v1121
    %v1123 = vmul.f32 %v1120, %v1122
    %v1124 = vadd.f32 %v1120, %v1123
    %vm1125 = vweird.f32 %v1104
    %vm1126 = vweird.f32 %v1120
    %vm1127 = vmor %vm1125, %vm1126
    %v1128 = vsel %vm1127, %v1120, %v1124
    %v1129 = vand.u32 2147483647, %v1104
    %vm1130 = vcmp.eq.f32.partialorder %v1129, 8.507059e+37
    %v1131 = vand.u32 %v1104, 2147483648
    %v1132 = vor.u32 1.1754944e-38, %v1131
    %v1133 = vsel %vm1130, %v1132, %v1128
    %v1134 = vmul.f32 1.0, %v1133
    %v1135 = vtanh.pop %v1095
    %v1136 = vxor.u32 %v1096, 2147483648
    %v1137 = vmul.f32 %v1136, 1.442695
    %v1138 = vpow.pop %v1137
    %v1139 = vadd.f32 %v1138, 1.0
    %v1140 = vrcp.pop %v1139
    %v1141 = vmul.f32 %v1139, %v1140
    %v1142 = vsub.f32 1.0, %v1141
    %v1143 = vmul.f32 %v1140, %v1142
    %v1144 = vadd.f32 %v1140, %v1143
    %vm1145 = vweird.f32 %v1139
    %vm1146 = vweird.f32 %v1140
    %vm1147 = vmor %vm1145, %vm1146
    %v1148 = vsel %vm1147, %v1140, %v1144
    %v1149 = vand.u32 2147483647, %v1139
    %vm1150 = vcmp.eq.f32.partialorder %v1149, 8.507059e+37
    %v1151 = vand.u32 %v1139, 2147483648
    %v1152 = vor.u32 1.1754944e-38, %v1151
    %v1153 = vsel %vm1150, %v1152, %v1148
    %v1154 = vmul.f32 1.0, %v1153
    %v1155 = vmul.f32 %v1134, %v1005
    %v1156 = vmul.f32 %v1119, %v1135
    %v1157 = vadd.f32 %v1155, %v1156
    %v1158 = vtanh.pop %v1157
    %v1159 = vmul.f32 %v1154, %v1158
    %s1160 = scalar_lea.vmem [#allocation2], 128
    %v1161 = vld [vmem:[%s1160] sm:$0xff]
    %v1162 = vld [vmem:[%s1160 + $0x8] sm:$0xff]
    %v1163 = vld [vmem:[%s1160 + $0x10] sm:$0xff]
    %v1164 = vld [vmem:[%s1160 + $0x18] sm:$0xff]
    %1165 = vmatpush.msra.mxu0 %v181
    %1166 = vmatpush.msra.mxu0 %v177
    %1167 = vmatpush.msra.mxu0 %v173
    %1168 = vmatpush.msra.mxu0 %v169
    %1169 = vmatpush.msra.mxu0 %v165
    %1170 = vmatpush.msra.mxu0 %v161
    %1171 = vmatpush.msra.mxu0 %v157
    %1172 = vmatpush.msra.mxu0 %v153
    %1173 = vmatpush.msra.mxu0 %v149
    %1174 = vmatpush.msra.mxu0 %v145
    %1175 = vmatpush.msra.mxu0 %v141
    %1176 = vmatpush.msra.mxu0 %v137
    %1177 = vmatpush.msra.mxu0 %v133
    %1178 = vmatpush.msra.mxu0 %v129
    %1179 = vmatpush.msra.mxu0 %v125
    %1180 = vmatpush.msra.mxu0 %v121
    %1181 = vmatmul.f32.gmra.mxu0 %v1159
    %v1182 = vpop.f32.mrf.mxu0
    %v1183 = vadd.f32 0.0, %v1182
    %1184 = vdwg.mxu0
    %1185 = vmatpush.msra.mxu0 %v182
    %1186 = vmatpush.msra.mxu0 %v178
    %1187 = vmatpush.msra.mxu0 %v174
    %1188 = vmatpush.msra.mxu0 %v170
    %1189 = vmatpush.msra.mxu0 %v166
    %1190 = vmatpush.msra.mxu0 %v162
    %1191 = vmatpush.msra.mxu0 %v158
    %1192 = vmatpush.msra.mxu0 %v154
    %1193 = vmatpush.msra.mxu0 %v150
    %1194 = vmatpush.msra.mxu0 %v146
    %1195 = vmatpush.msra.mxu0 %v142
    %1196 = vmatpush.msra.mxu0 %v138
    %1197 = vmatpush.msra.mxu0 %v134
    %1198 = vmatpush.msra.mxu0 %v130
    %1199 = vmatpush.msra.mxu0 %v126
    %1200 = vmatpush.msra.mxu0 %v122
    %1201 = vmatmul.f32.gmra.mxu0 %v1159
    %v1202 = vpop.f32.mrf.mxu0
    %v1203 = vadd.f32 0.0, %v1202
    %1204 = vdwg.mxu0
    %1205 = vmatpush.msra.mxu0 %v183
    %1206 = vmatpush.msra.mxu0 %v179
    %1207 = vmatpush.msra.mxu0 %v175
    %1208 = vmatpush.msra.mxu0 %v171
    %1209 = vmatpush.msra.mxu0 %v167
    %1210 = vmatpush.msra.mxu0 %v163
    %1211 = vmatpush.msra.mxu0 %v159
    %1212 = vmatpush.msra.mxu0 %v155
    %1213 = vmatpush.msra.mxu0 %v151
    %1214 = vmatpush.msra.mxu0 %v147
    %1215 = vmatpush.msra.mxu0 %v143
    %1216 = vmatpush.msra.mxu0 %v139
    %1217 = vmatpush.msra.mxu0 %v135
    %1218 = vmatpush.msra.mxu0 %v131
    %1219 = vmatpush.msra.mxu0 %v127
    %1220 = vmatpush.msra.mxu0 %v123
    %1221 = vmatmul.f32.gmra.mxu0 %v1159
    %v1222 = vpop.f32.mrf.mxu0
    %v1223 = vadd.f32 0.0, %v1222
    %1224 = vdwg.mxu0
    %1225 = vmatpush.msra.mxu0 %v184
    %1226 = vmatpush.msra.mxu0 %v180
    %1227 = vmatpush.msra.mxu0 %v176
    %1228 = vmatpush.msra.mxu0 %v172
    %1229 = vmatpush.msra.mxu0 %v168
    %1230 = vmatpush.msra.mxu0 %v164
    %1231 = vmatpush.msra.mxu0 %v160
    %1232 = vmatpush.msra.mxu0 %v156
    %1233 = vmatpush.msra.mxu0 %v152
    %1234 = vmatpush.msra.mxu0 %v148
    %1235 = vmatpush.msra.mxu0 %v144
    %1236 = vmatpush.msra.mxu0 %v140
    %1237 = vmatpush.msra.mxu0 %v136
    %1238 = vmatpush.msra.mxu0 %v132
    %1239 = vmatpush.msra.mxu0 %v128
    %1240 = vmatpush.msra.mxu0 %v124
    %1241 = vmatmul.f32.gmra.mxu0 %v1159
    %v1242 = vpop.f32.mrf.mxu0
    %v1243 = vadd.f32 0.0, %v1242
    %1244 = vdwg.mxu0
    %v1245 = vadd.f32 %v1161, %v1183
    %v1246 = vadd.f32 %v1162, %v1203
    %v1247 = vadd.f32 %v1163, %v1223
    %v1248 = vadd.f32 %v1164, %v1243
    %v1249 = vxor.u32 %v1245, 2147483648
    %v1250 = vxor.u32 %v1246, 2147483648
    %v1251 = vmul.f32 %v1249, 1.442695
    %v1252 = vpow.pop %v1251
    %v1253 = vmul.f32 %v1250, 1.442695
    %v1254 = vpow.pop %v1253
    %v1255 = vadd.f32 %v1252, 1.0
    %v1256 = vadd.f32 %v1254, 1.0
    %v1257 = vrcp.pop %v1255
    %v1258 = vmul.f32 %v1255, %v1257
    %v1259 = vsub.f32 1.0, %v1258
    %v1260 = vmul.f32 %v1257, %v1259
    %v1261 = vadd.f32 %v1257, %v1260
    %vm1262 = vweird.f32 %v1255
    %vm1263 = vweird.f32 %v1257
    %vm1264 = vmor %vm1262, %vm1263
    %v1265 = vsel %vm1264, %v1257, %v1261
    %v1266 = vand.u32 2147483647, %v1255
    %vm1267 = vcmp.eq.f32.partialorder %v1266, 8.507059e+37
    %v1268 = vand.u32 %v1255, 2147483648
    %v1269 = vor.u32 1.1754944e-38, %v1268
    %v1270 = vsel %vm1267, %v1269, %v1265
    %v1271 = vmul.f32 1.0, %v1270
    %v1272 = vrcp.pop %v1256
    %v1273 = vmul.f32 %v1256, %v1272
    %v1274 = vsub.f32 1.0, %v1273
    %v1275 = vmul.f32 %v1272, %v1274
    %v1276 = vadd.f32 %v1272, %v1275
    %vm1277 = vweird.f32 %v1256
    %vm1278 = vweird.f32 %v1272
    %vm1279 = vmor %vm1277, %vm1278
    %v1280 = vsel %vm1279, %v1272, %v1276
    %v1281 = vand.u32 2147483647, %v1256
    %vm1282 = vcmp.eq.f32.partialorder %v1281, 8.507059e+37
    %v1283 = vand.u32 %v1256, 2147483648
    %v1284 = vor.u32 1.1754944e-38, %v1283
    %v1285 = vsel %vm1282, %v1284, %v1280
    %v1286 = vmul.f32 1.0, %v1285
    %v1287 = vtanh.pop %v1247
    %v1288 = vxor.u32 %v1248, 2147483648
    %v1289 = vmul.f32 %v1288, 1.442695
    %v1290 = vpow.pop %v1289
    %v1291 = vadd.f32 %v1290, 1.0
    %v1292 = vrcp.pop %v1291
    %v1293 = vmul.f32 %v1291, %v1292
    %v1294 = vsub.f32 1.0, %v1293
    %v1295 = vmul.f32 %v1292, %v1294
    %v1296 = vadd.f32 %v1292, %v1295
    %vm1297 = vweird.f32 %v1291
    %vm1298 = vweird.f32 %v1292
    %vm1299 = vmor %vm1297, %vm1298
    %v1300 = vsel %vm1299, %v1292, %v1296
    %v1301 = vand.u32 2147483647, %v1291
    %vm1302 = vcmp.eq.f32.partialorder %v1301, 8.507059e+37
    %v1303 = vand.u32 %v1291, 2147483648
    %v1304 = vor.u32 1.1754944e-38, %v1303
    %v1305 = vsel %vm1302, %v1304, %v1300
    %v1306 = vmul.f32 1.0, %v1305
    %v1307 = vmul.f32 %v1286, %v1157
    %v1308 = vmul.f32 %v1271, %v1287
    %v1309 = vadd.f32 %v1307, %v1308
    %v1310 = vtanh.pop %v1309
    %v1311 = vmul.f32 %v1306, %v1310
    %s1312 = scalar_lea.vmem [#allocation2], 160
    %v1313 = vld [vmem:[%s1312] sm:$0xff]
    %v1314 = vld [vmem:[%s1312 + $0x8] sm:$0xff]
    %v1315 = vld [vmem:[%s1312 + $0x10] sm:$0xff]
    %v1316 = vld [vmem:[%s1312 + $0x18] sm:$0xff]
    %1317 = vmatpush.msra.mxu0 %v181
    %1318 = vmatpush.msra.mxu0 %v177
    %1319 = vmatpush.msra.mxu0 %v173
    %1320 = vmatpush.msra.mxu0 %v169
    %1321 = vmatpush.msra.mxu0 %v165
    %1322 = vmatpush.msra.mxu0 %v161
    %1323 = vmatpush.msra.mxu0 %v157
    %1324 = vmatpush.msra.mxu0 %v153
    %1325 = vmatpush.msra.mxu0 %v149
    %1326 = vmatpush.msra.mxu0 %v145
    %1327 = vmatpush.msra.mxu0 %v141
    %1328 = vmatpush.msra.mxu0 %v137
    %1329 = vmatpush.msra.mxu0 %v133
    %1330 = vmatpush.msra.mxu0 %v129
    %1331 = vmatpush.msra.mxu0 %v125
    %1332 = vmatpush.msra.mxu0 %v121
    %1333 = vmatmul.f32.gmra.mxu0 %v1311
    %v1334 = vpop.f32.mrf.mxu0
    %v1335 = vadd.f32 0.0, %v1334
    %1336 = vdwg.mxu0
    %1337 = vmatpush.msra.mxu0 %v182
    %1338 = vmatpush.msra.mxu0 %v178
    %1339 = vmatpush.msra.mxu0 %v174
    %1340 = vmatpush.msra.mxu0 %v170
    %1341 = vmatpush.msra.mxu0 %v166
    %1342 = vmatpush.msra.mxu0 %v162
    %1343 = vmatpush.msra.mxu0 %v158
    %1344 = vmatpush.msra.mxu0 %v154
    %1345 = vmatpush.msra.mxu0 %v150
    %1346 = vmatpush.msra.mxu0 %v146
    %1347 = vmatpush.msra.mxu0 %v142
    %1348 = vmatpush.msra.mxu0 %v138
    %1349 = vmatpush.msra.mxu0 %v134
    %1350 = vmatpush.msra.mxu0 %v130
    %1351 = vmatpush.msra.mxu0 %v126
    %1352 = vmatpush.msra.mxu0 %v122
    %1353 = vmatmul.f32.gmra.mxu0 %v1311
    %v1354 = vpop.f32.mrf.mxu0
    %v1355 = vadd.f32 0.0, %v1354
    %1356 = vdwg.mxu0
    %1357 = vmatpush.msra.mxu0 %v183
    %1358 = vmatpush.msra.mxu0 %v179
    %1359 = vmatpush.msra.mxu0 %v175
    %1360 = vmatpush.msra.mxu0 %v171
    %1361 = vmatpush.msra.mxu0 %v167
    %1362 = vmatpush.msra.mxu0 %v163
    %1363 = vmatpush.msra.mxu0 %v159
    %1364 = vmatpush.msra.mxu0 %v155
    %1365 = vmatpush.msra.mxu0 %v151
    %1366 = vmatpush.msra.mxu0 %v147
    %1367 = vmatpush.msra.mxu0 %v143
    %1368 = vmatpush.msra.mxu0 %v139
    %1369 = vmatpush.msra.mxu0 %v135
    %1370 = vmatpush.msra.mxu0 %v131
    %1371 = vmatpush.msra.mxu0 %v127
    %1372 = vmatpush.msra.mxu0 %v123
    %1373 = vmatmul.f32.gmra.mxu0 %v1311
    %v1374 = vpop.f32.mrf.mxu0
    %v1375 = vadd.f32 0.0, %v1374
    %1376 = vdwg.mxu0
    %1377 = vmatpush.msra.mxu0 %v184
    %1378 = vmatpush.msra.mxu0 %v180
    %1379 = vmatpush.msra.mxu0 %v176
    %1380 = vmatpush.msra.mxu0 %v172
    %1381 = vmatpush.msra.mxu0 %v168
    %1382 = vmatpush.msra.mxu0 %v164
    %1383 = vmatpush.msra.mxu0 %v160
    %1384 = vmatpush.msra.mxu0 %v156
    %1385 = vmatpush.msra.mxu0 %v152
    %1386 = vmatpush.msra.mxu0 %v148
    %1387 = vmatpush.msra.mxu0 %v144
    %1388 = vmatpush.msra.mxu0 %v140
    %1389 = vmatpush.msra.mxu0 %v136
    %1390 = vmatpush.msra.mxu0 %v132
    %1391 = vmatpush.msra.mxu0 %v128
    %1392 = vmatpush.msra.mxu0 %v124
    %1393 = vmatmul.f32.gmra.mxu0 %v1311
    %v1394 = vpop.f32.mrf.mxu0
    %v1395 = vadd.f32 0.0, %v1394
    %1396 = vdwg.mxu0
    %v1397 = vadd.f32 %v1313, %v1335
    %v1398 = vadd.f32 %v1314, %v1355
    %v1399 = vadd.f32 %v1315, %v1375
    %v1400 = vadd.f32 %v1316, %v1395
    %v1401 = vxor.u32 %v1397, 2147483648
    %v1402 = vxor.u32 %v1398, 2147483648
    %v1403 = vmul.f32 %v1401, 1.442695
    %v1404 = vpow.pop %v1403
    %v1405 = vmul.f32 %v1402, 1.442695
    %v1406 = vpow.pop %v1405
    %v1407 = vadd.f32 %v1404, 1.0
    %v1408 = vadd.f32 %v1406, 1.0
    %v1409 = vrcp.pop %v1407
    %v1410 = vmul.f32 %v1407, %v1409
    %v1411 = vsub.f32 1.0, %v1410
    %v1412 = vmul.f32 %v1409, %v1411
    %v1413 = vadd.f32 %v1409, %v1412
    %vm1414 = vweird.f32 %v1407
    %vm1415 = vweird.f32 %v1409
    %vm1416 = vmor %vm1414, %vm1415
    %v1417 = vsel %vm1416, %v1409, %v1413
    %v1418 = vand.u32 2147483647, %v1407
    %vm1419 = vcmp.eq.f32.partialorder %v1418, 8.507059e+37
    %v1420 = vand.u32 %v1407, 2147483648
    %v1421 = vor.u32 1.1754944e-38, %v1420
    %v1422 = vsel %vm1419, %v1421, %v1417
    %v1423 = vmul.f32 1.0, %v1422
    %v1424 = vrcp.pop %v1408
    %v1425 = vmul.f32 %v1408, %v1424
    %v1426 = vsub.f32 1.0, %v1425
    %v1427 = vmul.f32 %v1424, %v1426
    %v1428 = vadd.f32 %v1424, %v1427
    %vm1429 = vweird.f32 %v1408
    %vm1430 = vweird.f32 %v1424
    %vm1431 = vmor %vm1429, %vm1430
    %v1432 = vsel %vm1431, %v1424, %v1428
    %v1433 = vand.u32 2147483647, %v1408
    %vm1434 = vcmp.eq.f32.partialorder %v1433, 8.507059e+37
    %v1435 = vand.u32 %v1408, 2147483648
    %v1436 = vor.u32 1.1754944e-38, %v1435
    %v1437 = vsel %vm1434, %v1436, %v1432
    %v1438 = vmul.f32 1.0, %v1437
    %v1439 = vtanh.pop %v1399
    %v1440 = vxor.u32 %v1400, 2147483648
    %v1441 = vmul.f32 %v1440, 1.442695
    %v1442 = vpow.pop %v1441
    %v1443 = vadd.f32 %v1442, 1.0
    %v1444 = vrcp.pop %v1443
    %v1445 = vmul.f32 %v1443, %v1444
    %v1446 = vsub.f32 1.0, %v1445
    %v1447 = vmul.f32 %v1444, %v1446
    %v1448 = vadd.f32 %v1444, %v1447
    %vm1449 = vweird.f32 %v1443
    %vm1450 = vweird.f32 %v1444
    %vm1451 = vmor %vm1449, %vm1450
    %v1452 = vsel %vm1451, %v1444, %v1448
    %v1453 = vand.u32 2147483647, %v1443
    %vm1454 = vcmp.eq.f32.partialorder %v1453, 8.507059e+37
    %v1455 = vand.u32 %v1443, 2147483648
    %v1456 = vor.u32 1.1754944e-38, %v1455
    %v1457 = vsel %vm1454, %v1456, %v1452
    %v1458 = vmul.f32 1.0, %v1457
    %v1459 = vmul.f32 %v1438, %v1309
    %v1460 = vmul.f32 %v1423, %v1439
    %v1461 = vadd.f32 %v1459, %v1460
    %v1462 = vtanh.pop %v1461
    %v1463 = vmul.f32 %v1458, %v1462
    %s1464 = scalar_lea.vmem [#allocation2], 192
    %v1465 = vld [vmem:[%s1464] sm:$0xff]
    %v1466 = vld [vmem:[%s1464 + $0x8] sm:$0xff]
    %v1467 = vld [vmem:[%s1464 + $0x10] sm:$0xff]
    %v1468 = vld [vmem:[%s1464 + $0x18] sm:$0xff]
    %1469 = vmatpush.msra.mxu0 %v181
    %1470 = vmatpush.msra.mxu0 %v177
    %1471 = vmatpush.msra.mxu0 %v173
    %1472 = vmatpush.msra.mxu0 %v169
    %1473 = vmatpush.msra.mxu0 %v165
    %1474 = vmatpush.msra.mxu0 %v161
    %1475 = vmatpush.msra.mxu0 %v157
    %1476 = vmatpush.msra.mxu0 %v153
    %1477 = vmatpush.msra.mxu0 %v149
    %1478 = vmatpush.msra.mxu0 %v145
    %1479 = vmatpush.msra.mxu0 %v141
    %1480 = vmatpush.msra.mxu0 %v137
    %1481 = vmatpush.msra.mxu0 %v133
    %1482 = vmatpush.msra.mxu0 %v129
    %1483 = vmatpush.msra.mxu0 %v125
    %1484 = vmatpush.msra.mxu0 %v121
    %1485 = vmatmul.f32.gmra.mxu0 %v1463
    %v1486 = vpop.f32.mrf.mxu0
    %v1487 = vadd.f32 0.0, %v1486
    %1488 = vdwg.mxu0
    %1489 = vmatpush.msra.mxu0 %v182
    %1490 = vmatpush.msra.mxu0 %v178
    %1491 = vmatpush.msra.mxu0 %v174
    %1492 = vmatpush.msra.mxu0 %v170
    %1493 = vmatpush.msra.mxu0 %v166
    %1494 = vmatpush.msra.mxu0 %v162
    %1495 = vmatpush.msra.mxu0 %v158
    %1496 = vmatpush.msra.mxu0 %v154
    %1497 = vmatpush.msra.mxu0 %v150
    %1498 = vmatpush.msra.mxu0 %v146
    %1499 = vmatpush.msra.mxu0 %v142
    %1500 = vmatpush.msra.mxu0 %v138
    %1501 = vmatpush.msra.mxu0 %v134
    %1502 = vmatpush.msra.mxu0 %v130
    %1503 = vmatpush.msra.mxu0 %v126
    %1504 = vmatpush.msra.mxu0 %v122
    %1505 = vmatmul.f32.gmra.mxu0 %v1463
    %v1506 = vpop.f32.mrf.mxu0
    %v1507 = vadd.f32 0.0, %v1506
    %1508 = vdwg.mxu0
    %1509 = vmatpush.msra.mxu0 %v183
    %1510 = vmatpush.msra.mxu0 %v179
    %1511 = vmatpush.msra.mxu0 %v175
    %1512 = vmatpush.msra.mxu0 %v171
    %1513 = vmatpush.msra.mxu0 %v167
    %1514 = vmatpush.msra.mxu0 %v163
    %1515 = vmatpush.msra.mxu0 %v159
    %1516 = vmatpush.msra.mxu0 %v155
    %1517 = vmatpush.msra.mxu0 %v151
    %1518 = vmatpush.msra.mxu0 %v147
    %1519 = vmatpush.msra.mxu0 %v143
    %1520 = vmatpush.msra.mxu0 %v139
    %1521 = vmatpush.msra.mxu0 %v135
    %1522 = vmatpush.msra.mxu0 %v131
    %1523 = vmatpush.msra.mxu0 %v127
    %1524 = vmatpush.msra.mxu0 %v123
    %1525 = vmatmul.f32.gmra.mxu0 %v1463
    %v1526 = vpop.f32.mrf.mxu0
    %v1527 = vadd.f32 0.0, %v1526
    %1528 = vdwg.mxu0
    %1529 = vmatpush.msra.mxu0 %v184
    %1530 = vmatpush.msra.mxu0 %v180
    %1531 = vmatpush.msra.mxu0 %v176
    %1532 = vmatpush.msra.mxu0 %v172
    %1533 = vmatpush.msra.mxu0 %v168
    %1534 = vmatpush.msra.mxu0 %v164
    %1535 = vmatpush.msra.mxu0 %v160
    %1536 = vmatpush.msra.mxu0 %v156
    %1537 = vmatpush.msra.mxu0 %v152
    %1538 = vmatpush.msra.mxu0 %v148
    %1539 = vmatpush.msra.mxu0 %v144
    %1540 = vmatpush.msra.mxu0 %v140
    %1541 = vmatpush.msra.mxu0 %v136
    %1542 = vmatpush.msra.mxu0 %v132
    %1543 = vmatpush.msra.mxu0 %v128
    %1544 = vmatpush.msra.mxu0 %v124
    %1545 = vmatmul.f32.gmra.mxu0 %v1463
    %v1546 = vpop.f32.mrf.mxu0
    %v1547 = vadd.f32 0.0, %v1546
    %1548 = vdwg.mxu0
    %v1549 = vadd.f32 %v1465, %v1487
    %v1550 = vadd.f32 %v1466, %v1507
    %v1551 = vadd.f32 %v1467, %v1527
    %v1552 = vadd.f32 %v1468, %v1547
    %v1553 = vxor.u32 %v1549, 2147483648
    %v1554 = vxor.u32 %v1550, 2147483648
    %v1555 = vmul.f32 %v1553, 1.442695
    %v1556 = vpow.pop %v1555
    %v1557 = vmul.f32 %v1554, 1.442695
    %v1558 = vpow.pop %v1557
    %v1559 = vadd.f32 %v1556, 1.0
    %v1560 = vadd.f32 %v1558, 1.0
    %v1561 = vrcp.pop %v1559
    %v1562 = vmul.f32 %v1559, %v1561
    %v1563 = vsub.f32 1.0, %v1562
    %v1564 = vmul.f32 %v1561, %v1563
    %v1565 = vadd.f32 %v1561, %v1564
    %vm1566 = vweird.f32 %v1559
    %vm1567 = vweird.f32 %v1561
    %vm1568 = vmor %vm1566, %vm1567
    %v1569 = vsel %vm1568, %v1561, %v1565
    %v1570 = vand.u32 2147483647, %v1559
    %vm1571 = vcmp.eq.f32.partialorder %v1570, 8.507059e+37
    %v1572 = vand.u32 %v1559, 2147483648
    %v1573 = vor.u32 1.1754944e-38, %v1572
    %v1574 = vsel %vm1571, %v1573, %v1569
    %v1575 = vmul.f32 1.0, %v1574
    %v1576 = vrcp.pop %v1560
    %v1577 = vmul.f32 %v1560, %v1576
    %v1578 = vsub.f32 1.0, %v1577
    %v1579 = vmul.f32 %v1576, %v1578
    %v1580 = vadd.f32 %v1576, %v1579
    %vm1581 = vweird.f32 %v1560
    %vm1582 = vweird.f32 %v1576
    %vm1583 = vmor %vm1581, %vm1582
    %v1584 = vsel %vm1583, %v1576, %v1580
    %v1585 = vand.u32 2147483647, %v1560
    %vm1586 = vcmp.eq.f32.partialorder %v1585, 8.507059e+37
    %v1587 = vand.u32 %v1560, 2147483648
    %v1588 = vor.u32 1.1754944e-38, %v1587
    %v1589 = vsel %vm1586, %v1588, %v1584
    %v1590 = vmul.f32 1.0, %v1589
    %v1591 = vtanh.pop %v1551
    %v1592 = vxor.u32 %v1552, 2147483648
    %v1593 = vmul.f32 %v1592, 1.442695
    %v1594 = vpow.pop %v1593
    %v1595 = vadd.f32 %v1594, 1.0
    %v1596 = vrcp.pop %v1595
    %v1597 = vmul.f32 %v1595, %v1596
    %v1598 = vsub.f32 1.0, %v1597
    %v1599 = vmul.f32 %v1596, %v1598
    %v1600 = vadd.f32 %v1596, %v1599
    %vm1601 = vweird.f32 %v1595
    %vm1602 = vweird.f32 %v1596
    %vm1603 = vmor %vm1601, %vm1602
    %v1604 = vsel %vm1603, %v1596, %v1600
    %v1605 = vand.u32 2147483647, %v1595
    %vm1606 = vcmp.eq.f32.partialorder %v1605, 8.507059e+37
    %v1607 = vand.u32 %v1595, 2147483648
    %v1608 = vor.u32 1.1754944e-38, %v1607
    %v1609 = vsel %vm1606, %v1608, %v1604
    %v1610 = vmul.f32 1.0, %v1609
    %v1611 = vmul.f32 %v1590, %v1461
    %v1612 = vmul.f32 %v1575, %v1591
    %v1613 = vadd.f32 %v1611, %v1612
    %v1614 = vtanh.pop %v1613
    %v1615 = vmul.f32 %v1610, %v1614
    %s1616 = scalar_lea.vmem [#allocation2], 224
    %v1617 = vld [vmem:[%s1616] sm:$0xff]
    %v1618 = vld [vmem:[%s1616 + $0x8] sm:$0xff]
    %v1619 = vld [vmem:[%s1616 + $0x10] sm:$0xff]
    %v1620 = vld [vmem:[%s1616 + $0x18] sm:$0xff]
    %1621 = vmatpush.msra.mxu0 %v181
    %1622 = vmatpush.msra.mxu0 %v177
    %1623 = vmatpush.msra.mxu0 %v173
    %1624 = vmatpush.msra.mxu0 %v169
    %1625 = vmatpush.msra.mxu0 %v165
    %1626 = vmatpush.msra.mxu0 %v161
    %1627 = vmatpush.msra.mxu0 %v157
    %1628 = vmatpush.msra.mxu0 %v153
    %1629 = vmatpush.msra.mxu0 %v149
    %1630 = vmatpush.msra.mxu0 %v145
    %1631 = vmatpush.msra.mxu0 %v141
    %1632 = vmatpush.msra.mxu0 %v137
    %1633 = vmatpush.msra.mxu0 %v133
    %1634 = vmatpush.msra.mxu0 %v129
    %1635 = vmatpush.msra.mxu0 %v125
    %1636 = vmatpush.msra.mxu0 %v121
    %1637 = vmatmul.f32.gmra.mxu0 %v1615
    %v1638 = vpop.f32.mrf.mxu0
    %v1639 = vadd.f32 0.0, %v1638
    %1640 = vdwg.mxu0
    %1641 = vmatpush.msra.mxu0 %v182
    %1642 = vmatpush.msra.mxu0 %v178
    %1643 = vmatpush.msra.mxu0 %v174
    %1644 = vmatpush.msra.mxu0 %v170
    %1645 = vmatpush.msra.mxu0 %v166
    %1646 = vmatpush.msra.mxu0 %v162
    %1647 = vmatpush.msra.mxu0 %v158
    %1648 = vmatpush.msra.mxu0 %v154
    %1649 = vmatpush.msra.mxu0 %v150
    %1650 = vmatpush.msra.mxu0 %v146
    %1651 = vmatpush.msra.mxu0 %v142
    %1652 = vmatpush.msra.mxu0 %v138
    %1653 = vmatpush.msra.mxu0 %v134
    %1654 = vmatpush.msra.mxu0 %v130
    %1655 = vmatpush.msra.mxu0 %v126
    %1656 = vmatpush.msra.mxu0 %v122
    %1657 = vmatmul.f32.gmra.mxu0 %v1615
    %v1658 = vpop.f32.mrf.mxu0
    %v1659 = vadd.f32 0.0, %v1658
    %1660 = vdwg.mxu0
    %1661 = vmatpush.msra.mxu0 %v183
    %1662 = vmatpush.msra.mxu0 %v179
    %1663 = vmatpush.msra.mxu0 %v175
    %1664 = vmatpush.msra.mxu0 %v171
    %1665 = vmatpush.msra.mxu0 %v167
    %1666 = vmatpush.msra.mxu0 %v163
    %1667 = vmatpush.msra.mxu0 %v159
    %1668 = vmatpush.msra.mxu0 %v155
    %1669 = vmatpush.msra.mxu0 %v151
    %1670 = vmatpush.msra.mxu0 %v147
    %1671 = vmatpush.msra.mxu0 %v143
    %1672 = vmatpush.msra.mxu0 %v139
    %1673 = vmatpush.msra.mxu0 %v135
    %1674 = vmatpush.msra.mxu0 %v131
    %1675 = vmatpush.msra.mxu0 %v127
    %1676 = vmatpush.msra.mxu0 %v123
    %1677 = vmatmul.f32.gmra.mxu0 %v1615
    %v1678 = vpop.f32.mrf.mxu0
    %v1679 = vadd.f32 0.0, %v1678
    %1680 = vdwg.mxu0
    %1681 = vmatpush.msra.mxu0 %v184
    %1682 = vmatpush.msra.mxu0 %v180
    %1683 = vmatpush.msra.mxu0 %v176
    %1684 = vmatpush.msra.mxu0 %v172
    %1685 = vmatpush.msra.mxu0 %v168
    %1686 = vmatpush.msra.mxu0 %v164
    %1687 = vmatpush.msra.mxu0 %v160
    %1688 = vmatpush.msra.mxu0 %v156
    %1689 = vmatpush.msra.mxu0 %v152
    %1690 = vmatpush.msra.mxu0 %v148
    %1691 = vmatpush.msra.mxu0 %v144
    %1692 = vmatpush.msra.mxu0 %v140
    %1693 = vmatpush.msra.mxu0 %v136
    %1694 = vmatpush.msra.mxu0 %v132
    %1695 = vmatpush.msra.mxu0 %v128
    %1696 = vmatpush.msra.mxu0 %v124
    %1697 = vmatmul.f32.gmra.mxu0 %v1615
    %v1698 = vpop.f32.mrf.mxu0
    %v1699 = vadd.f32 0.0, %v1698
    %1700 = vdwg.mxu0
    %v1701 = vadd.f32 %v1617, %v1639
    %v1702 = vadd.f32 %v1618, %v1659
    %v1703 = vadd.f32 %v1619, %v1679
    %v1704 = vadd.f32 %v1620, %v1699
    %v1705 = vxor.u32 %v1701, 2147483648
    %v1706 = vxor.u32 %v1702, 2147483648
    %v1707 = vmul.f32 %v1705, 1.442695
    %v1708 = vpow.pop %v1707
    %v1709 = vmul.f32 %v1706, 1.442695
    %v1710 = vpow.pop %v1709
    %v1711 = vadd.f32 %v1708, 1.0
    %v1712 = vadd.f32 %v1710, 1.0
    %v1713 = vrcp.pop %v1711
    %v1714 = vmul.f32 %v1711, %v1713
    %v1715 = vsub.f32 1.0, %v1714
    %v1716 = vmul.f32 %v1713, %v1715
    %v1717 = vadd.f32 %v1713, %v1716
    %vm1718 = vweird.f32 %v1711
    %vm1719 = vweird.f32 %v1713
    %vm1720 = vmor %vm1718, %vm1719
    %v1721 = vsel %vm1720, %v1713, %v1717
    %v1722 = vand.u32 2147483647, %v1711
    %vm1723 = vcmp.eq.f32.partialorder %v1722, 8.507059e+37
    %v1724 = vand.u32 %v1711, 2147483648
    %v1725 = vor.u32 1.1754944e-38, %v1724
    %v1726 = vsel %vm1723, %v1725, %v1721
    %v1727 = vmul.f32 1.0, %v1726
    %v1728 = vrcp.pop %v1712
    %v1729 = vmul.f32 %v1712, %v1728
    %v1730 = vsub.f32 1.0, %v1729
    %v1731 = vmul.f32 %v1728, %v1730
    %v1732 = vadd.f32 %v1728, %v1731
    %vm1733 = vweird.f32 %v1712
    %vm1734 = vweird.f32 %v1728
    %vm1735 = vmor %vm1733, %vm1734
    %v1736 = vsel %vm1735, %v1728, %v1732
    %v1737 = vand.u32 2147483647, %v1712
    %vm1738 = vcmp.eq.f32.partialorder %v1737, 8.507059e+37
    %v1739 = vand.u32 %v1712, 2147483648
    %v1740 = vor.u32 1.1754944e-38, %v1739
    %v1741 = vsel %vm1738, %v1740, %v1736
    %v1742 = vmul.f32 1.0, %v1741
    %v1743 = vtanh.pop %v1703
    %v1744 = vxor.u32 %v1704, 2147483648
    %v1745 = vmul.f32 %v1744, 1.442695
    %v1746 = vpow.pop %v1745
    %v1747 = vadd.f32 %v1746, 1.0
    %v1748 = vrcp.pop %v1747
    %v1749 = vmul.f32 %v1747, %v1748
    %v1750 = vsub.f32 1.0, %v1749
    %v1751 = vmul.f32 %v1748, %v1750
    %v1752 = vadd.f32 %v1748, %v1751
    %vm1753 = vweird.f32 %v1747
    %vm1754 = vweird.f32 %v1748
    %vm1755 = vmor %vm1753, %vm1754
    %v1756 = vsel %vm1755, %v1748, %v1752
    %v1757 = vand.u32 2147483647, %v1747
    %vm1758 = vcmp.eq.f32.partialorder %v1757, 8.507059e+37
    %v1759 = vand.u32 %v1747, 2147483648
    %v1760 = vor.u32 1.1754944e-38, %v1759
    %v1761 = vsel %vm1758, %v1760, %v1756
    %v1762 = vmul.f32 1.0, %v1761
    %v1763 = vmul.f32 %v1742, %v1613
    %v1764 = vmul.f32 %v1727, %v1743
    %v1765 = vadd.f32 %v1763, %v1764
    %v1766 = vtanh.pop %v1765
    %v1767 = vmul.f32 %v1762, %v1766
    %v1769 = vperm.slane %v314, 0
    %v1770 = vperm.slane %v314, 1
    %v1771 = vperm.slane %v314, 2
    %v1772 = vperm.slane %v314, 3
    %1777 = vmatpush.msra.mxu0 %v246
    %1778 = vmatpush.msra.mxu0 %v242
    %1779 = vmatpush.msra.mxu0 %v238
    %1780 = vmatpush.msra.mxu0 %v234
    %1781 = vmatpush.msra.mxu0 %v230
    %1782 = vmatpush.msra.mxu0 %v226
    %1783 = vmatpush.msra.mxu0 %v222
    %1784 = vmatpush.msra.mxu0 %v218
    %1785 = vmatpush.msra.mxu0 %v214
    %1786 = vmatpush.msra.mxu0 %v210
    %1787 = vmatpush.msra.mxu0 %v206
    %1788 = vmatpush.msra.mxu0 %v202
    %1789 = vmatpush.msra.mxu0 %v198
    %1790 = vmatpush.msra.mxu0 %v194
    %1791 = vmatpush.msra.mxu0 %v190
    %1792 = vmatpush.msra.mxu0 %v186
    %1793 = vmatmul.f32.gmra.mxu0 %v1767
    %v1794 = vpop.f32.mrf.mxu0
    %v1795 = vadd.f32 %v1769, %v1794
    %1796 = vdwg.mxu0
    %1797 = vmatpush.msra.mxu0 %v247
    %1798 = vmatpush.msra.mxu0 %v243
    %1799 = vmatpush.msra.mxu0 %v239
    %1800 = vmatpush.msra.mxu0 %v235
    %1801 = vmatpush.msra.mxu0 %v231
    %1802 = vmatpush.msra.mxu0 %v227
    %1803 = vmatpush.msra.mxu0 %v223
    %1804 = vmatpush.msra.mxu0 %v219
    %1805 = vmatpush.msra.mxu0 %v215
    %1806 = vmatpush.msra.mxu0 %v211
    %1807 = vmatpush.msra.mxu0 %v207
    %1808 = vmatpush.msra.mxu0 %v203
    %1809 = vmatpush.msra.mxu0 %v199
    %1810 = vmatpush.msra.mxu0 %v195
    %1811 = vmatpush.msra.mxu0 %v191
    %1812 = vmatpush.msra.mxu0 %v187
    %1813 = vmatmul.f32.gmra.mxu0 %v1767
    %v1814 = vpop.f32.mrf.mxu0
    %v1815 = vadd.f32 %v1770, %v1814
    %1816 = vdwg.mxu0
    %1817 = vmatpush.msra.mxu0 %v248
    %1818 = vmatpush.msra.mxu0 %v244
    %1819 = vmatpush.msra.mxu0 %v240
    %1820 = vmatpush.msra.mxu0 %v236
    %1821 = vmatpush.msra.mxu0 %v232
    %1822 = vmatpush.msra.mxu0 %v228
    %1823 = vmatpush.msra.mxu0 %v224
    %1824 = vmatpush.msra.mxu0 %v220
    %1825 = vmatpush.msra.mxu0 %v216
    %1826 = vmatpush.msra.mxu0 %v212
    %1827 = vmatpush.msra.mxu0 %v208
    %1828 = vmatpush.msra.mxu0 %v204
    %1829 = vmatpush.msra.mxu0 %v200
    %1830 = vmatpush.msra.mxu0 %v196
    %1831 = vmatpush.msra.mxu0 %v192
    %1832 = vmatpush.msra.mxu0 %v188
    %1833 = vmatmul.f32.gmra.mxu0 %v1767
    %v1834 = vpop.f32.mrf.mxu0
    %v1835 = vadd.f32 %v1771, %v1834
    %1836 = vdwg.mxu0
    %1837 = vmatpush.msra.mxu0 %v249
    %1838 = vmatpush.msra.mxu0 %v245
    %1839 = vmatpush.msra.mxu0 %v241
    %1840 = vmatpush.msra.mxu0 %v237
    %1841 = vmatpush.msra.mxu0 %v233
    %1842 = vmatpush.msra.mxu0 %v229
    %1843 = vmatpush.msra.mxu0 %v225
    %1844 = vmatpush.msra.mxu0 %v221
    %1845 = vmatpush.msra.mxu0 %v217
    %1846 = vmatpush.msra.mxu0 %v213
    %1847 = vmatpush.msra.mxu0 %v209
    %1848 = vmatpush.msra.mxu0 %v205
    %1849 = vmatpush.msra.mxu0 %v201
    %1850 = vmatpush.msra.mxu0 %v197
    %1851 = vmatpush.msra.mxu0 %v193
    %1852 = vmatpush.msra.mxu0 %v189
    %1853 = vmatmul.f32.gmra.mxu0 %v1767
    %v1854 = vpop.f32.mrf.mxu0
    %v1855 = vadd.f32 %v1772, %v1854
    %1856 = vdwg.mxu0
    %1857 = vmatpush.msra.mxu0 %v310
    %1858 = vmatpush.msra.mxu0 %v306
    %1859 = vmatpush.msra.mxu0 %v302
    %1860 = vmatpush.msra.mxu0 %v298
    %1861 = vmatpush.msra.mxu0 %v294
    %1862 = vmatpush.msra.mxu0 %v290
    %1863 = vmatpush.msra.mxu0 %v286
    %1864 = vmatpush.msra.mxu0 %v282
    %1865 = vmatpush.msra.mxu0 %v278
    %1866 = vmatpush.msra.mxu0 %v274
    %1867 = vmatpush.msra.mxu0 %v270
    %1868 = vmatpush.msra.mxu0 %v266
    %1869 = vmatpush.msra.mxu0 %v262
    %1870 = vmatpush.msra.mxu0 %v258
    %1871 = vmatpush.msra.mxu0 %v254
    %1872 = vmatpush.msra.mxu0 %v250
    %1873 = vmatmul.f32.gmra.mxu0 0.0
    %v1874 = vpop.f32.mrf.mxu0
    %v1875 = vadd.f32 0.0, %v1874
    %1876 = vdwg.mxu0
    %1877 = vmatpush.msra.mxu0 %v311
    %1878 = vmatpush.msra.mxu0 %v307
    %1879 = vmatpush.msra.mxu0 %v303
    %1880 = vmatpush.msra.mxu0 %v299
    %1881 = vmatpush.msra.mxu0 %v295
    %1882 = vmatpush.msra.mxu0 %v291
    %1883 = vmatpush.msra.mxu0 %v287
    %1884 = vmatpush.msra.mxu0 %v283
    %1885 = vmatpush.msra.mxu0 %v279
    %1886 = vmatpush.msra.mxu0 %v275
    %1887 = vmatpush.msra.mxu0 %v271
    %1888 = vmatpush.msra.mxu0 %v267
    %1889 = vmatpush.msra.mxu0 %v263
    %1890 = vmatpush.msra.mxu0 %v259
    %1891 = vmatpush.msra.mxu0 %v255
    %1892 = vmatpush.msra.mxu0 %v251
    %1893 = vmatmul.f32.gmra.mxu0 0.0
    %v1894 = vpop.f32.mrf.mxu0
    %v1895 = vadd.f32 0.0, %v1894
    %1896 = vdwg.mxu0
    %1897 = vmatpush.msra.mxu0 %v312
    %1898 = vmatpush.msra.mxu0 %v308
    %1899 = vmatpush.msra.mxu0 %v304
    %1900 = vmatpush.msra.mxu0 %v300
    %1901 = vmatpush.msra.mxu0 %v296
    %1902 = vmatpush.msra.mxu0 %v292
    %1903 = vmatpush.msra.mxu0 %v288
    %1904 = vmatpush.msra.mxu0 %v284
    %1905 = vmatpush.msra.mxu0 %v280
    %1906 = vmatpush.msra.mxu0 %v276
    %1907 = vmatpush.msra.mxu0 %v272
    %1908 = vmatpush.msra.mxu0 %v268
    %1909 = vmatpush.msra.mxu0 %v264
    %1910 = vmatpush.msra.mxu0 %v260
    %1911 = vmatpush.msra.mxu0 %v256
    %1912 = vmatpush.msra.mxu0 %v252
    %1913 = vmatmul.f32.gmra.mxu0 0.0
    %v1914 = vpop.f32.mrf.mxu0
    %v1915 = vadd.f32 0.0, %v1914
    %1916 = vdwg.mxu0
    %1917 = vmatpush.msra.mxu0 %v313
    %1918 = vmatpush.msra.mxu0 %v309
    %1919 = vmatpush.msra.mxu0 %v305
    %1920 = vmatpush.msra.mxu0 %v301
    %1921 = vmatpush.msra.mxu0 %v297
    %1922 = vmatpush.msra.mxu0 %v293
    %1923 = vmatpush.msra.mxu0 %v289
    %1924 = vmatpush.msra.mxu0 %v285
    %1925 = vmatpush.msra.mxu0 %v281
    %1926 = vmatpush.msra.mxu0 %v277
    %1927 = vmatpush.msra.mxu0 %v273
    %1928 = vmatpush.msra.mxu0 %v269
    %1929 = vmatpush.msra.mxu0 %v265
    %1930 = vmatpush.msra.mxu0 %v261
    %1931 = vmatpush.msra.mxu0 %v257
    %1932 = vmatpush.msra.mxu0 %v253
    %1933 = vmatmul.f32.gmra.mxu0 0.0
    %v1934 = vpop.f32.mrf.mxu0
    %v1935 = vadd.f32 0.0, %v1934
    %1936 = vdwg.mxu0
    %v1937 = vadd.f32 %v1795, %v1875
    %v1938 = vadd.f32 %v1815, %v1895
    %v1939 = vadd.f32 %v1835, %v1915
    %v1940 = vadd.f32 %v1855, %v1935
    %v1941 = vxor.u32 %v1937, 2147483648
    %v1942 = vxor.u32 %v1938, 2147483648
    %v1943 = vmul.f32 %v1941, 1.442695
    %v1944 = vpow.pop %v1943
    %v1945 = vmul.f32 %v1942, 1.442695
    %v1946 = vpow.pop %v1945
    %v1947 = vadd.f32 %v1944, 1.0
    %v1948 = vadd.f32 %v1946, 1.0
    %v1949 = vrcp.pop %v1947
    %v1950 = vmul.f32 %v1947, %v1949
    %v1951 = vsub.f32 1.0, %v1950
    %v1952 = vmul.f32 %v1949, %v1951
    %v1953 = vadd.f32 %v1949, %v1952
    %vm1954 = vweird.f32 %v1947
    %vm1955 = vweird.f32 %v1949
    %vm1956 = vmor %vm1954, %vm1955
    %v1957 = vsel %vm1956, %v1949, %v1953
    %v1958 = vand.u32 2147483647, %v1947
    %vm1959 = vcmp.eq.f32.partialorder %v1958, 8.507059e+37
    %v1960 = vand.u32 %v1947, 2147483648
    %v1961 = vor.u32 1.1754944e-38, %v1960
    %v1962 = vsel %vm1959, %v1961, %v1957
    %v1963 = vmul.f32 1.0, %v1962
    %v1964 = vrcp.pop %v1948
    %v1965 = vmul.f32 %v1948, %v1964
    %v1966 = vsub.f32 1.0, %v1965
    %v1967 = vmul.f32 %v1964, %v1966
    %v1968 = vadd.f32 %v1964, %v1967
    %vm1969 = vweird.f32 %v1948
    %vm1970 = vweird.f32 %v1964
    %vm1971 = vmor %vm1969, %vm1970
    %v1972 = vsel %vm1971, %v1964, %v1968
    %v1973 = vand.u32 2147483647, %v1948
    %vm1974 = vcmp.eq.f32.partialorder %v1973, 8.507059e+37
    %v1975 = vand.u32 %v1948, 2147483648
    %v1976 = vor.u32 1.1754944e-38, %v1975
    %v1977 = vsel %vm1974, %v1976, %v1972
    %v1978 = vmul.f32 1.0, %v1977
    %v1979 = vtanh.pop %v1939
    %v1980 = vxor.u32 %v1940, 2147483648
    %v1981 = vmul.f32 %v1980, 1.442695
    %v1982 = vpow.pop %v1981
    %v1983 = vadd.f32 %v1982, 1.0
    %v1984 = vrcp.pop %v1983
    %v1985 = vmul.f32 %v1983, %v1984
    %v1986 = vsub.f32 1.0, %v1985
    %v1987 = vmul.f32 %v1984, %v1986
    %v1988 = vadd.f32 %v1984, %v1987
    %vm1989 = vweird.f32 %v1983
    %vm1990 = vweird.f32 %v1984
    %vm1991 = vmor %vm1989, %vm1990
    %v1992 = vsel %vm1991, %v1984, %v1988
    %v1993 = vand.u32 2147483647, %v1983
    %vm1994 = vcmp.eq.f32.partialorder %v1993, 8.507059e+37
    %v1995 = vand.u32 %v1983, 2147483648
    %v1996 = vor.u32 1.1754944e-38, %v1995
    %v1997 = vsel %vm1994, %v1996, %v1992
    %v1998 = vmul.f32 1.0, %v1997
    %v1999 = vmul.f32 %v1978, 0.0
    %v2000 = vmul.f32 %v1963, %v1979
    %v2001 = vadd.f32 %v1999, %v2000
    %v2002 = vtanh.pop %v2001
    %v2003 = vmul.f32 %v1998, %v2002
    %2004 = vst [vmem:[#allocation14] sm:$0xff] %v2003
    %2005 = vmatpush.msra.mxu0 %v310
    %2006 = vmatpush.msra.mxu0 %v306
    %2007 = vmatpush.msra.mxu0 %v302
    %2008 = vmatpush.msra.mxu0 %v298
    %2009 = vmatpush.msra.mxu0 %v294
    %2010 = vmatpush.msra.mxu0 %v290
    %2011 = vmatpush.msra.mxu0 %v286
    %2012 = vmatpush.msra.mxu0 %v282
    %2013 = vmatpush.msra.mxu0 %v278
    %2014 = vmatpush.msra.mxu0 %v274
    %2015 = vmatpush.msra.mxu0 %v270
    %2016 = vmatpush.msra.mxu0 %v266
    %2017 = vmatpush.msra.mxu0 %v262
    %2018 = vmatpush.msra.mxu0 %v258
    %2019 = vmatpush.msra.mxu0 %v254
    %2020 = vmatpush.msra.mxu0 %v250
    %2021 = vmatmul.f32.gmra.mxu0 %v2003
    %v2022 = vpop.f32.mrf.mxu0
    %v2023 = vadd.f32 0.0, %v2022
    %2024 = vdwg.mxu0
    %2025 = vmatpush.msra.mxu0 %v311
    %2026 = vmatpush.msra.mxu0 %v307
    %2027 = vmatpush.msra.mxu0 %v303
    %2028 = vmatpush.msra.mxu0 %v299
    %2029 = vmatpush.msra.mxu0 %v295
    %2030 = vmatpush.msra.mxu0 %v291
    %2031 = vmatpush.msra.mxu0 %v287
    %2032 = vmatpush.msra.mxu0 %v283
    %2033 = vmatpush.msra.mxu0 %v279
    %2034 = vmatpush.msra.mxu0 %v275
    %2035 = vmatpush.msra.mxu0 %v271
    %2036 = vmatpush.msra.mxu0 %v267
    %2037 = vmatpush.msra.mxu0 %v263
    %2038 = vmatpush.msra.mxu0 %v259
    %2039 = vmatpush.msra.mxu0 %v255
    %2040 = vmatpush.msra.mxu0 %v251
    %2041 = vmatmul.f32.gmra.mxu0 %v2003
    %v2042 = vpop.f32.mrf.mxu0
    %v2043 = vadd.f32 0.0, %v2042
    %2044 = vdwg.mxu0
    %2045 = vmatpush.msra.mxu0 %v312
    %2046 = vmatpush.msra.mxu0 %v308
    %2047 = vmatpush.msra.mxu0 %v304
    %2048 = vmatpush.msra.mxu0 %v300
    %2049 = vmatpush.msra.mxu0 %v296
    %2050 = vmatpush.msra.mxu0 %v292
    %2051 = vmatpush.msra.mxu0 %v288
    %2052 = vmatpush.msra.mxu0 %v284
    %2053 = vmatpush.msra.mxu0 %v280
    %2054 = vmatpush.msra.mxu0 %v276
    %2055 = vmatpush.msra.mxu0 %v272
    %2056 = vmatpush.msra.mxu0 %v268
    %2057 = vmatpush.msra.mxu0 %v264
    %2058 = vmatpush.msra.mxu0 %v260
    %2059 = vmatpush.msra.mxu0 %v256
    %2060 = vmatpush.msra.mxu0 %v252
    %2061 = vmatmul.f32.gmra.mxu0 %v2003
    %v2062 = vpop.f32.mrf.mxu0
    %v2063 = vadd.f32 0.0, %v2062
    %2064 = vdwg.mxu0
    %2065 = vmatpush.msra.mxu0 %v313
    %2066 = vmatpush.msra.mxu0 %v309
    %2067 = vmatpush.msra.mxu0 %v305
    %2068 = vmatpush.msra.mxu0 %v301
    %2069 = vmatpush.msra.mxu0 %v297
    %2070 = vmatpush.msra.mxu0 %v293
    %2071 = vmatpush.msra.mxu0 %v289
    %2072 = vmatpush.msra.mxu0 %v285
    %2073 = vmatpush.msra.mxu0 %v281
    %2074 = vmatpush.msra.mxu0 %v277
    %2075 = vmatpush.msra.mxu0 %v273
    %2076 = vmatpush.msra.mxu0 %v269
    %2077 = vmatpush.msra.mxu0 %v265
    %2078 = vmatpush.msra.mxu0 %v261
    %2079 = vmatpush.msra.mxu0 %v257
    %2080 = vmatpush.msra.mxu0 %v253
    %2081 = vmatmul.f32.gmra.mxu0 %v2003
    %v2082 = vpop.f32.mrf.mxu0
    %v2083 = vadd.f32 0.0, %v2082
    %2084 = vdwg.mxu0
    %v2085 = vadd.f32 %v1795, %v2023
    %v2086 = vadd.f32 %v1815, %v2043
    %v2087 = vadd.f32 %v1835, %v2063
    %v2088 = vadd.f32 %v1855, %v2083
    %v2089 = vxor.u32 %v2085, 2147483648
    %v2090 = vxor.u32 %v2086, 2147483648
    %v2091 = vmul.f32 %v2089, 1.442695
    %v2092 = vpow.pop %v2091
    %v2093 = vmul.f32 %v2090, 1.442695
    %v2094 = vpow.pop %v2093
    %v2095 = vadd.f32 %v2092, 1.0
    %v2096 = vadd.f32 %v2094, 1.0
    %v2097 = vrcp.pop %v2095
    %v2098 = vmul.f32 %v2095, %v2097
    %v2099 = vsub.f32 1.0, %v2098
    %v2100 = vmul.f32 %v2097, %v2099
    %v2101 = vadd.f32 %v2097, %v2100
    %vm2102 = vweird.f32 %v2095
    %vm2103 = vweird.f32 %v2097
    %vm2104 = vmor %vm2102, %vm2103
    %v2105 = vsel %vm2104, %v2097, %v2101
    %v2106 = vand.u32 2147483647, %v2095
    %vm2107 = vcmp.eq.f32.partialorder %v2106, 8.507059e+37
    %v2108 = vand.u32 %v2095, 2147483648
    %v2109 = vor.u32 1.1754944e-38, %v2108
    %v2110 = vsel %vm2107, %v2109, %v2105
    %v2111 = vmul.f32 1.0, %v2110
    %v2112 = vrcp.pop %v2096
    %v2113 = vmul.f32 %v2096, %v2112
    %v2114 = vsub.f32 1.0, %v2113
    %v2115 = vmul.f32 %v2112, %v2114
    %v2116 = vadd.f32 %v2112, %v2115
    %vm2117 = vweird.f32 %v2096
    %vm2118 = vweird.f32 %v2112
    %vm2119 = vmor %vm2117, %vm2118
    %v2120 = vsel %vm2119, %v2112, %v2116
    %v2121 = vand.u32 2147483647, %v2096
    %vm2122 = vcmp.eq.f32.partialorder %v2121, 8.507059e+37
    %v2123 = vand.u32 %v2096, 2147483648
    %v2124 = vor.u32 1.1754944e-38, %v2123
    %v2125 = vsel %vm2122, %v2124, %v2120
    %v2126 = vmul.f32 1.0, %v2125
    %v2127 = vtanh.pop %v2087
    %v2128 = vxor.u32 %v2088, 2147483648
    %v2129 = vmul.f32 %v2128, 1.442695
    %v2130 = vpow.pop %v2129
    %v2131 = vadd.f32 %v2130, 1.0
    %v2132 = vrcp.pop %v2131
    %v2133 = vmul.f32 %v2131, %v2132
    %v2134 = vsub.f32 1.0, %v2133
    %v2135 = vmul.f32 %v2132, %v2134
    %v2136 = vadd.f32 %v2132, %v2135
    %vm2137 = vweird.f32 %v2131
    %vm2138 = vweird.f32 %v2132
    %vm2139 = vmor %vm2137, %vm2138
    %v2140 = vsel %vm2139, %v2132, %v2136
    %v2141 = vand.u32 2147483647, %v2131
    %vm2142 = vcmp.eq.f32.partialorder %v2141, 8.507059e+37
    %v2143 = vand.u32 %v2131, 2147483648
    %v2144 = vor.u32 1.1754944e-38, %v2143
    %v2145 = vsel %vm2142, %v2144, %v2140
    %v2146 = vmul.f32 1.0, %v2145
    %v2147 = vmul.f32 %v2126, %v2001
    %v2148 = vmul.f32 %v2111, %v2127
    %v2149 = vadd.f32 %v2147, %v2148
    %v2150 = vtanh.pop %v2149
    %v2151 = vmul.f32 %v2146, %v2150
    %s2152 = scalar_lea.vmem [#allocation14], 8
    %2153 = vst [vmem:[%s2152] sm:$0xff] %v2151
    %2154 = vmatpush.msra.mxu0 %v310
    %2155 = vmatpush.msra.mxu0 %v306
    %2156 = vmatpush.msra.mxu0 %v302
    %2157 = vmatpush.msra.mxu0 %v298
    %2158 = vmatpush.msra.mxu0 %v294
    %2159 = vmatpush.msra.mxu0 %v290
    %2160 = vmatpush.msra.mxu0 %v286
    %2161 = vmatpush.msra.mxu0 %v282
    %2162 = vmatpush.msra.mxu0 %v278
    %2163 = vmatpush.msra.mxu0 %v274
    %2164 = vmatpush.msra.mxu0 %v270
    %2165 = vmatpush.msra.mxu0 %v266
    %2166 = vmatpush.msra.mxu0 %v262
    %2167 = vmatpush.msra.mxu0 %v258
    %2168 = vmatpush.msra.mxu0 %v254
    %2169 = vmatpush.msra.mxu0 %v250
    %2170 = vmatmul.f32.gmra.mxu0 %v2151
    %v2171 = vpop.f32.mrf.mxu0
    %v2172 = vadd.f32 0.0, %v2171
    %2173 = vdwg.mxu0
    %2174 = vmatpush.msra.mxu0 %v311
    %2175 = vmatpush.msra.mxu0 %v307
    %2176 = vmatpush.msra.mxu0 %v303
    %2177 = vmatpush.msra.mxu0 %v299
    %2178 = vmatpush.msra.mxu0 %v295
    %2179 = vmatpush.msra.mxu0 %v291
    %2180 = vmatpush.msra.mxu0 %v287
    %2181 = vmatpush.msra.mxu0 %v283
    %2182 = vmatpush.msra.mxu0 %v279
    %2183 = vmatpush.msra.mxu0 %v275
    %2184 = vmatpush.msra.mxu0 %v271
    %2185 = vmatpush.msra.mxu0 %v267
    %2186 = vmatpush.msra.mxu0 %v263
    %2187 = vmatpush.msra.mxu0 %v259
    %2188 = vmatpush.msra.mxu0 %v255
    %2189 = vmatpush.msra.mxu0 %v251
    %2190 = vmatmul.f32.gmra.mxu0 %v2151
    %v2191 = vpop.f32.mrf.mxu0
    %v2192 = vadd.f32 0.0, %v2191
    %2193 = vdwg.mxu0
    %2194 = vmatpush.msra.mxu0 %v312
    %2195 = vmatpush.msra.mxu0 %v308
    %2196 = vmatpush.msra.mxu0 %v304
    %2197 = vmatpush.msra.mxu0 %v300
    %2198 = vmatpush.msra.mxu0 %v296
    %2199 = vmatpush.msra.mxu0 %v292
    %2200 = vmatpush.msra.mxu0 %v288
    %2201 = vmatpush.msra.mxu0 %v284
    %2202 = vmatpush.msra.mxu0 %v280
    %2203 = vmatpush.msra.mxu0 %v276
    %2204 = vmatpush.msra.mxu0 %v272
    %2205 = vmatpush.msra.mxu0 %v268
    %2206 = vmatpush.msra.mxu0 %v264
    %2207 = vmatpush.msra.mxu0 %v260
    %2208 = vmatpush.msra.mxu0 %v256
    %2209 = vmatpush.msra.mxu0 %v252
    %2210 = vmatmul.f32.gmra.mxu0 %v2151
    %v2211 = vpop.f32.mrf.mxu0
    %v2212 = vadd.f32 0.0, %v2211
    %2213 = vdwg.mxu0
    %2214 = vmatpush.msra.mxu0 %v313
    %2215 = vmatpush.msra.mxu0 %v309
    %2216 = vmatpush.msra.mxu0 %v305
    %2217 = vmatpush.msra.mxu0 %v301
    %2218 = vmatpush.msra.mxu0 %v297
    %2219 = vmatpush.msra.mxu0 %v293
    %2220 = vmatpush.msra.mxu0 %v289
    %2221 = vmatpush.msra.mxu0 %v285
    %2222 = vmatpush.msra.mxu0 %v281
    %2223 = vmatpush.msra.mxu0 %v277
    %2224 = vmatpush.msra.mxu0 %v273
    %2225 = vmatpush.msra.mxu0 %v269
    %2226 = vmatpush.msra.mxu0 %v265
    %2227 = vmatpush.msra.mxu0 %v261
    %2228 = vmatpush.msra.mxu0 %v257
    %2229 = vmatpush.msra.mxu0 %v253
    %2230 = vmatmul.f32.gmra.mxu0 %v2151
    %v2231 = vpop.f32.mrf.mxu0
    %v2232 = vadd.f32 0.0, %v2231
    %2233 = vdwg.mxu0
    %v2234 = vadd.f32 %v1795, %v2172
    %v2235 = vadd.f32 %v1815, %v2192
    %v2236 = vadd.f32 %v1835, %v2212
    %v2237 = vadd.f32 %v1855, %v2232
    %v2238 = vxor.u32 %v2234, 2147483648
    %v2239 = vxor.u32 %v2235, 2147483648
    %v2240 = vmul.f32 %v2238, 1.442695
    %v2241 = vpow.pop %v2240
    %v2242 = vmul.f32 %v2239, 1.442695
    %v2243 = vpow.pop %v2242
    %v2244 = vadd.f32 %v2241, 1.0
    %v2245 = vadd.f32 %v2243, 1.0
    %v2246 = vrcp.pop %v2244
    %v2247 = vmul.f32 %v2244, %v2246
    %v2248 = vsub.f32 1.0, %v2247
    %v2249 = vmul.f32 %v2246, %v2248
    %v2250 = vadd.f32 %v2246, %v2249
    %vm2251 = vweird.f32 %v2244
    %vm2252 = vweird.f32 %v2246
    %vm2253 = vmor %vm2251, %vm2252
    %v2254 = vsel %vm2253, %v2246, %v2250
    %v2255 = vand.u32 2147483647, %v2244
    %vm2256 = vcmp.eq.f32.partialorder %v2255, 8.507059e+37
    %v2257 = vand.u32 %v2244, 2147483648
    %v2258 = vor.u32 1.1754944e-38, %v2257
    %v2259 = vsel %vm2256, %v2258, %v2254
    %v2260 = vmul.f32 1.0, %v2259
    %v2261 = vrcp.pop %v2245
    %v2262 = vmul.f32 %v2245, %v2261
    %v2263 = vsub.f32 1.0, %v2262
    %v2264 = vmul.f32 %v2261, %v2263
    %v2265 = vadd.f32 %v2261, %v2264
    %vm2266 = vweird.f32 %v2245
    %vm2267 = vweird.f32 %v2261
    %vm2268 = vmor %vm2266, %vm2267
    %v2269 = vsel %vm2268, %v2261, %v2265
    %v2270 = vand.u32 2147483647, %v2245
    %vm2271 = vcmp.eq.f32.partialorder %v2270, 8.507059e+37
    %v2272 = vand.u32 %v2245, 2147483648
    %v2273 = vor.u32 1.1754944e-38, %v2272
    %v2274 = vsel %vm2271, %v2273, %v2269
    %v2275 = vmul.f32 1.0, %v2274
    %v2276 = vtanh.pop %v2236
    %v2277 = vxor.u32 %v2237, 2147483648
    %v2278 = vmul.f32 %v2277, 1.442695
    %v2279 = vpow.pop %v2278
    %v2280 = vadd.f32 %v2279, 1.0
    %v2281 = vrcp.pop %v2280
    %v2282 = vmul.f32 %v2280, %v2281
    %v2283 = vsub.f32 1.0, %v2282
    %v2284 = vmul.f32 %v2281, %v2283
    %v2285 = vadd.f32 %v2281, %v2284
    %vm2286 = vweird.f32 %v2280
    %vm2287 = vweird.f32 %v2281
    %vm2288 = vmor %vm2286, %vm2287
    %v2289 = vsel %vm2288, %v2281, %v2285
    %v2290 = vand.u32 2147483647, %v2280
    %vm2291 = vcmp.eq.f32.partialorder %v2290, 8.507059e+37
    %v2292 = vand.u32 %v2280, 2147483648
    %v2293 = vor.u32 1.1754944e-38, %v2292
    %v2294 = vsel %vm2291, %v2293, %v2289
    %v2295 = vmul.f32 1.0, %v2294
    %v2296 = vmul.f32 %v2275, %v2149
    %v2297 = vmul.f32 %v2260, %v2276
    %v2298 = vadd.f32 %v2296, %v2297
    %v2299 = vtanh.pop %v2298
    %v2300 = vmul.f32 %v2295, %v2299
    %s2301 = scalar_lea.vmem [#allocation14], 16
    %2302 = vst [vmem:[%s2301] sm:$0xff] %v2300
    %2303 = vmatpush.msra.mxu0 %v310
    %2304 = vmatpush.msra.mxu0 %v306
    %2305 = vmatpush.msra.mxu0 %v302
    %2306 = vmatpush.msra.mxu0 %v298
    %2307 = vmatpush.msra.mxu0 %v294
    %2308 = vmatpush.msra.mxu0 %v290
    %2309 = vmatpush.msra.mxu0 %v286
    %2310 = vmatpush.msra.mxu0 %v282
    %2311 = vmatpush.msra.mxu0 %v278
    %2312 = vmatpush.msra.mxu0 %v274
    %2313 = vmatpush.msra.mxu0 %v270
    %2314 = vmatpush.msra.mxu0 %v266
    %2315 = vmatpush.msra.mxu0 %v262
    %2316 = vmatpush.msra.mxu0 %v258
    %2317 = vmatpush.msra.mxu0 %v254
    %2318 = vmatpush.msra.mxu0 %v250
    %2319 = vmatmul.f32.gmra.mxu0 %v2300
    %v2320 = vpop.f32.mrf.mxu0
    %v2321 = vadd.f32 0.0, %v2320
    %2322 = vdwg.mxu0
    %2323 = vmatpush.msra.mxu0 %v311
    %2324 = vmatpush.msra.mxu0 %v307
    %2325 = vmatpush.msra.mxu0 %v303
    %2326 = vmatpush.msra.mxu0 %v299
    %2327 = vmatpush.msra.mxu0 %v295
    %2328 = vmatpush.msra.mxu0 %v291
    %2329 = vmatpush.msra.mxu0 %v287
    %2330 = vmatpush.msra.mxu0 %v283
    %2331 = vmatpush.msra.mxu0 %v279
    %2332 = vmatpush.msra.mxu0 %v275
    %2333 = vmatpush.msra.mxu0 %v271
    %2334 = vmatpush.msra.mxu0 %v267
    %2335 = vmatpush.msra.mxu0 %v263
    %2336 = vmatpush.msra.mxu0 %v259
    %2337 = vmatpush.msra.mxu0 %v255
    %2338 = vmatpush.msra.mxu0 %v251
    %2339 = vmatmul.f32.gmra.mxu0 %v2300
    %v2340 = vpop.f32.mrf.mxu0
    %v2341 = vadd.f32 0.0, %v2340
    %2342 = vdwg.mxu0
    %2343 = vmatpush.msra.mxu0 %v312
    %2344 = vmatpush.msra.mxu0 %v308
    %2345 = vmatpush.msra.mxu0 %v304
    %2346 = vmatpush.msra.mxu0 %v300
    %2347 = vmatpush.msra.mxu0 %v296
    %2348 = vmatpush.msra.mxu0 %v292
    %2349 = vmatpush.msra.mxu0 %v288
    %2350 = vmatpush.msra.mxu0 %v284
    %2351 = vmatpush.msra.mxu0 %v280
    %2352 = vmatpush.msra.mxu0 %v276
    %2353 = vmatpush.msra.mxu0 %v272
    %2354 = vmatpush.msra.mxu0 %v268
    %2355 = vmatpush.msra.mxu0 %v264
    %2356 = vmatpush.msra.mxu0 %v260
    %2357 = vmatpush.msra.mxu0 %v256
    %2358 = vmatpush.msra.mxu0 %v252
    %2359 = vmatmul.f32.gmra.mxu0 %v2300
    %v2360 = vpop.f32.mrf.mxu0
    %v2361 = vadd.f32 0.0, %v2360
    %2362 = vdwg.mxu0
    %2363 = vmatpush.msra.mxu0 %v313
    %2364 = vmatpush.msra.mxu0 %v309
    %2365 = vmatpush.msra.mxu0 %v305
    %2366 = vmatpush.msra.mxu0 %v301
    %2367 = vmatpush.msra.mxu0 %v297
    %2368 = vmatpush.msra.mxu0 %v293
    %2369 = vmatpush.msra.mxu0 %v289
    %2370 = vmatpush.msra.mxu0 %v285
    %2371 = vmatpush.msra.mxu0 %v281
    %2372 = vmatpush.msra.mxu0 %v277
    %2373 = vmatpush.msra.mxu0 %v273
    %2374 = vmatpush.msra.mxu0 %v269
    %2375 = vmatpush.msra.mxu0 %v265
    %2376 = vmatpush.msra.mxu0 %v261
    %2377 = vmatpush.msra.mxu0 %v257
    %2378 = vmatpush.msra.mxu0 %v253
    %2379 = vmatmul.f32.gmra.mxu0 %v2300
    %v2380 = vpop.f32.mrf.mxu0
    %v2381 = vadd.f32 0.0, %v2380
    %2382 = vdwg.mxu0
    %v2383 = vadd.f32 %v1795, %v2321
    %v2384 = vadd.f32 %v1815, %v2341
    %v2385 = vadd.f32 %v1835, %v2361
    %v2386 = vadd.f32 %v1855, %v2381
    %v2387 = vxor.u32 %v2383, 2147483648
    %v2388 = vxor.u32 %v2384, 2147483648
    %v2389 = vmul.f32 %v2387, 1.442695
    %v2390 = vpow.pop %v2389
    %v2391 = vmul.f32 %v2388, 1.442695
    %v2392 = vpow.pop %v2391
    %v2393 = vadd.f32 %v2390, 1.0
    %v2394 = vadd.f32 %v2392, 1.0
    %v2395 = vrcp.pop %v2393
    %v2396 = vmul.f32 %v2393, %v2395
    %v2397 = vsub.f32 1.0, %v2396
    %v2398 = vmul.f32 %v2395, %v2397
    %v2399 = vadd.f32 %v2395, %v2398
    %vm2400 = vweird.f32 %v2393
    %vm2401 = vweird.f32 %v2395
    %vm2402 = vmor %vm2400, %vm2401
    %v2403 = vsel %vm2402, %v2395, %v2399
    %v2404 = vand.u32 2147483647, %v2393
    %vm2405 = vcmp.eq.f32.partialorder %v2404, 8.507059e+37
    %v2406 = vand.u32 %v2393, 2147483648
    %v2407 = vor.u32 1.1754944e-38, %v2406
    %v2408 = vsel %vm2405, %v2407, %v2403
    %v2409 = vmul.f32 1.0, %v2408
    %v2410 = vrcp.pop %v2394
    %v2411 = vmul.f32 %v2394, %v2410
    %v2412 = vsub.f32 1.0, %v2411
    %v2413 = vmul.f32 %v2410, %v2412
    %v2414 = vadd.f32 %v2410, %v2413
    %vm2415 = vweird.f32 %v2394
    %vm2416 = vweird.f32 %v2410
    %vm2417 = vmor %vm2415, %vm2416
    %v2418 = vsel %vm2417, %v2410, %v2414
    %v2419 = vand.u32 2147483647, %v2394
    %vm2420 = vcmp.eq.f32.partialorder %v2419, 8.507059e+37
    %v2421 = vand.u32 %v2394, 2147483648
    %v2422 = vor.u32 1.1754944e-38, %v2421
    %v2423 = vsel %vm2420, %v2422, %v2418
    %v2424 = vmul.f32 1.0, %v2423
    %v2425 = vtanh.pop %v2385
    %v2426 = vxor.u32 %v2386, 2147483648
    %v2427 = vmul.f32 %v2426, 1.442695
    %v2428 = vpow.pop %v2427
    %v2429 = vadd.f32 %v2428, 1.0
    %v2430 = vrcp.pop %v2429
    %v2431 = vmul.f32 %v2429, %v2430
    %v2432 = vsub.f32 1.0, %v2431
    %v2433 = vmul.f32 %v2430, %v2432
    %v2434 = vadd.f32 %v2430, %v2433
    %vm2435 = vweird.f32 %v2429
    %vm2436 = vweird.f32 %v2430
    %vm2437 = vmor %vm2435, %vm2436
    %v2438 = vsel %vm2437, %v2430, %v2434
    %v2439 = vand.u32 2147483647, %v2429
    %vm2440 = vcmp.eq.f32.partialorder %v2439, 8.507059e+37
    %v2441 = vand.u32 %v2429, 2147483648
    %v2442 = vor.u32 1.1754944e-38, %v2441
    %v2443 = vsel %vm2440, %v2442, %v2438
    %v2444 = vmul.f32 1.0, %v2443
    %v2445 = vmul.f32 %v2424, %v2298
    %v2446 = vmul.f32 %v2409, %v2425
    %v2447 = vadd.f32 %v2445, %v2446
    %v2448 = vtanh.pop %v2447
    %v2449 = vmul.f32 %v2444, %v2448
    %s2450 = scalar_lea.vmem [#allocation14], 24
    %2451 = vst [vmem:[%s2450] sm:$0xff] %v2449
    %2452 = vmatpush.msra.mxu0 %v310
    %2453 = vmatpush.msra.mxu0 %v306
    %2454 = vmatpush.msra.mxu0 %v302
    %2455 = vmatpush.msra.mxu0 %v298
    %2456 = vmatpush.msra.mxu0 %v294
    %2457 = vmatpush.msra.mxu0 %v290
    %2458 = vmatpush.msra.mxu0 %v286
    %2459 = vmatpush.msra.mxu0 %v282
    %2460 = vmatpush.msra.mxu0 %v278
    %2461 = vmatpush.msra.mxu0 %v274
    %2462 = vmatpush.msra.mxu0 %v270
    %2463 = vmatpush.msra.mxu0 %v266
    %2464 = vmatpush.msra.mxu0 %v262
    %2465 = vmatpush.msra.mxu0 %v258
    %2466 = vmatpush.msra.mxu0 %v254
    %2467 = vmatpush.msra.mxu0 %v250
    %2468 = vmatmul.f32.gmra.mxu0 %v2449
    %v2469 = vpop.f32.mrf.mxu0
    %v2470 = vadd.f32 0.0, %v2469
    %2471 = vdwg.mxu0
    %2472 = vmatpush.msra.mxu0 %v311
    %2473 = vmatpush.msra.mxu0 %v307
    %2474 = vmatpush.msra.mxu0 %v303
    %2475 = vmatpush.msra.mxu0 %v299
    %2476 = vmatpush.msra.mxu0 %v295
    %2477 = vmatpush.msra.mxu0 %v291
    %2478 = vmatpush.msra.mxu0 %v287
    %2479 = vmatpush.msra.mxu0 %v283
    %2480 = vmatpush.msra.mxu0 %v279
    %2481 = vmatpush.msra.mxu0 %v275
    %2482 = vmatpush.msra.mxu0 %v271
    %2483 = vmatpush.msra.mxu0 %v267
    %2484 = vmatpush.msra.mxu0 %v263
    %2485 = vmatpush.msra.mxu0 %v259
    %2486 = vmatpush.msra.mxu0 %v255
    %2487 = vmatpush.msra.mxu0 %v251
    %2488 = vmatmul.f32.gmra.mxu0 %v2449
    %v2489 = vpop.f32.mrf.mxu0
    %v2490 = vadd.f32 0.0, %v2489
    %2491 = vdwg.mxu0
    %2492 = vmatpush.msra.mxu0 %v312
    %2493 = vmatpush.msra.mxu0 %v308
    %2494 = vmatpush.msra.mxu0 %v304
    %2495 = vmatpush.msra.mxu0 %v300
    %2496 = vmatpush.msra.mxu0 %v296
    %2497 = vmatpush.msra.mxu0 %v292
    %2498 = vmatpush.msra.mxu0 %v288
    %2499 = vmatpush.msra.mxu0 %v284
    %2500 = vmatpush.msra.mxu0 %v280
    %2501 = vmatpush.msra.mxu0 %v276
    %2502 = vmatpush.msra.mxu0 %v272
    %2503 = vmatpush.msra.mxu0 %v268
    %2504 = vmatpush.msra.mxu0 %v264
    %2505 = vmatpush.msra.mxu0 %v260
    %2506 = vmatpush.msra.mxu0 %v256
    %2507 = vmatpush.msra.mxu0 %v252
    %2508 = vmatmul.f32.gmra.mxu0 %v2449
    %v2509 = vpop.f32.mrf.mxu0
    %v2510 = vadd.f32 0.0, %v2509
    %2511 = vdwg.mxu0
    %2512 = vmatpush.msra.mxu0 %v313
    %2513 = vmatpush.msra.mxu0 %v309
    %2514 = vmatpush.msra.mxu0 %v305
    %2515 = vmatpush.msra.mxu0 %v301
    %2516 = vmatpush.msra.mxu0 %v297
    %2517 = vmatpush.msra.mxu0 %v293
    %2518 = vmatpush.msra.mxu0 %v289
    %2519 = vmatpush.msra.mxu0 %v285
    %2520 = vmatpush.msra.mxu0 %v281
    %2521 = vmatpush.msra.mxu0 %v277
    %2522 = vmatpush.msra.mxu0 %v273
    %2523 = vmatpush.msra.mxu0 %v269
    %2524 = vmatpush.msra.mxu0 %v265
    %2525 = vmatpush.msra.mxu0 %v261
    %2526 = vmatpush.msra.mxu0 %v257
    %2527 = vmatpush.msra.mxu0 %v253
    %2528 = vmatmul.f32.gmra.mxu0 %v2449
    %v2529 = vpop.f32.mrf.mxu0
    %v2530 = vadd.f32 0.0, %v2529
    %2531 = vdwg.mxu0
    %v2532 = vadd.f32 %v1795, %v2470
    %v2533 = vadd.f32 %v1815, %v2490
    %v2534 = vadd.f32 %v1835, %v2510
    %v2535 = vadd.f32 %v1855, %v2530
    %v2536 = vxor.u32 %v2532, 2147483648
    %v2537 = vxor.u32 %v2533, 2147483648
    %v2538 = vmul.f32 %v2536, 1.442695
    %v2539 = vpow.pop %v2538
    %v2540 = vmul.f32 %v2537, 1.442695
    %v2541 = vpow.pop %v2540
    %v2542 = vadd.f32 %v2539, 1.0
    %v2543 = vadd.f32 %v2541, 1.0
    %v2544 = vrcp.pop %v2542
    %v2545 = vmul.f32 %v2542, %v2544
    %v2546 = vsub.f32 1.0, %v2545
    %v2547 = vmul.f32 %v2544, %v2546
    %v2548 = vadd.f32 %v2544, %v2547
    %vm2549 = vweird.f32 %v2542
    %vm2550 = vweird.f32 %v2544
    %vm2551 = vmor %vm2549, %vm2550
    %v2552 = vsel %vm2551, %v2544, %v2548
    %v2553 = vand.u32 2147483647, %v2542
    %vm2554 = vcmp.eq.f32.partialorder %v2553, 8.507059e+37
    %v2555 = vand.u32 %v2542, 2147483648
    %v2556 = vor.u32 1.1754944e-38, %v2555
    %v2557 = vsel %vm2554, %v2556, %v2552
    %v2558 = vmul.f32 1.0, %v2557
    %v2559 = vrcp.pop %v2543
    %v2560 = vmul.f32 %v2543, %v2559
    %v2561 = vsub.f32 1.0, %v2560
    %v2562 = vmul.f32 %v2559, %v2561
    %v2563 = vadd.f32 %v2559, %v2562
    %vm2564 = vweird.f32 %v2543
    %vm2565 = vweird.f32 %v2559
    %vm2566 = vmor %vm2564, %vm2565
    %v2567 = vsel %vm2566, %v2559, %v2563
    %v2568 = vand.u32 2147483647, %v2543
    %vm2569 = vcmp.eq.f32.partialorder %v2568, 8.507059e+37
    %v2570 = vand.u32 %v2543, 2147483648
    %v2571 = vor.u32 1.1754944e-38, %v2570
    %v2572 = vsel %vm2569, %v2571, %v2567
    %v2573 = vmul.f32 1.0, %v2572
    %v2574 = vtanh.pop %v2534
    %v2575 = vxor.u32 %v2535, 2147483648
    %v2576 = vmul.f32 %v2575, 1.442695
    %v2577 = vpow.pop %v2576
    %v2578 = vadd.f32 %v2577, 1.0
    %v2579 = vrcp.pop %v2578
    %v2580 = vmul.f32 %v2578, %v2579
    %v2581 = vsub.f32 1.0, %v2580
    %v2582 = vmul.f32 %v2579, %v2581
    %v2583 = vadd.f32 %v2579, %v2582
    %vm2584 = vweird.f32 %v2578
    %vm2585 = vweird.f32 %v2579
    %vm2586 = vmor %vm2584, %vm2585
    %v2587 = vsel %vm2586, %v2579, %v2583
    %v2588 = vand.u32 2147483647, %v2578
    %vm2589 = vcmp.eq.f32.partialorder %v2588, 8.507059e+37
    %v2590 = vand.u32 %v2578, 2147483648
    %v2591 = vor.u32 1.1754944e-38, %v2590
    %v2592 = vsel %vm2589, %v2591, %v2587
    %v2593 = vmul.f32 1.0, %v2592
    %v2594 = vmul.f32 %v2573, %v2447
    %v2595 = vmul.f32 %v2558, %v2574
    %v2596 = vadd.f32 %v2594, %v2595
    %v2597 = vtanh.pop %v2596
    %v2598 = vmul.f32 %v2593, %v2597
    %s2599 = scalar_lea.vmem [#allocation14], 32
    %2600 = vst [vmem:[%s2599] sm:$0xff] %v2598
    %2601 = vmatpush.msra.mxu0 %v310
    %2602 = vmatpush.msra.mxu0 %v306
    %2603 = vmatpush.msra.mxu0 %v302
    %2604 = vmatpush.msra.mxu0 %v298
    %2605 = vmatpush.msra.mxu0 %v294
    %2606 = vmatpush.msra.mxu0 %v290
    %2607 = vmatpush.msra.mxu0 %v286
    %2608 = vmatpush.msra.mxu0 %v282
    %2609 = vmatpush.msra.mxu0 %v278
    %2610 = vmatpush.msra.mxu0 %v274
    %2611 = vmatpush.msra.mxu0 %v270
    %2612 = vmatpush.msra.mxu0 %v266
    %2613 = vmatpush.msra.mxu0 %v262
    %2614 = vmatpush.msra.mxu0 %v258
    %2615 = vmatpush.msra.mxu0 %v254
    %2616 = vmatpush.msra.mxu0 %v250
    %2617 = vmatmul.f32.gmra.mxu0 %v2598
    %v2618 = vpop.f32.mrf.mxu0
    %v2619 = vadd.f32 0.0, %v2618
    %2620 = vdwg.mxu0
    %2621 = vmatpush.msra.mxu0 %v311
    %2622 = vmatpush.msra.mxu0 %v307
    %2623 = vmatpush.msra.mxu0 %v303
    %2624 = vmatpush.msra.mxu0 %v299
    %2625 = vmatpush.msra.mxu0 %v295
    %2626 = vmatpush.msra.mxu0 %v291
    %2627 = vmatpush.msra.mxu0 %v287
    %2628 = vmatpush.msra.mxu0 %v283
    %2629 = vmatpush.msra.mxu0 %v279
    %2630 = vmatpush.msra.mxu0 %v275
    %2631 = vmatpush.msra.mxu0 %v271
    %2632 = vmatpush.msra.mxu0 %v267
    %2633 = vmatpush.msra.mxu0 %v263
    %2634 = vmatpush.msra.mxu0 %v259
    %2635 = vmatpush.msra.mxu0 %v255
    %2636 = vmatpush.msra.mxu0 %v251
    %2637 = vmatmul.f32.gmra.mxu0 %v2598
    %v2638 = vpop.f32.mrf.mxu0
    %v2639 = vadd.f32 0.0, %v2638
    %2640 = vdwg.mxu0
    %2641 = vmatpush.msra.mxu0 %v312
    %2642 = vmatpush.msra.mxu0 %v308
    %2643 = vmatpush.msra.mxu0 %v304
    %2644 = vmatpush.msra.mxu0 %v300
    %2645 = vmatpush.msra.mxu0 %v296
    %2646 = vmatpush.msra.mxu0 %v292
    %2647 = vmatpush.msra.mxu0 %v288
    %2648 = vmatpush.msra.mxu0 %v284
    %2649 = vmatpush.msra.mxu0 %v280
    %2650 = vmatpush.msra.mxu0 %v276
    %2651 = vmatpush.msra.mxu0 %v272
    %2652 = vmatpush.msra.mxu0 %v268
    %2653 = vmatpush.msra.mxu0 %v264
    %2654 = vmatpush.msra.mxu0 %v260
    %2655 = vmatpush.msra.mxu0 %v256
    %2656 = vmatpush.msra.mxu0 %v252
    %2657 = vmatmul.f32.gmra.mxu0 %v2598
    %v2658 = vpop.f32.mrf.mxu0
    %v2659 = vadd.f32 0.0, %v2658
    %2660 = vdwg.mxu0
    %2661 = vmatpush.msra.mxu0 %v313
    %2662 = vmatpush.msra.mxu0 %v309
    %2663 = vmatpush.msra.mxu0 %v305
    %2664 = vmatpush.msra.mxu0 %v301
    %2665 = vmatpush.msra.mxu0 %v297
    %2666 = vmatpush.msra.mxu0 %v293
    %2667 = vmatpush.msra.mxu0 %v289
    %2668 = vmatpush.msra.mxu0 %v285
    %2669 = vmatpush.msra.mxu0 %v281
    %2670 = vmatpush.msra.mxu0 %v277
    %2671 = vmatpush.msra.mxu0 %v273
    %2672 = vmatpush.msra.mxu0 %v269
    %2673 = vmatpush.msra.mxu0 %v265
    %2674 = vmatpush.msra.mxu0 %v261
    %2675 = vmatpush.msra.mxu0 %v257
    %2676 = vmatpush.msra.mxu0 %v253
    %2677 = vmatmul.f32.gmra.mxu0 %v2598
    %v2678 = vpop.f32.mrf.mxu0
    %v2679 = vadd.f32 0.0, %v2678
    %2680 = vdwg.mxu0
    %v2681 = vadd.f32 %v1795, %v2619
    %v2682 = vadd.f32 %v1815, %v2639
    %v2683 = vadd.f32 %v1835, %v2659
    %v2684 = vadd.f32 %v1855, %v2679
    %v2685 = vxor.u32 %v2681, 2147483648
    %v2686 = vxor.u32 %v2682, 2147483648
    %v2687 = vmul.f32 %v2685, 1.442695
    %v2688 = vpow.pop %v2687
    %v2689 = vmul.f32 %v2686, 1.442695
    %v2690 = vpow.pop %v2689
    %v2691 = vadd.f32 %v2688, 1.0
    %v2692 = vadd.f32 %v2690, 1.0
    %v2693 = vrcp.pop %v2691
    %v2694 = vmul.f32 %v2691, %v2693
    %v2695 = vsub.f32 1.0, %v2694
    %v2696 = vmul.f32 %v2693, %v2695
    %v2697 = vadd.f32 %v2693, %v2696
    %vm2698 = vweird.f32 %v2691
    %vm2699 = vweird.f32 %v2693
    %vm2700 = vmor %vm2698, %vm2699
    %v2701 = vsel %vm2700, %v2693, %v2697
    %v2702 = vand.u32 2147483647, %v2691
    %vm2703 = vcmp.eq.f32.partialorder %v2702, 8.507059e+37
    %v2704 = vand.u32 %v2691, 2147483648
    %v2705 = vor.u32 1.1754944e-38, %v2704
    %v2706 = vsel %vm2703, %v2705, %v2701
    %v2707 = vmul.f32 1.0, %v2706
    %v2708 = vrcp.pop %v2692
    %v2709 = vmul.f32 %v2692, %v2708
    %v2710 = vsub.f32 1.0, %v2709
    %v2711 = vmul.f32 %v2708, %v2710
    %v2712 = vadd.f32 %v2708, %v2711
    %vm2713 = vweird.f32 %v2692
    %vm2714 = vweird.f32 %v2708
    %vm2715 = vmor %vm2713, %vm2714
    %v2716 = vsel %vm2715, %v2708, %v2712
    %v2717 = vand.u32 2147483647, %v2692
    %vm2718 = vcmp.eq.f32.partialorder %v2717, 8.507059e+37
    %v2719 = vand.u32 %v2692, 2147483648
    %v2720 = vor.u32 1.1754944e-38, %v2719
    %v2721 = vsel %vm2718, %v2720, %v2716
    %v2722 = vmul.f32 1.0, %v2721
    %v2723 = vtanh.pop %v2683
    %v2724 = vxor.u32 %v2684, 2147483648
    %v2725 = vmul.f32 %v2724, 1.442695
    %v2726 = vpow.pop %v2725
    %v2727 = vadd.f32 %v2726, 1.0
    %v2728 = vrcp.pop %v2727
    %v2729 = vmul.f32 %v2727, %v2728
    %v2730 = vsub.f32 1.0, %v2729
    %v2731 = vmul.f32 %v2728, %v2730
    %v2732 = vadd.f32 %v2728, %v2731
    %vm2733 = vweird.f32 %v2727
    %vm2734 = vweird.f32 %v2728
    %vm2735 = vmor %vm2733, %vm2734
    %v2736 = vsel %vm2735, %v2728, %v2732
    %v2737 = vand.u32 2147483647, %v2727
    %vm2738 = vcmp.eq.f32.partialorder %v2737, 8.507059e+37
    %v2739 = vand.u32 %v2727, 2147483648
    %v2740 = vor.u32 1.1754944e-38, %v2739
    %v2741 = vsel %vm2738, %v2740, %v2736
    %v2742 = vmul.f32 1.0, %v2741
    %v2743 = vmul.f32 %v2722, %v2596
    %v2744 = vmul.f32 %v2707, %v2723
    %v2745 = vadd.f32 %v2743, %v2744
    %v2746 = vtanh.pop %v2745
    %v2747 = vmul.f32 %v2742, %v2746
    %s2748 = scalar_lea.vmem [#allocation14], 40
    %2749 = vst [vmem:[%s2748] sm:$0xff] %v2747
    %2750 = vmatpush.msra.mxu0 %v310
    %2751 = vmatpush.msra.mxu0 %v306
    %2752 = vmatpush.msra.mxu0 %v302
    %2753 = vmatpush.msra.mxu0 %v298
    %2754 = vmatpush.msra.mxu0 %v294
    %2755 = vmatpush.msra.mxu0 %v290
    %2756 = vmatpush.msra.mxu0 %v286
    %2757 = vmatpush.msra.mxu0 %v282
    %2758 = vmatpush.msra.mxu0 %v278
    %2759 = vmatpush.msra.mxu0 %v274
    %2760 = vmatpush.msra.mxu0 %v270
    %2761 = vmatpush.msra.mxu0 %v266
    %2762 = vmatpush.msra.mxu0 %v262
    %2763 = vmatpush.msra.mxu0 %v258
    %2764 = vmatpush.msra.mxu0 %v254
    %2765 = vmatpush.msra.mxu0 %v250
    %2766 = vmatmul.f32.gmra.mxu0 %v2747
    %v2767 = vpop.f32.mrf.mxu0
    %v2768 = vadd.f32 0.0, %v2767
    %2769 = vdwg.mxu0
    %2770 = vmatpush.msra.mxu0 %v311
    %2771 = vmatpush.msra.mxu0 %v307
    %2772 = vmatpush.msra.mxu0 %v303
    %2773 = vmatpush.msra.mxu0 %v299
    %2774 = vmatpush.msra.mxu0 %v295
    %2775 = vmatpush.msra.mxu0 %v291
    %2776 = vmatpush.msra.mxu0 %v287
    %2777 = vmatpush.msra.mxu0 %v283
    %2778 = vmatpush.msra.mxu0 %v279
    %2779 = vmatpush.msra.mxu0 %v275
    %2780 = vmatpush.msra.mxu0 %v271
    %2781 = vmatpush.msra.mxu0 %v267
    %2782 = vmatpush.msra.mxu0 %v263
    %2783 = vmatpush.msra.mxu0 %v259
    %2784 = vmatpush.msra.mxu0 %v255
    %2785 = vmatpush.msra.mxu0 %v251
    %2786 = vmatmul.f32.gmra.mxu0 %v2747
    %v2787 = vpop.f32.mrf.mxu0
    %v2788 = vadd.f32 0.0, %v2787
    %2789 = vdwg.mxu0
    %2790 = vmatpush.msra.mxu0 %v312
    %2791 = vmatpush.msra.mxu0 %v308
    %2792 = vmatpush.msra.mxu0 %v304
    %2793 = vmatpush.msra.mxu0 %v300
    %2794 = vmatpush.msra.mxu0 %v296
    %2795 = vmatpush.msra.mxu0 %v292
    %2796 = vmatpush.msra.mxu0 %v288
    %2797 = vmatpush.msra.mxu0 %v284
    %2798 = vmatpush.msra.mxu0 %v280
    %2799 = vmatpush.msra.mxu0 %v276
    %2800 = vmatpush.msra.mxu0 %v272
    %2801 = vmatpush.msra.mxu0 %v268
    %2802 = vmatpush.msra.mxu0 %v264
    %2803 = vmatpush.msra.mxu0 %v260
    %2804 = vmatpush.msra.mxu0 %v256
    %2805 = vmatpush.msra.mxu0 %v252
    %2806 = vmatmul.f32.gmra.mxu0 %v2747
    %v2807 = vpop.f32.mrf.mxu0
    %v2808 = vadd.f32 0.0, %v2807
    %2809 = vdwg.mxu0
    %2810 = vmatpush.msra.mxu0 %v313
    %2811 = vmatpush.msra.mxu0 %v309
    %2812 = vmatpush.msra.mxu0 %v305
    %2813 = vmatpush.msra.mxu0 %v301
    %2814 = vmatpush.msra.mxu0 %v297
    %2815 = vmatpush.msra.mxu0 %v293
    %2816 = vmatpush.msra.mxu0 %v289
    %2817 = vmatpush.msra.mxu0 %v285
    %2818 = vmatpush.msra.mxu0 %v281
    %2819 = vmatpush.msra.mxu0 %v277
    %2820 = vmatpush.msra.mxu0 %v273
    %2821 = vmatpush.msra.mxu0 %v269
    %2822 = vmatpush.msra.mxu0 %v265
    %2823 = vmatpush.msra.mxu0 %v261
    %2824 = vmatpush.msra.mxu0 %v257
    %2825 = vmatpush.msra.mxu0 %v253
    %2826 = vmatmul.f32.gmra.mxu0 %v2747
    %v2827 = vpop.f32.mrf.mxu0
    %v2828 = vadd.f32 0.0, %v2827
    %2829 = vdwg.mxu0
    %v2830 = vadd.f32 %v1795, %v2768
    %v2831 = vadd.f32 %v1815, %v2788
    %v2832 = vadd.f32 %v1835, %v2808
    %v2833 = vadd.f32 %v1855, %v2828
    %v2834 = vxor.u32 %v2830, 2147483648
    %v2835 = vxor.u32 %v2831, 2147483648
    %v2836 = vmul.f32 %v2834, 1.442695
    %v2837 = vpow.pop %v2836
    %v2838 = vmul.f32 %v2835, 1.442695
    %v2839 = vpow.pop %v2838
    %v2840 = vadd.f32 %v2837, 1.0
    %v2841 = vadd.f32 %v2839, 1.0
    %v2842 = vrcp.pop %v2840
    %v2843 = vmul.f32 %v2840, %v2842
    %v2844 = vsub.f32 1.0, %v2843
    %v2845 = vmul.f32 %v2842, %v2844
    %v2846 = vadd.f32 %v2842, %v2845
    %vm2847 = vweird.f32 %v2840
    %vm2848 = vweird.f32 %v2842
    %vm2849 = vmor %vm2847, %vm2848
    %v2850 = vsel %vm2849, %v2842, %v2846
    %v2851 = vand.u32 2147483647, %v2840
    %vm2852 = vcmp.eq.f32.partialorder %v2851, 8.507059e+37
    %v2853 = vand.u32 %v2840, 2147483648
    %v2854 = vor.u32 1.1754944e-38, %v2853
    %v2855 = vsel %vm2852, %v2854, %v2850
    %v2856 = vmul.f32 1.0, %v2855
    %v2857 = vrcp.pop %v2841
    %v2858 = vmul.f32 %v2841, %v2857
    %v2859 = vsub.f32 1.0, %v2858
    %v2860 = vmul.f32 %v2857, %v2859
    %v2861 = vadd.f32 %v2857, %v2860
    %vm2862 = vweird.f32 %v2841
    %vm2863 = vweird.f32 %v2857
    %vm2864 = vmor %vm2862, %vm2863
    %v2865 = vsel %vm2864, %v2857, %v2861
    %v2866 = vand.u32 2147483647, %v2841
    %vm2867 = vcmp.eq.f32.partialorder %v2866, 8.507059e+37
    %v2868 = vand.u32 %v2841, 2147483648
    %v2869 = vor.u32 1.1754944e-38, %v2868
    %v2870 = vsel %vm2867, %v2869, %v2865
    %v2871 = vmul.f32 1.0, %v2870
    %v2872 = vtanh.pop %v2832
    %v2873 = vxor.u32 %v2833, 2147483648
    %v2874 = vmul.f32 %v2873, 1.442695
    %v2875 = vpow.pop %v2874
    %v2876 = vadd.f32 %v2875, 1.0
    %v2877 = vrcp.pop %v2876
    %v2878 = vmul.f32 %v2876, %v2877
    %v2879 = vsub.f32 1.0, %v2878
    %v2880 = vmul.f32 %v2877, %v2879
    %v2881 = vadd.f32 %v2877, %v2880
    %vm2882 = vweird.f32 %v2876
    %vm2883 = vweird.f32 %v2877
    %vm2884 = vmor %vm2882, %vm2883
    %v2885 = vsel %vm2884, %v2877, %v2881
    %v2886 = vand.u32 2147483647, %v2876
    %vm2887 = vcmp.eq.f32.partialorder %v2886, 8.507059e+37
    %v2888 = vand.u32 %v2876, 2147483648
    %v2889 = vor.u32 1.1754944e-38, %v2888
    %v2890 = vsel %vm2887, %v2889, %v2885
    %v2891 = vmul.f32 1.0, %v2890
    %v2892 = vmul.f32 %v2871, %v2745
    %v2893 = vmul.f32 %v2856, %v2872
    %v2894 = vadd.f32 %v2892, %v2893
    %v2895 = vtanh.pop %v2894
    %v2896 = vmul.f32 %v2891, %v2895
    %s2897 = scalar_lea.vmem [#allocation14], 48
    %2898 = vst [vmem:[%s2897] sm:$0xff] %v2896
    %2899 = vmatpush.msra.mxu0 %v310
    %2900 = vmatpush.msra.mxu0 %v306
    %2901 = vmatpush.msra.mxu0 %v302
    %2902 = vmatpush.msra.mxu0 %v298
    %2903 = vmatpush.msra.mxu0 %v294
    %2904 = vmatpush.msra.mxu0 %v290
    %2905 = vmatpush.msra.mxu0 %v286
    %2906 = vmatpush.msra.mxu0 %v282
    %2907 = vmatpush.msra.mxu0 %v278
    %2908 = vmatpush.msra.mxu0 %v274
    %2909 = vmatpush.msra.mxu0 %v270
    %2910 = vmatpush.msra.mxu0 %v266
    %2911 = vmatpush.msra.mxu0 %v262
    %2912 = vmatpush.msra.mxu0 %v258
    %2913 = vmatpush.msra.mxu0 %v254
    %2914 = vmatpush.msra.mxu0 %v250
    %2915 = vmatmul.f32.gmra.mxu0 %v2896
    %v2916 = vpop.f32.mrf.mxu0
    %v2917 = vadd.f32 0.0, %v2916
    %2918 = vdwg.mxu0
    %2919 = vmatpush.msra.mxu0 %v311
    %2920 = vmatpush.msra.mxu0 %v307
    %2921 = vmatpush.msra.mxu0 %v303
    %2922 = vmatpush.msra.mxu0 %v299
    %2923 = vmatpush.msra.mxu0 %v295
    %2924 = vmatpush.msra.mxu0 %v291
    %2925 = vmatpush.msra.mxu0 %v287
    %2926 = vmatpush.msra.mxu0 %v283
    %2927 = vmatpush.msra.mxu0 %v279
    %2928 = vmatpush.msra.mxu0 %v275
    %2929 = vmatpush.msra.mxu0 %v271
    %2930 = vmatpush.msra.mxu0 %v267
    %2931 = vmatpush.msra.mxu0 %v263
    %2932 = vmatpush.msra.mxu0 %v259
    %2933 = vmatpush.msra.mxu0 %v255
    %2934 = vmatpush.msra.mxu0 %v251
    %2935 = vmatmul.f32.gmra.mxu0 %v2896
    %v2936 = vpop.f32.mrf.mxu0
    %v2937 = vadd.f32 0.0, %v2936
    %2938 = vdwg.mxu0
    %2939 = vmatpush.msra.mxu0 %v312
    %2940 = vmatpush.msra.mxu0 %v308
    %2941 = vmatpush.msra.mxu0 %v304
    %2942 = vmatpush.msra.mxu0 %v300
    %2943 = vmatpush.msra.mxu0 %v296
    %2944 = vmatpush.msra.mxu0 %v292
    %2945 = vmatpush.msra.mxu0 %v288
    %2946 = vmatpush.msra.mxu0 %v284
    %2947 = vmatpush.msra.mxu0 %v280
    %2948 = vmatpush.msra.mxu0 %v276
    %2949 = vmatpush.msra.mxu0 %v272
    %2950 = vmatpush.msra.mxu0 %v268
    %2951 = vmatpush.msra.mxu0 %v264
    %2952 = vmatpush.msra.mxu0 %v260
    %2953 = vmatpush.msra.mxu0 %v256
    %2954 = vmatpush.msra.mxu0 %v252
    %2955 = vmatmul.f32.gmra.mxu0 %v2896
    %v2956 = vpop.f32.mrf.mxu0
    %v2957 = vadd.f32 0.0, %v2956
    %2958 = vdwg.mxu0
    %2959 = vmatpush.msra.mxu0 %v313
    %2960 = vmatpush.msra.mxu0 %v309
    %2961 = vmatpush.msra.mxu0 %v305
    %2962 = vmatpush.msra.mxu0 %v301
    %2963 = vmatpush.msra.mxu0 %v297
    %2964 = vmatpush.msra.mxu0 %v293
    %2965 = vmatpush.msra.mxu0 %v289
    %2966 = vmatpush.msra.mxu0 %v285
    %2967 = vmatpush.msra.mxu0 %v281
    %2968 = vmatpush.msra.mxu0 %v277
    %2969 = vmatpush.msra.mxu0 %v273
    %2970 = vmatpush.msra.mxu0 %v269
    %2971 = vmatpush.msra.mxu0 %v265
    %2972 = vmatpush.msra.mxu0 %v261
    %2973 = vmatpush.msra.mxu0 %v257
    %2974 = vmatpush.msra.mxu0 %v253
    %2975 = vmatmul.f32.gmra.mxu0 %v2896
    %v2976 = vpop.f32.mrf.mxu0
    %v2977 = vadd.f32 0.0, %v2976
    %2978 = vdwg.mxu0
    %v2979 = vadd.f32 %v1795, %v2917
    %v2980 = vadd.f32 %v1815, %v2937
    %v2981 = vadd.f32 %v1835, %v2957
    %v2982 = vadd.f32 %v1855, %v2977
    %v2983 = vxor.u32 %v2979, 2147483648
    %v2984 = vxor.u32 %v2980, 2147483648
    %v2985 = vmul.f32 %v2983, 1.442695
    %v2986 = vpow.pop %v2985
    %v2987 = vmul.f32 %v2984, 1.442695
    %v2988 = vpow.pop %v2987
    %v2989 = vadd.f32 %v2986, 1.0
    %v2990 = vadd.f32 %v2988, 1.0
    %v2991 = vrcp.pop %v2989
    %v2992 = vmul.f32 %v2989, %v2991
    %v2993 = vsub.f32 1.0, %v2992
    %v2994 = vmul.f32 %v2991, %v2993
    %v2995 = vadd.f32 %v2991, %v2994
    %vm2996 = vweird.f32 %v2989
    %vm2997 = vweird.f32 %v2991
    %vm2998 = vmor %vm2996, %vm2997
    %v2999 = vsel %vm2998, %v2991, %v2995
    %v3000 = vand.u32 2147483647, %v2989
    %vm3001 = vcmp.eq.f32.partialorder %v3000, 8.507059e+37
    %v3002 = vand.u32 %v2989, 2147483648
    %v3003 = vor.u32 1.1754944e-38, %v3002
    %v3004 = vsel %vm3001, %v3003, %v2999
    %v3005 = vmul.f32 1.0, %v3004
    %v3006 = vrcp.pop %v2990
    %v3007 = vmul.f32 %v2990, %v3006
    %v3008 = vsub.f32 1.0, %v3007
    %v3009 = vmul.f32 %v3006, %v3008
    %v3010 = vadd.f32 %v3006, %v3009
    %vm3011 = vweird.f32 %v2990
    %vm3012 = vweird.f32 %v3006
    %vm3013 = vmor %vm3011, %vm3012
    %v3014 = vsel %vm3013, %v3006, %v3010
    %v3015 = vand.u32 2147483647, %v2990
    %vm3016 = vcmp.eq.f32.partialorder %v3015, 8.507059e+37
    %v3017 = vand.u32 %v2990, 2147483648
    %v3018 = vor.u32 1.1754944e-38, %v3017
    %v3019 = vsel %vm3016, %v3018, %v3014
    %v3020 = vmul.f32 1.0, %v3019
    %v3021 = vtanh.pop %v2981
    %v3022 = vxor.u32 %v2982, 2147483648
    %v3023 = vmul.f32 %v3022, 1.442695
    %v3024 = vpow.pop %v3023
    %v3025 = vadd.f32 %v3024, 1.0
    %v3026 = vrcp.pop %v3025
    %v3027 = vmul.f32 %v3025, %v3026
    %v3028 = vsub.f32 1.0, %v3027
    %v3029 = vmul.f32 %v3026, %v3028
    %v3030 = vadd.f32 %v3026, %v3029
    %vm3031 = vweird.f32 %v3025
    %vm3032 = vweird.f32 %v3026
    %vm3033 = vmor %vm3031, %vm3032
    %v3034 = vsel %vm3033, %v3026, %v3030
    %v3035 = vand.u32 2147483647, %v3025
    %vm3036 = vcmp.eq.f32.partialorder %v3035, 8.507059e+37
    %v3037 = vand.u32 %v3025, 2147483648
    %v3038 = vor.u32 1.1754944e-38, %v3037
    %v3039 = vsel %vm3036, %v3038, %v3034
    %v3040 = vmul.f32 1.0, %v3039
    %v3041 = vmul.f32 %v3020, %v2894
    %v3042 = vmul.f32 %v3005, %v3021
    %v3043 = vadd.f32 %v3041, %v3042
    %v3044 = vtanh.pop %v3043
    %v3045 = vmul.f32 %v3040, %v3044
    %s3046 = scalar_lea.vmem [#allocation14], 56
    %3047 = vst [vmem:[%s3046] sm:$0xff] %v3045
    // Predicated region
    $region54: #{tpu_custom_call.1} parent=1 // pred_check
      _
    $region55: #{tpu_custom_call.1} parent=1 // pred_check_branch
      %3049 = sbr.rel (0) target = $region57
    $region56: #{tpu_custom_call.1} parent=1 // pred_region
      %3051 = vsyncadd [#allocation5], 0
      %s3052 = sshll.u32 [#allocation14], 4
      %s3053 = int_to_ptr.vmem [resolvable:$true] %s3052
      %s3054 = sshll.u32 %s7, 4
      %s3055 = int_to_ptr.hbm [resolvable:$true] %s3054
      %3060 = dma.vmem_to_hbm [thread:$0]  %s3053, 1024, %s3055, [#allocation5], 128, 128, 8
    $region57: #{tpu_custom_call.1} parent=1 // pred_fallthru
      _
    // Predicated region
    $region58: #{tpu_custom_call.1} parent=1 // pred_check
      _
    $region59: #{tpu_custom_call.1} parent=1 // pred_check_branch
      %3062 = sbr.rel (0) target = $region61
    $region60: #{tpu_custom_call.1} parent=1 // pred_region
      %3064 = dma.done [#allocation5], 1024
    $region61: #{tpu_custom_call.1} parent=1 // pred_fallthru
      _
    %3065 = vsyncpa [#allocation4], 1
    %3066 = vsyncpa [#allocation7], 1
    %3067 = vsyncpa [#allocation10], 1
    %3068 = vsyncpa [#allocation13], 1
    %3069 = vsyncpa [#allocation5], 1

</llo_original>
